<compile_context>
chip_gen: v7x
topology: tpu7x:2x2x1
jax: 0.10.0
libtpu: 0.0.40
codegen_flags: <defaults>
</compile_context>

<pallas_src>
import jax
import jax.numpy as jnp
from jax.experimental import pallas as pl
from jax.experimental.pallas import tpu as pltpu


def _round_up(n, m):
    return (n + m - 1) // m * m


def _num_tensorcores():
    """TensorCores a single pallas_call can use via a 'parallel' grid axis."""
    try:
        kind = jax.devices()[0].device_kind.lower()
    except Exception:  # pragma: no cover
        return 1
    # v7x (2 TC/chip) and v4 (megacore) split a "parallel" axis across cores;
    # v5e / v6e are single-TensorCore, where splitting is a pure serial loss.
    if "7x" in kind or "v7" in kind or "v4" in kind:
        return 2
    return 1


def lstm_kernel(x_ref, wih_ref, whh_ref, b_ref, wlin_ref, blin_ref, y_ref,
                gx_sc, h_sc, c_sc, hbuf_sc, acc_sc):
    BB, Hp = h_sc.shape
    KC = hbuf_sc.shape[1] // Hp
    c_idx = pl.program_id(1)

    # ---- per-batch-block init (first time chunk) ----
    @pl.when(c_idx == 0)
    def _():
        h_sc[...] = jnp.zeros_like(h_sc)        # h_0 = 0
        c_sc[...] = jnp.zeros_like(c_sc)        # c_0 = 0
        acc_sc[...] = jnp.zeros_like(acc_sc)    # folded-Linear accumulator

    # ---- hoisted input projection for this chunk: ONE (KC*BB, Dp) matmul ----
    gx_sc[...] = (jnp.dot(x_ref[...], wih_ref[...],
                          preferred_element_type=jnp.float32)
                  + b_ref[...])                 # bias broadcast once per chunk

    # ---- KC fully-unrolled recurrent steps; h/c carried in vregs ----
    h = h_sc[...]
    c = c_sc[...]
    for k in range(KC):
        gates = gx_sc[k * BB:(k + 1) * BB, :] + jnp.dot(
            h, whh_ref[...], preferred_element_type=jnp.float32)
        # gate layout [i | f | o | g]: one sigmoid over (BB, 3Hp), one tanh
        sig = jax.nn.sigmoid(gates[:, :3 * Hp])
        g = jnp.tanh(gates[:, 3 * Hp:])
        i_g = sig[:, 0:Hp]
        f_g = sig[:, Hp:2 * Hp]
        o_g = sig[:, 2 * Hp:3 * Hp]
        c = f_g * c + i_g * g
        h = o_g * jnp.tanh(c)
        hbuf_sc[:, k * Hp:(k + 1) * Hp] = h     # stage for the chunked Linear
    h_sc[...] = h
    c_sc[...] = c

    # ---- chunked folded flatten+Linear: one K = KC*Hp matmul per chunk ----
    acc_sc[...] += jnp.dot(hbuf_sc[...], wlin_ref[...],
                           preferred_element_type=jnp.float32)

    # ---- finalize ----
    @pl.when(c_idx == pl.num_programs(1) - 1)
    def _():
        y_ref[...] = acc_sc[...] + blin_ref[...]


def lstm_forward(x, params, *, kc=8):
    """x: (B, T, D) float32, batch_first like the PyTorch module."""
    B, T, D = x.shape
    w_ih, w_hh = params["w_ih"], params["w_hh"]          # (4H, D), (4H, H)
    b_ih, b_hh = params["b_ih"], params["b_hh"]          # (4H,), (4H,)
    w_lin, b_lin = params["w_lin"], params["b_lin"]      # (out, T*H), (out,)
    H = w_hh.shape[1]
    out_len = w_lin.shape[0]
    f32 = jnp.float32

    # ---- padded / lane-aligned sizes ----
    Hp = _round_up(H, 128)
    Dp = _round_up(D, 128)
    OUTp = _round_up(out_len, 128)
    Tp = _round_up(T, kc)
    NC = Tp // kc

    # ---- batch blocking: split only when it can actually help ----
    Bp0 = _round_up(B, 8)
    n_tc = _num_tensorcores()
    if (n_tc >= 2 and Bp0 >= 16) or Bp0 >= 256:
        nb = 2
        BB = _round_up((Bp0 + 1) // 2, 8)
    else:
        nb = 1
        BB = Bp0
    Bp = nb * BB

    # ---- weight prep: gate reorder [i, f, o, g] + zero lane padding ----
    def _pad2(a, rows, cols):
        return jnp.pad(a, ((0, rows - a.shape[0]), (0, cols - a.shape[1])))

    order = (0, 1, 3, 2)  # PyTorch [i, f, g, o]  ->  [i, f, o, g]
    wih_p = jnp.concatenate(
        [_pad2(w_ih[j * H:(j + 1) * H].T.astype(f32), Dp, Hp) for j in order],
        axis=1)                                            # (Dp, 4Hp)
    whh_p = jnp.concatenate(
        [_pad2(w_hh[j * H:(j + 1) * H].T.astype(f32), Hp, Hp) for j in order],
        axis=1)                                            # (Hp, 4Hp)
    bsum = (b_ih + b_hh).astype(f32)
    b_p = jnp.concatenate(
        [jnp.pad(bsum[j * H:(j + 1) * H], (0, Hp - H)) for j in order]
    ).reshape(1, 4 * Hp)                                   # (1, 4Hp)

    # flatten+Linear folded per timestep, grouped in chunks of kc steps
    wlin_t = w_lin.T.reshape(T, H, out_len).astype(f32)    # (T, H, out)
    wlin_p = jnp.pad(wlin_t,
                     ((0, Tp - T), (0, Hp - H), (0, OUTp - out_len)))
    wlin_c = wlin_p.reshape(NC, kc * Hp, OUTp)             # (NC, kc*Hp, OUTp)
    blin_p = jnp.pad(b_lin.astype(f32), (0, OUTp - out_len)).reshape(1, OUTp)

    # host-side x layout: (nb, NC, kc*BB, Dp) with row = k*BB + b per chunk
    x_tm = jnp.transpose(x, (1, 0, 2)).astype(f32)         # (T, B, D)
    x_p = jnp.pad(x_tm, ((0, Tp - T), (0, Bp - B), (0, Dp - D)))
    x_r = (x_p.reshape(NC, kc, nb, BB, Dp)
              .transpose(2, 0, 1, 3, 4)
              .reshape(nb, NC, kc * BB, Dp))

    # ---- VMEM budget: double-buffered streamed blocks + scratch ----
    dbuf = 2 * (kc * BB * Dp + Dp * 4 * Hp + Hp * 4 * Hp + 4 * Hp
                + kc * Hp * OUTp + OUTp + BB * OUTp)
    scratch = kc * BB * 4 * Hp + 2 * BB * Hp + BB * kc * Hp + BB * OUTp
    need_bytes = 4 * (dbuf + scratch)
    cap = (48 << 20) if n_tc >= 2 else (100 << 20)   # v7x: 64 MiB/TC physical
    vmem_limit = int(min(cap, max(2 * need_bytes, 32 << 20)))

    out = pl.pallas_call(
        lstm_kernel,
        out_shape=jax.ShapeDtypeStruct((Bp, OUTp), f32),
        grid_spec=pltpu.PrefetchScalarGridSpec(
            num_scalar_prefetch=0,
            grid=(nb, NC),
            in_specs=[
                pl.BlockSpec((None, None, kc * BB, Dp),
                             lambda i, c: (i, c, 0, 0)),           # x chunk
                pl.BlockSpec((Dp, 4 * Hp), lambda i, c: (0, 0)),   # Wih
                pl.BlockSpec((Hp, 4 * Hp), lambda i, c: (0, 0)),   # Whh
                pl.BlockSpec((1, 4 * Hp), lambda i, c: (0, 0)),    # bias
                pl.BlockSpec((None, kc * Hp, OUTp),
                             lambda i, c: (c, 0, 0)),              # Wlin chunk
                pl.BlockSpec((1, OUTp), lambda i, c: (0, 0)),      # blin
            ],
            out_specs=pl.BlockSpec((BB, OUTp), lambda i, c: (i, 0)),
            scratch_shapes=[
                pltpu.VMEM((kc * BB, 4 * Hp), f32),   # per-chunk gx projection
                pltpu.VMEM((BB, Hp), f32),            # h carry
                pltpu.VMEM((BB, Hp), f32),            # c carry
                pltpu.VMEM((BB, kc * Hp), f32),       # h chunk buffer
                pltpu.VMEM((BB, OUTp), f32),          # Linear accumulator
            ],
        ),
        compiler_params=pltpu.CompilerParams(
            dimension_semantics=("parallel", "arbitrary"),
            vmem_limit_bytes=vmem_limit,
        ),
    )(x_r, wih_p, whh_p, b_p, wlin_c, blin_p)
    return out[:B, :out_len]


def lstm_reference(x, params):
    """Pure-JAX reference mirroring torch.nn.LSTM + Linear."""
    B, T, D = x.shape
    w_ih, w_hh = params["w_ih"], params["w_hh"]
    b_ih, b_hh = params["b_ih"], params["b_hh"]
    w_lin, b_lin = params["w_lin"], params["b_lin"]
    H = w_hh.shape[1]

    def step(carry, x_t):
        h, c = carry
        gates = x_t @ w_ih.T + h @ w_hh.T + b_ih + b_hh
        i = jax.nn.sigmoid(gates[:, 0 * H:1 * H])
        f = jax.nn.sigmoid(gates[:, 1 * H:2 * H])
        g = jnp.tanh(gates[:, 2 * H:3 * H])
        o = jax.nn.sigmoid(gates[:, 3 * H:4 * H])
        c = f * c + i * g
        h = o * jnp.tanh(c)
        return (h, c), h

    h0 = jnp.zeros((B, H), jnp.float32)
    c0 = jnp.zeros((B, H), jnp.float32)
    _, hs = jax.lax.scan(step, (h0, c0), jnp.transpose(x, (1, 0, 2)))
    out = jnp.transpose(hs, (1, 0, 2)).reshape(B, T * H)   # (B, T*H)
    return out @ w_lin.T + b_lin


def _make_params(key, T, D, H, OUT):
    k = 1.0 / jnp.sqrt(jnp.float32(H))
    keys = jax.random.split(key, 7)
    params = {
        "w_ih": jax.random.uniform(keys[0], (4 * H, D), jnp.float32, -k, k),
        "w_hh": jax.random.uniform(keys[1], (4 * H, H), jnp.float32, -k, k),
        "b_ih": jax.random.uniform(keys[2], (4 * H,), jnp.float32, -k, k),
        "b_hh": jax.random.uniform(keys[3], (4 * H,), jnp.float32, -k, k),
        "w_lin": jax.random.uniform(keys[4], (OUT, T * H), jnp.float32, -k, k),
        "b_lin": jax.random.uniform(keys[5], (OUT,), jnp.float32, -k, k),
    }
    return params, keys[6]


if __name__ == "__main__":
    key = jax.random.PRNGKey(0)

    # Config 1: small, deliberately misaligned shapes (module defaults D=48,
    # H=100, out=100 are not lane-aligned) -> exercises every padding path
    # (B, T, D, H, out) and a multi-chunk streamed time axis (NC=2).
    B, T, D, H, OUT = 5, 12, 48, 36, 52
    params, key = _make_params(key, T, D, H, OUT)
    x = jax.random.normal(key, (B, T, D), jnp.float32)
    y = jax.block_until_ready(lstm_forward(x, params))
    y_ref = jax.block_until_ready(lstm_reference(x, params))
    assert y.shape == (B, OUT)
    assert jnp.allclose(y, y_ref, atol=1e-4, rtol=1e-4), (
        f"config1 max abs err {float(jnp.max(jnp.abs(y - y_ref)))}")

    # Config 2: larger batch -> exercises the core-count-gated 2-block path
    # on multi-TC chips (v7x/v4) and the single-block path on v5e/v6e.
    B2, T2, D2, H2, OUT2 = 16, 8, 16, 32, 16
    key2 = jax.random.PRNGKey(1)
    params2, key2 = _make_params(key2, T2, D2, H2, OUT2)
    x2 = jax.random.normal(key2, (B2, T2, D2), jnp.float32)
    y2 = jax.block_until_ready(lstm_forward(x2, params2))
    y2_ref = jax.block_until_ready(lstm_reference(x2, params2))
    assert y2.shape == (B2, OUT2)
    assert jnp.allclose(y2, y2_ref, atol=1e-4, rtol=1e-4), (
        f"config2 max abs err {float(jnp.max(jnp.abs(y2 - y2_ref)))}")

    print("KERNEL_OK")
</pallas_src>

<mosaic_0001>
module attributes {stable_mosaic.version = 11 : i64} {
  func.func @lstm_kernel(%arg0: i32, %arg1: i32, %arg2: memref<1x1x64x128xf32, #tpu.memory_space<vmem>>, %arg3: memref<128x512xf32, #tpu.memory_space<vmem>>, %arg4: memref<128x512xf32, #tpu.memory_space<vmem>>, %arg5: memref<1x512xf32, #tpu.memory_space<vmem>>, %arg6: memref<1x1024x128xf32, #tpu.memory_space<vmem>>, %arg7: memref<1x128xf32, #tpu.memory_space<vmem>>, %arg8: memref<8x128xf32, #tpu.memory_space<vmem>>, %arg9: memref<64x512xf32, #tpu.memory_space<vmem>>, %arg10: memref<8x128xf32, #tpu.memory_space<vmem>>, %arg11: memref<8x128xf32, #tpu.memory_space<vmem>>, %arg12: memref<8x1024xf32, #tpu.memory_space<vmem>>, %arg13: memref<8x128xf32, #tpu.memory_space<vmem>>) attributes {dimension_semantics = [#tpu.dimension_semantics<parallel>, #tpu.dimension_semantics<arbitrary>], iteration_bounds = array<i64: 1, 2>, scalar_prefetch = 0 : i64, scratch_operands = 5 : i64, tpu.core_type = #tpu.core_type<tc>, window_params = [{transform_indices = @transform_0, window_bounds = array<i64: 1, 1, 64, 128>}, {pipeline_mode = #tpu.pipeline_mode<synchronous>, transform_indices = @transform_1, window_bounds = array<i64: 128, 512>}, {pipeline_mode = #tpu.pipeline_mode<synchronous>, transform_indices = @transform_2, window_bounds = array<i64: 128, 512>}, {pipeline_mode = #tpu.pipeline_mode<synchronous>, transform_indices = @transform_3, window_bounds = array<i64: 1, 512>}, {transform_indices = @transform_4, window_bounds = array<i64: 1, 1024, 128>}, {pipeline_mode = #tpu.pipeline_mode<synchronous>, transform_indices = @transform_5, window_bounds = array<i64: 1, 128>}, {transform_indices = @transform_6, window_bounds = array<i64: 8, 128>}]} {
    %c0_i32 = arith.constant 0 : i32
    %0 = arith.cmpi eq, %arg1, %c0_i32 : i32
    %1 = arith.extui %0 : i1 to i32
    %c0_i32_0 = arith.constant 0 : i32
    %2 = arith.cmpi ne, %1, %c0_i32_0 : i32
    scf.if %2 {
      %cst_79 = arith.constant 0.000000e+00 : f32
      %193 = vector.broadcast %cst_79 : f32 to vector<8x128xf32>
      %c0_80 = arith.constant 0 : index
      %c0_81 = arith.constant 0 : index
      %194 = vector.load %arg10[%c0_80, %c0_81] : memref<8x128xf32, #tpu.memory_space<vmem>>, vector<8x128xf32>
      tpu.vector_store %arg10[%c0_80, %c0_81], %193 {strides = array<i32>} : memref<8x128xf32, #tpu.memory_space<vmem>>, vector<8x128xf32>,
      %cst_82 = arith.constant 0.000000e+00 : f32
      %195 = vector.broadcast %cst_82 : f32 to vector<8x128xf32>
      %c0_83 = arith.constant 0 : index
      %c0_84 = arith.constant 0 : index
      %196 = vector.load %arg11[%c0_83, %c0_84] : memref<8x128xf32, #tpu.memory_space<vmem>>, vector<8x128xf32>
      tpu.vector_store %arg11[%c0_83, %c0_84], %195 {strides = array<i32>} : memref<8x128xf32, #tpu.memory_space<vmem>>, vector<8x128xf32>,
      %cst_85 = arith.constant 0.000000e+00 : f32
      %197 = vector.broadcast %cst_85 : f32 to vector<8x128xf32>
      %c0_86 = arith.constant 0 : index
      %c0_87 = arith.constant 0 : index
      %198 = vector.load %arg13[%c0_86, %c0_87] : memref<8x128xf32, #tpu.memory_space<vmem>>, vector<8x128xf32>
      tpu.vector_store %arg13[%c0_86, %c0_87], %197 {strides = array<i32>} : memref<8x128xf32, #tpu.memory_space<vmem>>, vector<8x128xf32>,
    } else {
    }
    %c0 = arith.constant 0 : index
    %c0_1 = arith.constant 0 : index
    %c0_2 = arith.constant 0 : index
    %c0_3 = arith.constant 0 : index
    %3 = vector.load %arg2[%c0, %c0_1, %c0_2, %c0_3] : memref<1x1x64x128xf32, #tpu.memory_space<vmem>>, vector<1x1x64x128xf32>
    %4 = vector.shape_cast %3 : vector<1x1x64x128xf32> to vector<64x128xf32>
    %c0_4 = arith.constant 0 : index
    %c0_5 = arith.constant 0 : index
    %5 = vector.load %arg3[%c0_4, %c0_5] : memref<128x512xf32, #tpu.memory_space<vmem>>, vector<128x512xf32>
    %cst = arith.constant dense<0.000000e+00> : vector<64x512xf32>
    %6 = tpu.matmul %4, %5, %cst {dimension_numbers = #tpu.dot_dimension_numbers<[1], [0], [0], [1], [0, 0, 1, 1], [], []>} : vector<64x128xf32>, vector<128x512xf32>, vector<64x512xf32> -> vector<64x512xf32>
    %c0_6 = arith.constant 0 : index
    %c0_7 = arith.constant 0 : index
    %7 = vector.load %arg5[%c0_6, %c0_7] : memref<1x512xf32, #tpu.memory_space<vmem>>, vector<1x512xf32>
    %8 = vector.broadcast %7 : vector<1x512xf32> to vector<64x512xf32>
    %9 = arith.addf %6, %8 : vector<64x512xf32>
    %c0_8 = arith.constant 0 : index
    %c0_9 = arith.constant 0 : index
    %10 = vector.load %arg9[%c0_8, %c0_9] : memref<64x512xf32, #tpu.memory_space<vmem>>, vector<64x512xf32>
    tpu.vector_store %arg9[%c0_8, %c0_9], %9 {strides = array<i32>} : memref<64x512xf32, #tpu.memory_space<vmem>>, vector<64x512xf32>,
    %c0_10 = arith.constant 0 : index
    %c0_11 = arith.constant 0 : index
    %11 = vector.load %arg10[%c0_10, %c0_11] : memref<8x128xf32, #tpu.memory_space<vmem>>, vector<8x128xf32>
    %c0_12 = arith.constant 0 : index
    %c0_13 = arith.constant 0 : index
    %12 = vector.load %arg11[%c0_12, %c0_13] : memref<8x128xf32, #tpu.memory_space<vmem>>, vector<8x128xf32>
    %c0_14 = arith.constant 0 : index
    %c0_15 = arith.constant 0 : index
    %13 = vector.load %arg9[%c0_14, %c0_15] : memref<64x512xf32, #tpu.memory_space<vmem>>, vector<8x512xf32>
    %c0_16 = arith.constant 0 : index
    %c0_17 = arith.constant 0 : index
    %14 = vector.load %arg4[%c0_16, %c0_17] : memref<128x512xf32, #tpu.memory_space<vmem>>, vector<128x512xf32>
    %cst_18 = arith.constant dense<0.000000e+00> : vector<8x512xf32>
    %15 = tpu.matmul %11, %14, %cst_18 {dimension_numbers = #tpu.dot_dimension_numbers<[1], [0], [0], [1], [0, 0, 1, 1], [], []>} : vector<8x128xf32>, vector<128x512xf32>, vector<8x512xf32> -> vector<8x512xf32>
    %16 = arith.addf %13, %15 : vector<8x512xf32>
    %17 = vector.extract_strided_slice %16 {offsets = [0, 0], sizes = [8, 384], strides = [1, 1]} : vector<8x512xf32> to vector<8x384xf32>
    %18 = arith.negf %17 : vector<8x384xf32>
    %19 = math.exp %18 : vector<8x384xf32>
    %cst_19 = arith.constant 1.000000e+00 : f32
    %20 = vector.broadcast %cst_19 : f32 to vector<8x384xf32>
    %21 = arith.addf %20, %19 : vector<8x384xf32>
    %22 = arith.divf %20, %21 : vector<8x384xf32>
    %23 = vector.extract_strided_slice %16 {offsets = [0, 384], sizes = [8, 128], strides = [1, 1]} : vector<8x512xf32> to vector<8x128xf32>
    %24 = math.tanh %23 : vector<8x128xf32>
    %25 = vector.extract_strided_slice %22 {offsets = [0, 0], sizes = [8, 128], strides = [1, 1]} : vector<8x384xf32> to vector<8x128xf32>
    %26 = vector.extract_strided_slice %22 {offsets = [0, 128], sizes = [8, 128], strides = [1, 1]} : vector<8x384xf32> to vector<8x128xf32>
    %27 = vector.extract_strided_slice %22 {offsets = [0, 256], sizes = [8, 128], strides = [1, 1]} : vector<8x384xf32> to vector<8x128xf32>
    %28 = arith.mulf %26, %12 : vector<8x128xf32>
    %29 = arith.mulf %25, %24 : vector<8x128xf32>
    %30 = arith.addf %28, %29 : vector<8x128xf32>
    %31 = math.tanh %30 : vector<8x128xf32>
    %32 = arith.mulf %27, %31 : vector<8x128xf32>
    %c0_20 = arith.constant 0 : index
    %c0_21 = arith.constant 0 : index
    %33 = vector.load %arg12[%c0_20, %c0_21] : memref<8x1024xf32, #tpu.memory_space<vmem>>, vector<8x128xf32>
    tpu.vector_store %arg12[%c0_20, %c0_21], %32 {strides = array<i32>} : memref<8x1024xf32, #tpu.memory_space<vmem>>, vector<8x128xf32>,
    %c8 = arith.constant 8 : index
    %c0_22 = arith.constant 0 : index
    %34 = vector.load %arg9[%c8, %c0_22] : memref<64x512xf32, #tpu.memory_space<vmem>>, vector<8x512xf32>
    %c0_23 = arith.constant 0 : index
    %c0_24 = arith.constant 0 : index
    %35 = vector.load %arg4[%c0_23, %c0_24] : memref<128x512xf32, #tpu.memory_space<vmem>>, vector<128x512xf32>
    %cst_25 = arith.constant dense<0.000000e+00> : vector<8x512xf32>
    %36 = tpu.matmul %32, %35, %cst_25 {dimension_numbers = #tpu.dot_dimension_numbers<[1], [0], [0], [1], [0, 0, 1, 1], [], []>} : vector<8x128xf32>, vector<128x512xf32>, vector<8x512xf32> -> vector<8x512xf32>
    %37 = arith.addf %34, %36 : vector<8x512xf32>
    %38 = vector.extract_strided_slice %37 {offsets = [0, 0], sizes = [8, 384], strides = [1, 1]} : vector<8x512xf32> to vector<8x384xf32>
    %39 = arith.negf %38 : vector<8x384xf32>
    %40 = math.exp %39 : vector<8x384xf32>
    %cst_26 = arith.constant 1.000000e+00 : f32
    %41 = vector.broadcast %cst_26 : f32 to vector<8x384xf32>
    %42 = arith.addf %41, %40 : vector<8x384xf32>
    %43 = arith.divf %41, %42 : vector<8x384xf32>
    %44 = vector.extract_strided_slice %37 {offsets = [0, 384], sizes = [8, 128], strides = [1, 1]} : vector<8x512xf32> to vector<8x128xf32>
    %45 = math.tanh %44 : vector<8x128xf32>
    %46 = vector.extract_strided_slice %43 {offsets = [0, 0], sizes = [8, 128], strides = [1, 1]} : vector<8x384xf32> to vector<8x128xf32>
    %47 = vector.extract_strided_slice %43 {offsets = [0, 128], sizes = [8, 128], strides = [1, 1]} : vector<8x384xf32> to vector<8x128xf32>
    %48 = vector.extract_strided_slice %43 {offsets = [0, 256], sizes = [8, 128], strides = [1, 1]} : vector<8x384xf32> to vector<8x128xf32>
    %49 = arith.mulf %47, %30 : vector<8x128xf32>
    %50 = arith.mulf %46, %45 : vector<8x128xf32>
    %51 = arith.addf %49, %50 : vector<8x128xf32>
    %52 = math.tanh %51 : vector<8x128xf32>
    %53 = arith.mulf %48, %52 : vector<8x128xf32>
    %c0_27 = arith.constant 0 : index
    %c128 = arith.constant 128 : index
    %54 = vector.load %arg12[%c0_27, %c128] : memref<8x1024xf32, #tpu.memory_space<vmem>>, vector<8x128xf32>
    tpu.vector_store %arg12[%c0_27, %c128], %53 {strides = array<i32>} : memref<8x1024xf32, #tpu.memory_space<vmem>>, vector<8x128xf32>,
    %c16 = arith.constant 16 : index
    %c0_28 = arith.constant 0 : index
    %55 = vector.load %arg9[%c16, %c0_28] : memref<64x512xf32, #tpu.memory_space<vmem>>, vector<8x512xf32>
    %c0_29 = arith.constant 0 : index
    %c0_30 = arith.constant 0 : index
    %56 = vector.load %arg4[%c0_29, %c0_30] : memref<128x512xf32, #tpu.memory_space<vmem>>, vector<128x512xf32>
    %cst_31 = arith.constant dense<0.000000e+00> : vector<8x512xf32>
    %57 = tpu.matmul %53, %56, %cst_31 {dimension_numbers = #tpu.dot_dimension_numbers<[1], [0], [0], [1], [0, 0, 1, 1], [], []>} : vector<8x128xf32>, vector<128x512xf32>, vector<8x512xf32> -> vector<8x512xf32>
    %58 = arith.addf %55, %57 : vector<8x512xf32>
    %59 = vector.extract_strided_slice %58 {offsets = [0, 0], sizes = [8, 384], strides = [1, 1]} : vector<8x512xf32> to vector<8x384xf32>
    %60 = arith.negf %59 : vector<8x384xf32>
    %61 = math.exp %60 : vector<8x384xf32>
    %cst_32 = arith.constant 1.000000e+00 : f32
    %62 = vector.broadcast %cst_32 : f32 to vector<8x384xf32>
    %63 = arith.addf %62, %61 : vector<8x384xf32>
    %64 = arith.divf %62, %63 : vector<8x384xf32>
    %65 = vector.extract_strided_slice %58 {offsets = [0, 384], sizes = [8, 128], strides = [1, 1]} : vector<8x512xf32> to vector<8x128xf32>
    %66 = math.tanh %65 : vector<8x128xf32>
    %67 = vector.extract_strided_slice %64 {offsets = [0, 0], sizes = [8, 128], strides = [1, 1]} : vector<8x384xf32> to vector<8x128xf32>
    %68 = vector.extract_strided_slice %64 {offsets = [0, 128], sizes = [8, 128], strides = [1, 1]} : vector<8x384xf32> to vector<8x128xf32>
    %69 = vector.extract_strided_slice %64 {offsets = [0, 256], sizes = [8, 128], strides = [1, 1]} : vector<8x384xf32> to vector<8x128xf32>
    %70 = arith.mulf %68, %51 : vector<8x128xf32>
    %71 = arith.mulf %67, %66 : vector<8x128xf32>
    %72 = arith.addf %70, %71 : vector<8x128xf32>
    %73 = math.tanh %72 : vector<8x128xf32>
    %74 = arith.mulf %69, %73 : vector<8x128xf32>
    %c0_33 = arith.constant 0 : index
    %c256 = arith.constant 256 : index
    %75 = vector.load %arg12[%c0_33, %c256] : memref<8x1024xf32, #tpu.memory_space<vmem>>, vector<8x128xf32>
    tpu.vector_store %arg12[%c0_33, %c256], %74 {strides = array<i32>} : memref<8x1024xf32, #tpu.memory_space<vmem>>, vector<8x128xf32>,
    %c24 = arith.constant 24 : index
    %c0_34 = arith.constant 0 : index
    %76 = vector.load %arg9[%c24, %c0_34] : memref<64x512xf32, #tpu.memory_space<vmem>>, vector<8x512xf32>
    %c0_35 = arith.constant 0 : index
    %c0_36 = arith.constant 0 : index
    %77 = vector.load %arg4[%c0_35, %c0_36] : memref<128x512xf32, #tpu.memory_space<vmem>>, vector<128x512xf32>
    %cst_37 = arith.constant dense<0.000000e+00> : vector<8x512xf32>
    %78 = tpu.matmul %74, %77, %cst_37 {dimension_numbers = #tpu.dot_dimension_numbers<[1], [0], [0], [1], [0, 0, 1, 1], [], []>} : vector<8x128xf32>, vector<128x512xf32>, vector<8x512xf32> -> vector<8x512xf32>
    %79 = arith.addf %76, %78 : vector<8x512xf32>
    %80 = vector.extract_strided_slice %79 {offsets = [0, 0], sizes = [8, 384], strides = [1, 1]} : vector<8x512xf32> to vector<8x384xf32>
    %81 = arith.negf %80 : vector<8x384xf32>
    %82 = math.exp %81 : vector<8x384xf32>
    %cst_38 = arith.constant 1.000000e+00 : f32
    %83 = vector.broadcast %cst_38 : f32 to vector<8x384xf32>
    %84 = arith.addf %83, %82 : vector<8x384xf32>
    %85 = arith.divf %83, %84 : vector<8x384xf32>
    %86 = vector.extract_strided_slice %79 {offsets = [0, 384], sizes = [8, 128], strides = [1, 1]} : vector<8x512xf32> to vector<8x128xf32>
    %87 = math.tanh %86 : vector<8x128xf32>
    %88 = vector.extract_strided_slice %85 {offsets = [0, 0], sizes = [8, 128], strides = [1, 1]} : vector<8x384xf32> to vector<8x128xf32>
    %89 = vector.extract_strided_slice %85 {offsets = [0, 128], sizes = [8, 128], strides = [1, 1]} : vector<8x384xf32> to vector<8x128xf32>
    %90 = vector.extract_strided_slice %85 {offsets = [0, 256], sizes = [8, 128], strides = [1, 1]} : vector<8x384xf32> to vector<8x128xf32>
    %91 = arith.mulf %89, %72 : vector<8x128xf32>
    %92 = arith.mulf %88, %87 : vector<8x128xf32>
    %93 = arith.addf %91, %92 : vector<8x128xf32>
    %94 = math.tanh %93 : vector<8x128xf32>
    %95 = arith.mulf %90, %94 : vector<8x128xf32>
    %c0_39 = arith.constant 0 : index
    %c384 = arith.constant 384 : index
    %96 = vector.load %arg12[%c0_39, %c384] : memref<8x1024xf32, #tpu.memory_space<vmem>>, vector<8x128xf32>
    tpu.vector_store %arg12[%c0_39, %c384], %95 {strides = array<i32>} : memref<8x1024xf32, #tpu.memory_space<vmem>>, vector<8x128xf32>,
    %c32 = arith.constant 32 : index
    %c0_40 = arith.constant 0 : index
    %97 = vector.load %arg9[%c32, %c0_40] : memref<64x512xf32, #tpu.memory_space<vmem>>, vector<8x512xf32>
    %c0_41 = arith.constant 0 : index
    %c0_42 = arith.constant 0 : index
    %98 = vector.load %arg4[%c0_41, %c0_42] : memref<128x512xf32, #tpu.memory_space<vmem>>, vector<128x512xf32>
    %cst_43 = arith.constant dense<0.000000e+00> : vector<8x512xf32>
    %99 = tpu.matmul %95, %98, %cst_43 {dimension_numbers = #tpu.dot_dimension_numbers<[1], [0], [0], [1], [0, 0, 1, 1], [], []>} : vector<8x128xf32>, vector<128x512xf32>, vector<8x512xf32> -> vector<8x512xf32>
    %100 = arith.addf %97, %99 : vector<8x512xf32>
    %101 = vector.extract_strided_slice %100 {offsets = [0, 0], sizes = [8, 384], strides = [1, 1]} : vector<8x512xf32> to vector<8x384xf32>
    %102 = arith.negf %101 : vector<8x384xf32>
    %103 = math.exp %102 : vector<8x384xf32>
    %cst_44 = arith.constant 1.000000e+00 : f32
    %104 = vector.broadcast %cst_44 : f32 to vector<8x384xf32>
    %105 = arith.addf %104, %103 : vector<8x384xf32>
    %106 = arith.divf %104, %105 : vector<8x384xf32>
    %107 = vector.extract_strided_slice %100 {offsets = [0, 384], sizes = [8, 128], strides = [1, 1]} : vector<8x512xf32> to vector<8x128xf32>
    %108 = math.tanh %107 : vector<8x128xf32>
    %109 = vector.extract_strided_slice %106 {offsets = [0, 0], sizes = [8, 128], strides = [1, 1]} : vector<8x384xf32> to vector<8x128xf32>
    %110 = vector.extract_strided_slice %106 {offsets = [0, 128], sizes = [8, 128], strides = [1, 1]} : vector<8x384xf32> to vector<8x128xf32>
    %111 = vector.extract_strided_slice %106 {offsets = [0, 256], sizes = [8, 128], strides = [1, 1]} : vector<8x384xf32> to vector<8x128xf32>
    %112 = arith.mulf %110, %93 : vector<8x128xf32>
    %113 = arith.mulf %109, %108 : vector<8x128xf32>
    %114 = arith.addf %112, %113 : vector<8x128xf32>
    %115 = math.tanh %114 : vector<8x128xf32>
    %116 = arith.mulf %111, %115 : vector<8x128xf32>
    %c0_45 = arith.constant 0 : index
    %c512 = arith.constant 512 : index
    %117 = vector.load %arg12[%c0_45, %c512] : memref<8x1024xf32, #tpu.memory_space<vmem>>, vector<8x128xf32>
    tpu.vector_store %arg12[%c0_45, %c512], %116 {strides = array<i32>} : memref<8x1024xf32, #tpu.memory_space<vmem>>, vector<8x128xf32>,
    %c40 = arith.constant 40 : index
    %c0_46 = arith.constant 0 : index
    %118 = vector.load %arg9[%c40, %c0_46] : memref<64x512xf32, #tpu.memory_space<vmem>>, vector<8x512xf32>
    %c0_47 = arith.constant 0 : index
    %c0_48 = arith.constant 0 : index
    %119 = vector.load %arg4[%c0_47, %c0_48] : memref<128x512xf32, #tpu.memory_space<vmem>>, vector<128x512xf32>
    %cst_49 = arith.constant dense<0.000000e+00> : vector<8x512xf32>
    %120 = tpu.matmul %116, %119, %cst_49 {dimension_numbers = #tpu.dot_dimension_numbers<[1], [0], [0], [1], [0, 0, 1, 1], [], []>} : vector<8x128xf32>, vector<128x512xf32>, vector<8x512xf32> -> vector<8x512xf32>
    %121 = arith.addf %118, %120 : vector<8x512xf32>
    %122 = vector.extract_strided_slice %121 {offsets = [0, 0], sizes = [8, 384], strides = [1, 1]} : vector<8x512xf32> to vector<8x384xf32>
    %123 = arith.negf %122 : vector<8x384xf32>
    %124 = math.exp %123 : vector<8x384xf32>
    %cst_50 = arith.constant 1.000000e+00 : f32
    %125 = vector.broadcast %cst_50 : f32 to vector<8x384xf32>
    %126 = arith.addf %125, %124 : vector<8x384xf32>
    %127 = arith.divf %125, %126 : vector<8x384xf32>
    %128 = vector.extract_strided_slice %121 {offsets = [0, 384], sizes = [8, 128], strides = [1, 1]} : vector<8x512xf32> to vector<8x128xf32>
    %129 = math.tanh %128 : vector<8x128xf32>
    %130 = vector.extract_strided_slice %127 {offsets = [0, 0], sizes = [8, 128], strides = [1, 1]} : vector<8x384xf32> to vector<8x128xf32>
    %131 = vector.extract_strided_slice %127 {offsets = [0, 128], sizes = [8, 128], strides = [1, 1]} : vector<8x384xf32> to vector<8x128xf32>
    %132 = vector.extract_strided_slice %127 {offsets = [0, 256], sizes = [8, 128], strides = [1, 1]} : vector<8x384xf32> to vector<8x128xf32>
    %133 = arith.mulf %131, %114 : vector<8x128xf32>
    %134 = arith.mulf %130, %129 : vector<8x128xf32>
    %135 = arith.addf %133, %134 : vector<8x128xf32>
    %136 = math.tanh %135 : vector<8x128xf32>
    %137 = arith.mulf %132, %136 : vector<8x128xf32>
    %c0_51 = arith.constant 0 : index
    %c640 = arith.constant 640 : index
    %138 = vector.load %arg12[%c0_51, %c640] : memref<8x1024xf32, #tpu.memory_space<vmem>>, vector<8x128xf32>
    tpu.vector_store %arg12[%c0_51, %c640], %137 {strides = array<i32>} : memref<8x1024xf32, #tpu.memory_space<vmem>>, vector<8x128xf32>,
    %c48 = arith.constant 48 : index
    %c0_52 = arith.constant 0 : index
    %139 = vector.load %arg9[%c48, %c0_52] : memref<64x512xf32, #tpu.memory_space<vmem>>, vector<8x512xf32>
    %c0_53 = arith.constant 0 : index
    %c0_54 = arith.constant 0 : index
    %140 = vector.load %arg4[%c0_53, %c0_54] : memref<128x512xf32, #tpu.memory_space<vmem>>, vector<128x512xf32>
    %cst_55 = arith.constant dense<0.000000e+00> : vector<8x512xf32>
    %141 = tpu.matmul %137, %140, %cst_55 {dimension_numbers = #tpu.dot_dimension_numbers<[1], [0], [0], [1], [0, 0, 1, 1], [], []>} : vector<8x128xf32>, vector<128x512xf32>, vector<8x512xf32> -> vector<8x512xf32>
    %142 = arith.addf %139, %141 : vector<8x512xf32>
    %143 = vector.extract_strided_slice %142 {offsets = [0, 0], sizes = [8, 384], strides = [1, 1]} : vector<8x512xf32> to vector<8x384xf32>
    %144 = arith.negf %143 : vector<8x384xf32>
    %145 = math.exp %144 : vector<8x384xf32>
    %cst_56 = arith.constant 1.000000e+00 : f32
    %146 = vector.broadcast %cst_56 : f32 to vector<8x384xf32>
    %147 = arith.addf %146, %145 : vector<8x384xf32>
    %148 = arith.divf %146, %147 : vector<8x384xf32>
    %149 = vector.extract_strided_slice %142 {offsets = [0, 384], sizes = [8, 128], strides = [1, 1]} : vector<8x512xf32> to vector<8x128xf32>
    %150 = math.tanh %149 : vector<8x128xf32>
    %151 = vector.extract_strided_slice %148 {offsets = [0, 0], sizes = [8, 128], strides = [1, 1]} : vector<8x384xf32> to vector<8x128xf32>
    %152 = vector.extract_strided_slice %148 {offsets = [0, 128], sizes = [8, 128], strides = [1, 1]} : vector<8x384xf32> to vector<8x128xf32>
    %153 = vector.extract_strided_slice %148 {offsets = [0, 256], sizes = [8, 128], strides = [1, 1]} : vector<8x384xf32> to vector<8x128xf32>
    %154 = arith.mulf %152, %135 : vector<8x128xf32>
    %155 = arith.mulf %151, %150 : vector<8x128xf32>
    %156 = arith.addf %154, %155 : vector<8x128xf32>
    %157 = math.tanh %156 : vector<8x128xf32>
    %158 = arith.mulf %153, %157 : vector<8x128xf32>
    %c0_57 = arith.constant 0 : index
    %c768 = arith.constant 768 : index
    %159 = vector.load %arg12[%c0_57, %c768] : memref<8x1024xf32, #tpu.memory_space<vmem>>, vector<8x128xf32>
    tpu.vector_store %arg12[%c0_57, %c768], %158 {strides = array<i32>} : memref<8x1024xf32, #tpu.memory_space<vmem>>, vector<8x128xf32>,
    %c56 = arith.constant 56 : index
    %c0_58 = arith.constant 0 : index
    %160 = vector.load %arg9[%c56, %c0_58] : memref<64x512xf32, #tpu.memory_space<vmem>>, vector<8x512xf32>
    %c0_59 = arith.constant 0 : index
    %c0_60 = arith.constant 0 : index
    %161 = vector.load %arg4[%c0_59, %c0_60] : memref<128x512xf32, #tpu.memory_space<vmem>>, vector<128x512xf32>
    %cst_61 = arith.constant dense<0.000000e+00> : vector<8x512xf32>
    %162 = tpu.matmul %158, %161, %cst_61 {dimension_numbers = #tpu.dot_dimension_numbers<[1], [0], [0], [1], [0, 0, 1, 1], [], []>} : vector<8x128xf32>, vector<128x512xf32>, vector<8x512xf32> -> vector<8x512xf32>
    %163 = arith.addf %160, %162 : vector<8x512xf32>
    %164 = vector.extract_strided_slice %163 {offsets = [0, 0], sizes = [8, 384], strides = [1, 1]} : vector<8x512xf32> to vector<8x384xf32>
    %165 = arith.negf %164 : vector<8x384xf32>
    %166 = math.exp %165 : vector<8x384xf32>
    %cst_62 = arith.constant 1.000000e+00 : f32
    %167 = vector.broadcast %cst_62 : f32 to vector<8x384xf32>
    %168 = arith.addf %167, %166 : vector<8x384xf32>
    %169 = arith.divf %167, %168 : vector<8x384xf32>
    %170 = vector.extract_strided_slice %163 {offsets = [0, 384], sizes = [8, 128], strides = [1, 1]} : vector<8x512xf32> to vector<8x128xf32>
    %171 = math.tanh %170 : vector<8x128xf32>
    %172 = vector.extract_strided_slice %169 {offsets = [0, 0], sizes = [8, 128], strides = [1, 1]} : vector<8x384xf32> to vector<8x128xf32>
    %173 = vector.extract_strided_slice %169 {offsets = [0, 128], sizes = [8, 128], strides = [1, 1]} : vector<8x384xf32> to vector<8x128xf32>
    %174 = vector.extract_strided_slice %169 {offsets = [0, 256], sizes = [8, 128], strides = [1, 1]} : vector<8x384xf32> to vector<8x128xf32>
    %175 = arith.mulf %173, %156 : vector<8x128xf32>
    %176 = arith.mulf %172, %171 : vector<8x128xf32>
    %177 = arith.addf %175, %176 : vector<8x128xf32>
    %178 = math.tanh %177 : vector<8x128xf32>
    %179 = arith.mulf %174, %178 : vector<8x128xf32>
    %c0_63 = arith.constant 0 : index
    %c896 = arith.constant 896 : index
    %180 = vector.load %arg12[%c0_63, %c896] : memref<8x1024xf32, #tpu.memory_space<vmem>>, vector<8x128xf32>
    tpu.vector_store %arg12[%c0_63, %c896], %179 {strides = array<i32>} : memref<8x1024xf32, #tpu.memory_space<vmem>>, vector<8x128xf32>,
    %c0_64 = arith.constant 0 : index
    %c0_65 = arith.constant 0 : index
    %181 = vector.load %arg10[%c0_64, %c0_65] : memref<8x128xf32, #tpu.memory_space<vmem>>, vector<8x128xf32>
    tpu.vector_store %arg10[%c0_64, %c0_65], %179 {strides = array<i32>} : memref<8x128xf32, #tpu.memory_space<vmem>>, vector<8x128xf32>,
    %c0_66 = arith.constant 0 : index
    %c0_67 = arith.constant 0 : index
    %182 = vector.load %arg11[%c0_66, %c0_67] : memref<8x128xf32, #tpu.memory_space<vmem>>, vector<8x128xf32>
    tpu.vector_store %arg11[%c0_66, %c0_67], %177 {strides = array<i32>} : memref<8x128xf32, #tpu.memory_space<vmem>>, vector<8x128xf32>,
    %c0_68 = arith.constant 0 : index
    %c0_69 = arith.constant 0 : index
    %183 = vector.load %arg13[%c0_68, %c0_69] : memref<8x128xf32, #tpu.memory_space<vmem>>, vector<8x128xf32>
    %c0_70 = arith.constant 0 : index
    %c0_71 = arith.constant 0 : index
    %184 = vector.load %arg12[%c0_70, %c0_71] : memref<8x1024xf32, #tpu.memory_space<vmem>>, vector<8x1024xf32>
    %c0_72 = arith.constant 0 : index
    %c0_73 = arith.constant 0 : index
    %c0_74 = arith.constant 0 : index
    %185 = vector.load %arg6[%c0_72, %c0_73, %c0_74] : memref<1x1024x128xf32, #tpu.memory_space<vmem>>, vector<1x1024x128xf32>
    %186 = vector.shape_cast %185 : vector<1x1024x128xf32> to vector<1024x128xf32>
    %cst_75 = arith.constant dense<0.000000e+00> : vector<8x128xf32>
    %187 = tpu.matmul %184, %186, %cst_75 {dimension_numbers = #tpu.dot_dimension_numbers<[1], [0], [0], [1], [0, 0, 1, 1], [], []>} : vector<8x1024xf32>, vector<1024x128xf32>, vector<8x128xf32> -> vector<8x128xf32>
    %188 = arith.addf %183, %187 : vector<8x128xf32>
    %c0_76 = arith.constant 0 : index
    %c0_77 = arith.constant 0 : index
    %189 = vector.load %arg13[%c0_76, %c0_77] : memref<8x128xf32, #tpu.memory_space<vmem>>, vector<8x128xf32>
    tpu.vector_store %arg13[%c0_76, %c0_77], %188 {strides = array<i32>} : memref<8x128xf32, #tpu.memory_space<vmem>>, vector<8x128xf32>,
    %c1_i32 = arith.constant 1 : i32
    %190 = arith.cmpi eq, %arg1, %c1_i32 : i32
    %191 = arith.extui %190 : i1 to i32
    %c0_i32_78 = arith.constant 0 : i32
    %192 = arith.cmpi ne, %191, %c0_i32_78 : i32
    scf.if %192 {
      %c0_79 = arith.constant 0 : index
      %c0_80 = arith.constant 0 : index
      %193 = vector.load %arg13[%c0_79, %c0_80] : memref<8x128xf32, #tpu.memory_space<vmem>>, vector<8x128xf32>
      %c0_81 = arith.constant 0 : index
      %c0_82 = arith.constant 0 : index
      %194 = vector.load %arg7[%c0_81, %c0_82] : memref<1x128xf32, #tpu.memory_space<vmem>>, vector<1x128xf32>
      %195 = vector.broadcast %194 : vector<1x128xf32> to vector<8x128xf32>
      %196 = arith.addf %193, %195 : vector<8x128xf32>
      %c0_83 = arith.constant 0 : index
      %c0_84 = arith.constant 0 : index
      %197 = vector.load %arg8[%c0_83, %c0_84] : memref<8x128xf32, #tpu.memory_space<vmem>>, vector<8x128xf32>
      tpu.vector_store %arg8[%c0_83, %c0_84], %196 {strides = array<i32>} : memref<8x128xf32, #tpu.memory_space<vmem>>, vector<8x128xf32>,
    } else {
    }
    return
  }
  func.func @transform_0(%arg0: i32, %arg1: i32) -> (i32, i32, i32, i32) {
    %c0_i32 = arith.constant 0 : i32
    %c0_i32_0 = arith.constant 0 : i32
    %c0_i32_1 = arith.constant 0 : i32
    return %arg0, %arg1, %c0_i32, %c0_i32_0 : i32, i32, i32, i32
  }
  func.func @transform_1(%arg0: i32, %arg1: i32) -> (i32, i32) {
    %c0_i32 = arith.constant 0 : i32
    %c0_i32_0 = arith.constant 0 : i32
    %c0_i32_1 = arith.constant 0 : i32
    return %c0_i32, %c0_i32_0 : i32, i32
  }
  func.func @transform_2(%arg0: i32, %arg1: i32) -> (i32, i32) {
    %c0_i32 = arith.constant 0 : i32
    %c0_i32_0 = arith.constant 0 : i32
    %c0_i32_1 = arith.constant 0 : i32
    return %c0_i32, %c0_i32_0 : i32, i32
  }
  func.func @transform_3(%arg0: i32, %arg1: i32) -> (i32, i32) {
    %c0_i32 = arith.constant 0 : i32
    %c0_i32_0 = arith.constant 0 : i32
    %c0_i32_1 = arith.constant 0 : i32
    return %c0_i32, %c0_i32_0 : i32, i32
  }
  func.func @transform_4(%arg0: i32, %arg1: i32) -> (i32, i32, i32) {
    %c0_i32 = arith.constant 0 : i32
    %c0_i32_0 = arith.constant 0 : i32
    %c0_i32_1 = arith.constant 0 : i32
    return %arg1, %c0_i32, %c0_i32_0 : i32, i32, i32
  }
  func.func @transform_5(%arg0: i32, %arg1: i32) -> (i32, i32) {
    %c0_i32 = arith.constant 0 : i32
    %c0_i32_0 = arith.constant 0 : i32
    %c0_i32_1 = arith.constant 0 : i32
    return %c0_i32, %c0_i32_0 : i32, i32
  }
  func.func @transform_6(%arg0: i32, %arg1: i32) -> (i32, i32) {
    %c0_i32 = arith.constant 0 : i32
    %c0_i32_0 = arith.constant 0 : i32
    return %arg0, %c0_i32 : i32, i32
  }
}

</mosaic_0001>

<llo_original>
// kernel: tpu_custom_call.1
$region0: #{tpu_custom_call.1}
  #allocation0 [shape = 'u32[]', space=smem, size = 0x4, offset = 0x4, fixed_abs, tag = 'smem constant byte address 0x4 - core index']
  #allocation1 [shape = 'u32[144,128]{1,0:T(1,128)}', space=vmem, size = 0x12000, scoped, tag = 'internal scratch']
  #allocation2 [shape = 'f32[64,512]{1,0:T(8,128)}', space=vmem, size = 0x20000, scoped, tag = 'scratch operand']
  #allocation3 [shape = 'f32[8,128]{1,0:T(8,128)}', space=vmem, size = 0x1000, scoped, tag = 'scratch operand']
  #allocation4 [shape = 'f32[8,128]{1,0:T(8,128)}', space=vmem, size = 0x1000, scoped, tag = 'scratch operand']
  #allocation5 [shape = 'f32[8,1024]{1,0:T(8,128)}', space=vmem, size = 0x8000, scoped, tag = 'scratch operand']
  #allocation6 [shape = 'f32[8,128]{1,0:T(8,128)}', space=vmem, size = 0x1000, scoped, tag = 'scratch operand']
  %s0 = inlined_call_operand.hbm [shape: f32[1,2,64,128], index: 0, kind: input, shape index: {}]
  %s1 = inlined_call_operand.hbm [shape: f32[128,512], index: 1, kind: input, shape index: {}]
  %s2 = inlined_call_operand.hbm [shape: f32[128,512], index: 2, kind: input, shape index: {}]
  %s3 = inlined_call_operand.vmem [shape: f32[1,512], index: 3, kind: input, shape index: {}]
  %s4 = inlined_call_operand.hbm [shape: f32[2,1024,128], index: 4, kind: input, shape index: {}]
  %s5 = inlined_call_operand.vmem [shape: f32[1,128], index: 5, kind: input, shape index: {}]
  %s6 = inlined_call_operand.hbm [shape: f32[8,128], index: 6, kind: output, shape index: {}]
  %s7 = sld [smem:[#allocation0]]
  $region81: #{tpu_custom_call.1} parent=0
    _
  %s9 = ssub.s32 1, %s7
  %s10 = scalar_select 0, %s9, %s7
  $region1: #{tpu_custom_call.1} parent=0
    #allocation7 [shape = 'u8[65536]{0}', space=vmem, size = 0x10000, scoped, tag = 'input window, operand 0']
    #allocation8 [shape = 's32[2]{0}', space=sflag, size = 0x8, scoped, tag = 'scoped memory for tpu_custom_call.1']
    #allocation9 [shape = 's32[2]{0}', space=sflag, size = 0x8, scoped, tag = 'scoped memory for tpu_custom_call.1']
    #allocation10 [shape = 'u8[262144]{0}', space=vmem, size = 0x40000, scoped, tag = 'input window, operand 1, single buffered']
    #allocation11 [shape = 's32[1]{0}', space=sflag, size = 0x4, scoped, tag = 'scoped memory for tpu_custom_call.1']
    #allocation12 [shape = 'u8[262144]{0}', space=vmem, size = 0x40000, scoped, tag = 'input window, operand 2, single buffered']
    #allocation13 [shape = 'u8[1048576]{0}', space=vmem, size = 0x100000, scoped, tag = 'input window, operand 4']
    #allocation14 [shape = 's32[2]{0}', space=sflag, size = 0x8, scoped, tag = 'scoped memory for tpu_custom_call.1']
    #allocation15 [shape = 'u8[4096]{0}', space=vmem, size = 0x1000, scoped, tag = 'output window, operand 0, single buffered']
    %11 = vsyncpa [#allocation8], 0
    %s12 = scalar_lea.sflag [#allocation8], 1
    %13 = vsyncpa %s12, 0
    %14 = vsyncpa [#allocation11], 0
    %15 = vsyncpa [#allocation14], 0
    %s16 = scalar_lea.sflag [#allocation14], 1
    %17 = vsyncpa %s16, 0
    %18 = vsyncpa [#allocation9], 0
    loop: start=0, step=1, limit=4
    $region2: #{tpu_custom_call.1} parent=1 // loop_pre_header
      _
    $region3: #{tpu_custom_call.1} parent=1 // loop_header
      %s20 = sphi 0, %s24
      %p21 = scmp.ge.s32.totalorder %s20, 4
      %s27 = sphi 0, %s39
      %s28 = sphi 0, %s35
      %s29 = sphi 0, %s27
      %s30 = sphi 0, %s28
      %s31 = sphi 0, %s29
      %s32 = sphi 0, %s30
      %s44 = sphi 0, %s46
      %s47 = sphi 0, %s44
      %s48 = sphi 0, %s47
      %s64 = sphi 0, %s48
      %s68 = sphi 0, %s68
      %s70 = sphi 0, %s68
      %s71 = sphi 0, %s70
      %s85 = sphi 0, %s71
      %s89 = sphi 0, %s89
      %s91 = sphi 0, %s89
      %s92 = sphi 0, %s91
      %s106 = sphi 0, %s92
      %s110 = sphi 0, %s110
      %s112 = sphi 0, %s110
      %s113 = sphi 0, %s112
      %s127 = sphi 0, %s113
      %s133 = sphi 0, %s135
      %s136 = sphi 0, %s133
      %s137 = sphi 0, %s136
      %s153 = sphi 0, %s137
      %s157 = sphi 0, %s157
      %s159 = sphi 0, %s157
      %s160 = sphi 0, %s159
      %s174 = sphi 0, %s160
      %s180 = sphi 0, %s182
      %s183 = sphi 0, %s180
      %s184 = sphi 0, %s183
      %s200 = sphi 0, %s184
    $region4: #{tpu_custom_call.1} parent=1 // loop_header_branch
      %23 = sbr.rel (%p21) target = $region8
    $region5: #{tpu_custom_call.1} parent=1 // loop_body
      %s25 = ssub.s32 %s20, 1
      %s26 = ssub.s32 %s20, 2
      %s33 = sadd.s32 1, %s28
      %p34 = scmp.ge.s32.totalorder %s33, 2
      %s35 = scalar_select %p34, 0, %s33
      %s36 = sadd.s32 1, %s27
      %s37 = scalar_select %p34, %s36, %s27
      %p38 = scmp.ge.s32.totalorder %s37, 1
      %s39 = scalar_select %p38, 0, %s37
      %s40 = ssub.s32 %s27, %s39
      %s41 = ssub.s32 %s28, %s35
      %s42 = sor.u32 %s40, %s41
      %p43 = scmp.eq.s32.totalorder %s42, 0
      %s45 = sadd.s32 %s44, 1
      %s46 = scalar_select %p43, %s44, %s45
      %p49 = pneg %p43
      %p50 = scmp.eq.s32.totalorder %s20, 1
      %p51 = por %p49, %p50
      %p52 = scmp.ne.s32.totalorder %s44, %s47
      %p53 = scmp.eq.s32.totalorder %s20, 0
      %p54 = por %p52, %p53
      %p55 = scmp.ne.s32.totalorder %s44, %s47
      %p56 = scmp.eq.s32.totalorder %s25, 1
      %p57 = por %p55, %p56
      %p58 = scmp.ne.s32.totalorder %s47, %s48
      %p59 = scmp.eq.s32.totalorder %s25, 0
      %p60 = por %p58, %p59
      %p61 = scmp.ne.s32.totalorder %s47, %s48
      %p62 = scmp.eq.s32.totalorder %s26, 1
      %p63 = por %p61, %p62
      %p65 = scmp.ne.s32.totalorder %s48, %s64
      %p66 = scmp.eq.s32.totalorder %s26, 0
      %p67 = por %p65, %p66
      %s69 = sadd.s32 %s68, 1
      %p72 = scmp.eq.s32.totalorder %s20, 1
      %p73 = scmp.ne.s32.totalorder %s68, %s70
      %p74 = scmp.eq.s32.totalorder %s20, 0
      %p75 = por %p73, %p74
      %p76 = scmp.ne.s32.totalorder %s68, %s70
      %p77 = scmp.eq.s32.totalorder %s25, 1
      %p78 = por %p76, %p77
      %p79 = scmp.ne.s32.totalorder %s70, %s71
      %p80 = scmp.eq.s32.totalorder %s25, 0
      %p81 = por %p79, %p80
      %p82 = scmp.ne.s32.totalorder %s70, %s71
      %p83 = scmp.eq.s32.totalorder %s26, 1
      %p84 = por %p82, %p83
      %p86 = scmp.ne.s32.totalorder %s71, %s85
      %p87 = scmp.eq.s32.totalorder %s26, 0
      %p88 = por %p86, %p87
      %s90 = sadd.s32 %s89, 1
      %p93 = scmp.eq.s32.totalorder %s20, 1
      %p94 = scmp.ne.s32.totalorder %s89, %s91
      %p95 = scmp.eq.s32.totalorder %s20, 0
      %p96 = por %p94, %p95
      %p97 = scmp.ne.s32.totalorder %s89, %s91
      %p98 = scmp.eq.s32.totalorder %s25, 1
      %p99 = por %p97, %p98
      %p100 = scmp.ne.s32.totalorder %s91, %s92
      %p101 = scmp.eq.s32.totalorder %s25, 0
      %p102 = por %p100, %p101
      %p103 = scmp.ne.s32.totalorder %s91, %s92
      %p104 = scmp.eq.s32.totalorder %s26, 1
      %p105 = por %p103, %p104
      %p107 = scmp.ne.s32.totalorder %s92, %s106
      %p108 = scmp.eq.s32.totalorder %s26, 0
      %p109 = por %p107, %p108
      %s111 = sadd.s32 %s110, 1
      %p114 = scmp.eq.s32.totalorder %s20, 1
      %p115 = scmp.ne.s32.totalorder %s110, %s112
      %p116 = scmp.eq.s32.totalorder %s20, 0
      %p117 = por %p115, %p116
      %p118 = scmp.ne.s32.totalorder %s110, %s112
      %p119 = scmp.eq.s32.totalorder %s25, 1
      %p120 = por %p118, %p119
      %p121 = scmp.ne.s32.totalorder %s112, %s113
      %p122 = scmp.eq.s32.totalorder %s25, 0
      %p123 = por %p121, %p122
      %p124 = scmp.ne.s32.totalorder %s112, %s113
      %p125 = scmp.eq.s32.totalorder %s26, 1
      %p126 = por %p124, %p125
      %p128 = scmp.ne.s32.totalorder %s113, %s127
      %p129 = scmp.eq.s32.totalorder %s26, 0
      %p130 = por %p128, %p129
      %s131 = ssub.s32 %s28, %s35
      %p132 = scmp.eq.s32.totalorder %s131, 0
      %s134 = sadd.s32 %s133, 1
      %s135 = scalar_select %p132, %s133, %s134
      %p138 = pneg %p132
      %p139 = scmp.eq.s32.totalorder %s20, 1
      %p140 = por %p138, %p139
      %p141 = scmp.ne.s32.totalorder %s133, %s136
      %p142 = scmp.eq.s32.totalorder %s20, 0
      %p143 = por %p141, %p142
      %p144 = scmp.ne.s32.totalorder %s133, %s136
      %p145 = scmp.eq.s32.totalorder %s25, 1
      %p146 = por %p144, %p145
      %p147 = scmp.ne.s32.totalorder %s136, %s137
      %p148 = scmp.eq.s32.totalorder %s25, 0
      %p149 = por %p147, %p148
      %p150 = scmp.ne.s32.totalorder %s136, %s137
      %p151 = scmp.eq.s32.totalorder %s26, 1
      %p152 = por %p150, %p151
      %p154 = scmp.ne.s32.totalorder %s137, %s153
      %p155 = scmp.eq.s32.totalorder %s26, 0
      %p156 = por %p154, %p155
      %s158 = sadd.s32 %s157, 1
      %p161 = scmp.eq.s32.totalorder %s20, 1
      %p162 = scmp.ne.s32.totalorder %s157, %s159
      %p163 = scmp.eq.s32.totalorder %s20, 0
      %p164 = por %p162, %p163
      %p165 = scmp.ne.s32.totalorder %s157, %s159
      %p166 = scmp.eq.s32.totalorder %s25, 1
      %p167 = por %p165, %p166
      %p168 = scmp.ne.s32.totalorder %s159, %s160
      %p169 = scmp.eq.s32.totalorder %s25, 0
      %p170 = por %p168, %p169
      %p171 = scmp.ne.s32.totalorder %s159, %s160
      %p172 = scmp.eq.s32.totalorder %s26, 1
      %p173 = por %p171, %p172
      %p175 = scmp.ne.s32.totalorder %s160, %s174
      %p176 = scmp.eq.s32.totalorder %s26, 0
      %p177 = por %p175, %p176
      %s178 = ssub.s32 %s27, %s39
      %p179 = scmp.eq.s32.totalorder %s178, 0
      %s181 = sadd.s32 %s180, 1
      %s182 = scalar_select %p179, %s180, %s181
      %p185 = pneg %p179
      %p186 = scmp.eq.s32.totalorder %s20, 1
      %p187 = por %p185, %p186
      %p188 = scmp.ne.s32.totalorder %s180, %s183
      %p189 = scmp.eq.s32.totalorder %s20, 0
      %p190 = por %p188, %p189
      %p191 = scmp.ne.s32.totalorder %s180, %s183
      %p192 = scmp.eq.s32.totalorder %s25, 1
      %p193 = por %p191, %p192
      %p194 = scmp.ne.s32.totalorder %s183, %s184
      %p195 = scmp.eq.s32.totalorder %s25, 0
      %p196 = por %p194, %p195
      %p197 = scmp.ne.s32.totalorder %s183, %s184
      %p198 = scmp.eq.s32.totalorder %s26, 1
      %p199 = por %p197, %p198
      %p201 = scmp.ne.s32.totalorder %s184, %s200
      %p202 = scmp.eq.s32.totalorder %s26, 0
      %p203 = por %p201, %p202
      %p204 = scmp.le.s32.totalorder 1, %s20
      %p205 = scmp.lt.s32.totalorder %s20, 3
      %p206 = pnand %p204, %p205
      %p207 = pneg %p206
      // Predicated region
      $region9: #{tpu_custom_call.1} parent=5 // pred_check
        _
      $region10: #{tpu_custom_call.1} parent=5 // pred_check_branch
        %209 = sbr.rel (%p206) target = $region12
      $region11: #{tpu_custom_call.1} parent=5 // pred_region
        %s210 = ssub.s32 %s20, 1
        // Predicated region
        $region13: #{tpu_custom_call.1} parent=11 // pred_check
          %p211 = pneg %p81
        $region14: #{tpu_custom_call.1} parent=11 // pred_check_branch
          %213 = sbr.rel (%p211) target = $region16
        $region15: #{tpu_custom_call.1} parent=11 // pred_region
          %s215 = ssub.s32 8192, 8192
          %216 = vsyncadd [#allocation11], %s215
          %s217 = sshll.u32 [#allocation10], 4
          %s218 = int_to_ptr.vmem [resolvable:$true] %s217
          %223 = dma.hbm_to_vmem [thread:$0]  %s1, 8192, %s218, [#allocation11], 512, 512, 32
        $region16: #{tpu_custom_call.1} parent=11 // pred_fallthru
          _
        // Predicated region
        $region17: #{tpu_custom_call.1} parent=11 // pred_check
          %p224 = pneg %p102
        $region18: #{tpu_custom_call.1} parent=11 // pred_check_branch
          %226 = sbr.rel (%p224) target = $region20
        $region19: #{tpu_custom_call.1} parent=11 // pred_region
          %s228 = ssub.s32 8192, 8192
          %229 = vsyncadd [#allocation11], %s228
          %s230 = sshll.u32 [#allocation12], 4
          %s231 = int_to_ptr.vmem [resolvable:$true] %s230
          %236 = dma.hbm_to_vmem [thread:$0]  %s2, 8192, %s231, [#allocation11], 512, 512, 32
        $region20: #{tpu_custom_call.1} parent=11 // pred_fallthru
          _
        // Predicated region
        $region21: #{tpu_custom_call.1} parent=11 // pred_check
          %p237 = pneg %p123
        $region22: #{tpu_custom_call.1} parent=11 // pred_check_branch
          %239 = sbr.rel (%p237) target = $region24
        $region23: #{tpu_custom_call.1} parent=11 // pred_region
          _
        $region24: #{tpu_custom_call.1} parent=11 // pred_fallthru
          _
        // Predicated region
        $region25: #{tpu_custom_call.1} parent=11 // pred_check
          %p240 = pneg %p170
        $region26: #{tpu_custom_call.1} parent=11 // pred_check_branch
          %242 = sbr.rel (%p240) target = $region28
        $region27: #{tpu_custom_call.1} parent=11 // pred_region
          _
        $region28: #{tpu_custom_call.1} parent=11 // pred_fallthru
          _
      $region12: #{tpu_custom_call.1} parent=5 // pred_fallthru
        _
      %p243 = scmp.lt.s32.totalorder %s20, 2
      // Predicated region
      $region29: #{tpu_custom_call.1} parent=5 // pred_check
        %p244 = pneg %p243
      $region30: #{tpu_custom_call.1} parent=5 // pred_check_branch
        %246 = sbr.rel (%p244) target = $region32
      $region31: #{tpu_custom_call.1} parent=5 // pred_region
        // Predicated region
        $region33: #{tpu_custom_call.1} parent=31 // pred_check
          %p247 = pneg %p54
        $region34: #{tpu_custom_call.1} parent=31 // pred_check_branch
          %249 = sbr.rel (%p247) target = $region36
        $region35: #{tpu_custom_call.1} parent=31 // pred_region
          %s250 = sand.u32 %s44, 1
          %s251 = scalar_lea.sflag [#allocation8], %s250
          %s252 = sand.u32 %s44, 1
          %s253 = smul.addr %s252, 64
          %s254 = scalar_lea.vmem [#allocation7], %s253
          %s256 = ssub.s32 1024, 1024
          %257 = vsyncadd %s251, %s256
          %s258 = smul.addr %s28, 8
          %s259 = smul.addr %s27, 16
          %s260 = sadd.s32 %s258, %s259
          %s261 = smul.addr %s260, 128
          %s262 = scalar_lea.hbm %s0, %s261
          %s263 = sshll.u32 %s254, 4
          %s264 = int_to_ptr.vmem [resolvable:$true] %s263
          %269 = dma.hbm_to_vmem [thread:$0]  %s262, 1024, %s264, %s251, 128, 128, 8
        $region36: #{tpu_custom_call.1} parent=31 // pred_fallthru
          _
        // Predicated region
        $region37: #{tpu_custom_call.1} parent=31 // pred_check
          %p270 = pneg %p143
        $region38: #{tpu_custom_call.1} parent=31 // pred_check_branch
          %272 = sbr.rel (%p270) target = $region40
        $region39: #{tpu_custom_call.1} parent=31 // pred_region
          %s273 = sand.u32 %s133, 1
          %s274 = scalar_lea.sflag [#allocation14], %s273
          %s275 = sand.u32 %s133, 1
          %s276 = smul.addr %s275, 1024
          %s277 = scalar_lea.vmem [#allocation13], %s276
          %s279 = ssub.s32 16384, 16384
          %280 = vsyncadd %s274, %s279
          %s281 = smul.addr %s28, 128
          %s282 = smul.addr %s281, 128
          %s283 = scalar_lea.hbm %s4, %s282
          %s284 = sshll.u32 %s277, 4
          %s285 = int_to_ptr.vmem [resolvable:$true] %s284
          %290 = dma.hbm_to_vmem [thread:$0]  %s283, 16384, %s285, %s274, 128, 128, 8
        $region40: #{tpu_custom_call.1} parent=31 // pred_fallthru
          _
      $region32: #{tpu_custom_call.1} parent=5 // pred_fallthru
        _
      %p291 = scmp.le.s32.totalorder 1, %s20
      %p292 = scmp.lt.s32.totalorder %s20, 3
      %p293 = pnand %p291, %p292
      %p294 = pneg %p293
      // Predicated region
      $region41: #{tpu_custom_call.1} parent=5 // pred_check
        _
      $region42: #{tpu_custom_call.1} parent=5 // pred_check_branch
        %296 = sbr.rel (%p293) target = $region44
      $region43: #{tpu_custom_call.1} parent=5 // pred_region
        %s297 = ssub.s32 %s20, 1
        %s298 = sand.u32 %s47, 1
        %s299 = scalar_lea.sflag [#allocation8], %s298
        %s300 = sand.u32 %s47, 1
        %s301 = smul.addr %s300, 64
        %s302 = scalar_lea.vmem [#allocation7], %s301
        // Predicated region
        $region45: #{tpu_custom_call.1} parent=43 // pred_check
          %p303 = pneg %p60
        $region46: #{tpu_custom_call.1} parent=43 // pred_check_branch
          %305 = sbr.rel (%p303) target = $region48
        $region47: #{tpu_custom_call.1} parent=43 // pred_region
          %306 = dma.done %s299, 1024
        $region48: #{tpu_custom_call.1} parent=43 // pred_fallthru
          _
        // Predicated region
        $region49: #{tpu_custom_call.1} parent=43 // pred_check
          %p307 = pneg %p81
        $region50: #{tpu_custom_call.1} parent=43 // pred_check_branch
          %309 = sbr.rel (%p307) target = $region52
        $region51: #{tpu_custom_call.1} parent=43 // pred_region
          %310 = dma.done [#allocation11], 8192
        $region52: #{tpu_custom_call.1} parent=43 // pred_fallthru
          _
        // Predicated region
        $region53: #{tpu_custom_call.1} parent=43 // pred_check
          %p311 = pneg %p102
        $region54: #{tpu_custom_call.1} parent=43 // pred_check_branch
          %313 = sbr.rel (%p311) target = $region56
        $region55: #{tpu_custom_call.1} parent=43 // pred_region
          %314 = dma.done [#allocation11], 8192
        $region56: #{tpu_custom_call.1} parent=43 // pred_fallthru
          _
        %s315 = sand.u32 %s136, 1
        %s316 = scalar_lea.sflag [#allocation14], %s315
        %s317 = sand.u32 %s136, 1
        %s318 = smul.addr %s317, 1024
        %s319 = scalar_lea.vmem [#allocation13], %s318
        // Predicated region
        $region57: #{tpu_custom_call.1} parent=43 // pred_check
          %p320 = pneg %p149
        $region58: #{tpu_custom_call.1} parent=43 // pred_check_branch
          %322 = sbr.rel (%p320) target = $region60
        $region59: #{tpu_custom_call.1} parent=43 // pred_region
          %323 = dma.done %s316, 16384
        $region60: #{tpu_custom_call.1} parent=43 // pred_fallthru
          _
        %s324 = sand.u32 %s47, 1
        %s325 = scalar_lea.sflag [#allocation8], %s324
        %s326 = sand.u32 %s47, 1
        %s327 = smul.addr %s326, 64
        %s328 = scalar_lea.vmem [#allocation7], %s327
        %p329 = pneg %p60
        %p330 = pneg %p57
        %p331 = pneg %p81
        %p332 = pneg %p78
        %p333 = pneg %p102
        %p334 = pneg %p99
        %p335 = pneg %p123
        %p336 = pneg %p120
        %s337 = sand.u32 %s136, 1
        %s338 = scalar_lea.sflag [#allocation14], %s337
        %s339 = sand.u32 %s136, 1
        %s340 = smul.addr %s339, 1024
        %s341 = scalar_lea.vmem [#allocation13], %s340
        %p342 = pneg %p149
        %p343 = pneg %p146
        %p344 = pneg %p170
        %p345 = pneg %p167
        %p346 = pneg %p196
        %p347 = pneg %p193
        %p348 = scmp.eq.s32.totalorder %s30, 0
        // Predicated region
        $region61: #{tpu_custom_call.1} parent=43 // pred_check
          %p349 = pneg %p348
        $region62: #{tpu_custom_call.1} parent=43 // pred_check_branch
          %351 = sbr.rel (%p349) target = $region64
        $region63: #{tpu_custom_call.1} parent=43 // pred_region
          %352 = vst [vmem:[#allocation3] sm:$0xff] 0.0
          %353 = vst [vmem:[#allocation4] sm:$0xff] 0.0
          %354 = vst [vmem:[#allocation6] sm:$0xff] 0.0
        $region64: #{tpu_custom_call.1} parent=43 // pred_fallthru
          _
        %v355 = vld [vmem:[%s302] sm:$0xff]
        %v356 = vld [vmem:[%s302 + $0x8] sm:$0xff]
        %v357 = vld [vmem:[%s302 + $0x10] sm:$0xff]
        %v358 = vld [vmem:[%s302 + $0x18] sm:$0xff]
        %v359 = vld [vmem:[%s302 + $0x20] sm:$0xff]
        %v360 = vld [vmem:[%s302 + $0x28] sm:$0xff]
        %v361 = vld [vmem:[%s302 + $0x30] sm:$0xff]
        %v362 = vld [vmem:[%s302 + $0x38] sm:$0xff]
        %v363 = vld [vmem:[#allocation10] sm:$0xff]
        %v364 = vld [vmem:[#allocation10 + $0x8] sm:$0xff]
        %v365 = vld [vmem:[#allocation10 + $0x10] sm:$0xff]
        %v366 = vld [vmem:[#allocation10 + $0x18] sm:$0xff]
        %v367 = vld [vmem:[#allocation10 + $0x20] sm:$0xff]
        %v368 = vld [vmem:[#allocation10 + $0x28] sm:$0xff]
        %v369 = vld [vmem:[#allocation10 + $0x30] sm:$0xff]
        %v370 = vld [vmem:[#allocation10 + $0x38] sm:$0xff]
        %v371 = vld [vmem:[#allocation10 + $0x40] sm:$0xff]
        %v372 = vld [vmem:[#allocation10 + $0x48] sm:$0xff]
        %v373 = vld [vmem:[#allocation10 + $0x50] sm:$0xff]
        %v374 = vld [vmem:[#allocation10 + $0x58] sm:$0xff]
        %v375 = vld [vmem:[#allocation10 + $0x60] sm:$0xff]
        %v376 = vld [vmem:[#allocation10 + $0x68] sm:$0xff]
        %v377 = vld [vmem:[#allocation10 + $0x70] sm:$0xff]
        %v378 = vld [vmem:[#allocation10 + $0x78] sm:$0xff]
        %v379 = vld [vmem:[#allocation10 + $0x80] sm:$0xff]
        %v380 = vld [vmem:[#allocation10 + $0x88] sm:$0xff]
        %v381 = vld [vmem:[#allocation10 + $0x90] sm:$0xff]
        %v382 = vld [vmem:[#allocation10 + $0x98] sm:$0xff]
        %v383 = vld [vmem:[#allocation10 + $0xa0] sm:$0xff]
        %v384 = vld [vmem:[#allocation10 + $0xa8] sm:$0xff]
        %v385 = vld [vmem:[#allocation10 + $0xb0] sm:$0xff]
        %v386 = vld [vmem:[#allocation10 + $0xb8] sm:$0xff]
        %v387 = vld [vmem:[#allocation10 + $0xc0] sm:$0xff]
        %v388 = vld [vmem:[#allocation10 + $0xc8] sm:$0xff]
        %v389 = vld [vmem:[#allocation10 + $0xd0] sm:$0xff]
        %v390 = vld [vmem:[#allocation10 + $0xd8] sm:$0xff]
        %v391 = vld [vmem:[#allocation10 + $0xe0] sm:$0xff]
        %v392 = vld [vmem:[#allocation10 + $0xe8] sm:$0xff]
        %v393 = vld [vmem:[#allocation10 + $0xf0] sm:$0xff]
        %v394 = vld [vmem:[#allocation10 + $0xf8] sm:$0xff]
        %v395 = vld [vmem:[#allocation10 + $0x100] sm:$0xff]
        %v396 = vld [vmem:[#allocation10 + $0x108] sm:$0xff]
        %v397 = vld [vmem:[#allocation10 + $0x110] sm:$0xff]
        %v398 = vld [vmem:[#allocation10 + $0x118] sm:$0xff]
        %v399 = vld [vmem:[#allocation10 + $0x120] sm:$0xff]
        %v400 = vld [vmem:[#allocation10 + $0x128] sm:$0xff]
        %v401 = vld [vmem:[#allocation10 + $0x130] sm:$0xff]
        %v402 = vld [vmem:[#allocation10 + $0x138] sm:$0xff]
        %v403 = vld [vmem:[#allocation10 + $0x140] sm:$0xff]
        %v404 = vld [vmem:[#allocation10 + $0x148] sm:$0xff]
        %v405 = vld [vmem:[#allocation10 + $0x150] sm:$0xff]
        %v406 = vld [vmem:[#allocation10 + $0x158] sm:$0xff]
        %v407 = vld [vmem:[#allocation10 + $0x160] sm:$0xff]
        %v408 = vld [vmem:[#allocation10 + $0x168] sm:$0xff]
        %v409 = vld [vmem:[#allocation10 + $0x170] sm:$0xff]
        %v410 = vld [vmem:[#allocation10 + $0x178] sm:$0xff]
        %v411 = vld [vmem:[#allocation10 + $0x180] sm:$0xff]
        %v412 = vld [vmem:[#allocation10 + $0x188] sm:$0xff]
        %v413 = vld [vmem:[#allocation10 + $0x190] sm:$0xff]
        %v414 = vld [vmem:[#allocation10 + $0x198] sm:$0xff]
        %v415 = vld [vmem:[#allocation10 + $0x1a0] sm:$0xff]
        %v416 = vld [vmem:[#allocation10 + $0x1a8] sm:$0xff]
        %v417 = vld [vmem:[#allocation10 + $0x1b0] sm:$0xff]
        %v418 = vld [vmem:[#allocation10 + $0x1b8] sm:$0xff]
        %v419 = vld [vmem:[#allocation10 + $0x1c0] sm:$0xff]
        %v420 = vld [vmem:[#allocation10 + $0x1c8] sm:$0xff]
        %v421 = vld [vmem:[#allocation10 + $0x1d0] sm:$0xff]
        %v422 = vld [vmem:[#allocation10 + $0x1d8] sm:$0xff]
        %v423 = vld [vmem:[#allocation10 + $0x1e0] sm:$0xff]
        %v424 = vld [vmem:[#allocation10 + $0x1e8] sm:$0xff]
        %v425 = vld [vmem:[#allocation10 + $0x1f0] sm:$0xff]
        %v426 = vld [vmem:[#allocation10 + $0x1f8] sm:$0xff]
        %v427 = vld [vmem:[%s3] sm:$0xf]
        %v429 = vlaneseq
        %v430 = vshrl.u32 %v429, 7
        %v431 = vsub.s32 0, %v430
        %v432 = vrot.slane %v427, %v431
        %v433 = vlaneseq
        %v434 = vshrl.u32 %v433, 7
        %v435 = vsub.s32 1, %v434
        %v436 = vrot.slane %v427, %v435
        %v437 = vlaneseq
        %v438 = vshrl.u32 %v437, 7
        %v439 = vsub.s32 2, %v438
        %v440 = vrot.slane %v427, %v439
        %v441 = vlaneseq
        %v442 = vshrl.u32 %v441, 7
        %v443 = vsub.s32 3, %v442
        %v444 = vrot.slane %v427, %v443
        %449 = vmatprep.subr.mxu0 %v364
        %450 = vmatpush1.msra.mxu0 %v363
        %451 = vmatprep.subr.mxu0 %v368
        %452 = vmatpush1.msra.mxu0 %v367
        %453 = vmatprep.subr.mxu0 %v372
        %454 = vmatpush1.msra.mxu0 %v371
        %455 = vmatprep.subr.mxu0 %v376
        %456 = vmatpush1.msra.mxu0 %v375
        %457 = vmatprep.subr.mxu0 %v380
        %458 = vmatpush1.msra.mxu0 %v379
        %459 = vmatprep.subr.mxu0 %v384
        %460 = vmatpush1.msra.mxu0 %v383
        %461 = vmatprep.subr.mxu0 %v388
        %462 = vmatpush1.msra.mxu0 %v387
        %463 = vmatprep.subr.mxu0 %v392
        %464 = vmatpush1.msra.mxu0 %v391
        %465 = vmatprep.subr.mxu0 %v396
        %466 = vmatpush1.msra.mxu0 %v395
        %467 = vmatprep.subr.mxu0 %v400
        %468 = vmatpush1.msra.mxu0 %v399
        %469 = vmatprep.subr.mxu0 %v404
        %470 = vmatpush1.msra.mxu0 %v403
        %471 = vmatprep.subr.mxu0 %v408
        %472 = vmatpush1.msra.mxu0 %v407
        %473 = vmatprep.subr.mxu0 %v412
        %474 = vmatpush1.msra.mxu0 %v411
        %475 = vmatprep.subr.mxu0 %v416
        %476 = vmatpush1.msra.mxu0 %v415
        %477 = vmatprep.subr.mxu0 %v420
        %478 = vmatpush1.msra.mxu0 %v419
        %479 = vmatprep.subr.mxu0 %v424
        %480 = vmatpush1.msra.mxu0 %v423
        %481 = vmatprep.subr.mxu0 0.0
        %482 = vmatpush1.msra.mxu0 0.0
        %483 = vmatprep.subr.mxu0 0.0
        %484 = vmatpush1.msra.mxu0 0.0
        %485 = vmatprep.subr.mxu0 0.0
        %486 = vmatpush1.msra.mxu0 0.0
        %487 = vmatprep.subr.mxu0 0.0
        %488 = vmatpush1.msra.mxu0 0.0
        %489 = vmatprep.subr.mxu0 0.0
        %490 = vmatpush1.msra.mxu0 0.0
        %491 = vmatprep.subr.mxu0 0.0
        %492 = vmatpush1.msra.mxu0 0.0
        %493 = vmatprep.subr.mxu0 0.0
        %494 = vmatpush1.msra.mxu0 0.0
        %495 = vmatprep.subr.mxu0 0.0
        %496 = vmatpush1.msra.mxu0 0.0
        %497 = vmatprep.subr.mxu0 0.0
        %498 = vmatpush1.msra.mxu0 0.0
        %499 = vmatprep.subr.mxu0 0.0
        %500 = vmatpush1.msra.mxu0 0.0
        %501 = vmatprep.subr.mxu0 0.0
        %502 = vmatpush1.msra.mxu0 0.0
        %503 = vmatprep.subr.mxu0 0.0
        %504 = vmatpush1.msra.mxu0 0.0
        %505 = vmatprep.subr.mxu0 0.0
        %506 = vmatpush1.msra.mxu0 0.0
        %507 = vmatprep.subr.mxu0 0.0
        %508 = vmatpush1.msra.mxu0 0.0
        %509 = vmatprep.subr.mxu0 0.0
        %510 = vmatpush1.msra.mxu0 0.0
        %511 = vmatprep.subr.mxu0 0.0
        %512 = vmatpush1.msra.mxu0 0.0
        %513 = vmatprep.mubr.f32.mxu0 0.0
        %514 = vmatmul.mubr.f32.gmra.mrb[0].mxu0 %v355
        %v515 = vpop.f32.mrb[0].mxu0
        %v516 = vadd.f32 %v432, %v515
        %v517 = vpop.f32.mrb[0].mxu0
        %v518 = vadd.f32 %v436, %v517
        %519 = vmatprep.mubr.f32.mxu0 0.0
        %520 = vmatmul.mubr.f32.gmra.mrb[0].mxu0 %v356
        %v521 = vpop.f32.mrb[0].mxu0
        %v522 = vadd.f32 %v432, %v521
        %v523 = vpop.f32.mrb[0].mxu0
        %v524 = vadd.f32 %v436, %v523
        %525 = vmatprep.mubr.f32.mxu0 0.0
        %526 = vmatmul.mubr.f32.gmra.mrb[0].mxu0 %v357
        %v527 = vpop.f32.mrb[0].mxu0
        %v528 = vadd.f32 %v432, %v527
        %v529 = vpop.f32.mrb[0].mxu0
        %v530 = vadd.f32 %v436, %v529
        %531 = vmatprep.mubr.f32.mxu0 0.0
        %532 = vmatmul.mubr.f32.gmra.mrb[0].mxu0 %v358
        %v533 = vpop.f32.mrb[0].mxu0
        %v534 = vadd.f32 %v432, %v533
        %v535 = vpop.f32.mrb[0].mxu0
        %v536 = vadd.f32 %v436, %v535
        %537 = vmatprep.mubr.f32.mxu0 0.0
        %538 = vmatmul.mubr.f32.gmra.mrb[0].mxu0 %v359
        %v539 = vpop.f32.mrb[0].mxu0
        %v540 = vadd.f32 %v432, %v539
        %v541 = vpop.f32.mrb[0].mxu0
        %v542 = vadd.f32 %v436, %v541
        %543 = vmatprep.mubr.f32.mxu0 0.0
        %544 = vmatmul.mubr.f32.gmra.mrb[0].mxu0 %v360
        %v545 = vpop.f32.mrb[0].mxu0
        %v546 = vadd.f32 %v432, %v545
        %v547 = vpop.f32.mrb[0].mxu0
        %v548 = vadd.f32 %v436, %v547
        %549 = vmatprep.mubr.f32.mxu0 0.0
        %550 = vmatmul.mubr.f32.gmra.mrb[0].mxu0 %v361
        %v551 = vpop.f32.mrb[0].mxu0
        %v552 = vadd.f32 %v432, %v551
        %v553 = vpop.f32.mrb[0].mxu0
        %v554 = vadd.f32 %v436, %v553
        %555 = vmatprep.mubr.f32.mxu0 0.0
        %556 = vmatmul.mubr.f32.gmra.mrb[0].mxu0 %v362
        %v557 = vpop.f32.mrb[0].mxu0
        %v558 = vadd.f32 %v432, %v557
        %v559 = vpop.f32.mrb[0].mxu0
        %v560 = vadd.f32 %v436, %v559
        %561 = vdwg.mxu0
        %562 = vmatprep.subr.mxu0 %v366
        %563 = vmatpush1.msra.mxu0 %v365
        %564 = vmatprep.subr.mxu0 %v370
        %565 = vmatpush1.msra.mxu0 %v369
        %566 = vmatprep.subr.mxu0 %v374
        %567 = vmatpush1.msra.mxu0 %v373
        %568 = vmatprep.subr.mxu0 %v378
        %569 = vmatpush1.msra.mxu0 %v377
        %570 = vmatprep.subr.mxu0 %v382
        %571 = vmatpush1.msra.mxu0 %v381
        %572 = vmatprep.subr.mxu0 %v386
        %573 = vmatpush1.msra.mxu0 %v385
        %574 = vmatprep.subr.mxu0 %v390
        %575 = vmatpush1.msra.mxu0 %v389
        %576 = vmatprep.subr.mxu0 %v394
        %577 = vmatpush1.msra.mxu0 %v393
        %578 = vmatprep.subr.mxu0 %v398
        %579 = vmatpush1.msra.mxu0 %v397
        %580 = vmatprep.subr.mxu0 %v402
        %581 = vmatpush1.msra.mxu0 %v401
        %582 = vmatprep.subr.mxu0 %v406
        %583 = vmatpush1.msra.mxu0 %v405
        %584 = vmatprep.subr.mxu0 %v410
        %585 = vmatpush1.msra.mxu0 %v409
        %586 = vmatprep.subr.mxu0 %v414
        %587 = vmatpush1.msra.mxu0 %v413
        %588 = vmatprep.subr.mxu0 %v418
        %589 = vmatpush1.msra.mxu0 %v417
        %590 = vmatprep.subr.mxu0 %v422
        %591 = vmatpush1.msra.mxu0 %v421
        %592 = vmatprep.subr.mxu0 %v426
        %593 = vmatpush1.msra.mxu0 %v425
        %594 = vmatprep.subr.mxu0 0.0
        %595 = vmatpush1.msra.mxu0 0.0
        %596 = vmatprep.subr.mxu0 0.0
        %597 = vmatpush1.msra.mxu0 0.0
        %598 = vmatprep.subr.mxu0 0.0
        %599 = vmatpush1.msra.mxu0 0.0
        %600 = vmatprep.subr.mxu0 0.0
        %601 = vmatpush1.msra.mxu0 0.0
        %602 = vmatprep.subr.mxu0 0.0
        %603 = vmatpush1.msra.mxu0 0.0
        %604 = vmatprep.subr.mxu0 0.0
        %605 = vmatpush1.msra.mxu0 0.0
        %606 = vmatprep.subr.mxu0 0.0
        %607 = vmatpush1.msra.mxu0 0.0
        %608 = vmatprep.subr.mxu0 0.0
        %609 = vmatpush1.msra.mxu0 0.0
        %610 = vmatprep.subr.mxu0 0.0
        %611 = vmatpush1.msra.mxu0 0.0
        %612 = vmatprep.subr.mxu0 0.0
        %613 = vmatpush1.msra.mxu0 0.0
        %614 = vmatprep.subr.mxu0 0.0
        %615 = vmatpush1.msra.mxu0 0.0
        %616 = vmatprep.subr.mxu0 0.0
        %617 = vmatpush1.msra.mxu0 0.0
        %618 = vmatprep.subr.mxu0 0.0
        %619 = vmatpush1.msra.mxu0 0.0
        %620 = vmatprep.subr.mxu0 0.0
        %621 = vmatpush1.msra.mxu0 0.0
        %622 = vmatprep.subr.mxu0 0.0
        %623 = vmatpush1.msra.mxu0 0.0
        %624 = vmatprep.subr.mxu0 0.0
        %625 = vmatpush1.msra.mxu0 0.0
        %626 = vmatprep.mubr.f32.mxu0 0.0
        %627 = vmatmul.mubr.f32.gmra.mrb[0].mxu0 %v355
        %v628 = vpop.f32.mrb[0].mxu0
        %v629 = vadd.f32 %v440, %v628
        %v630 = vpop.f32.mrb[0].mxu0
        %v631 = vadd.f32 %v444, %v630
        %632 = vmatprep.mubr.f32.mxu0 0.0
        %633 = vmatmul.mubr.f32.gmra.mrb[0].mxu0 %v356
        %v634 = vpop.f32.mrb[0].mxu0
        %v635 = vadd.f32 %v440, %v634
        %v636 = vpop.f32.mrb[0].mxu0
        %v637 = vadd.f32 %v444, %v636
        %638 = vmatprep.mubr.f32.mxu0 0.0
        %639 = vmatmul.mubr.f32.gmra.mrb[0].mxu0 %v357
        %v640 = vpop.f32.mrb[0].mxu0
        %v641 = vadd.f32 %v440, %v640
        %v642 = vpop.f32.mrb[0].mxu0
        %v643 = vadd.f32 %v444, %v642
        %644 = vmatprep.mubr.f32.mxu0 0.0
        %645 = vmatmul.mubr.f32.gmra.mrb[0].mxu0 %v358
        %v646 = vpop.f32.mrb[0].mxu0
        %v647 = vadd.f32 %v440, %v646
        %v648 = vpop.f32.mrb[0].mxu0
        %v649 = vadd.f32 %v444, %v648
        %650 = vmatprep.mubr.f32.mxu0 0.0
        %651 = vmatmul.mubr.f32.gmra.mrb[0].mxu0 %v359
        %v652 = vpop.f32.mrb[0].mxu0
        %v653 = vadd.f32 %v440, %v652
        %v654 = vpop.f32.mrb[0].mxu0
        %v655 = vadd.f32 %v444, %v654
        %656 = vmatprep.mubr.f32.mxu0 0.0
        %657 = vmatmul.mubr.f32.gmra.mrb[0].mxu0 %v360
        %v658 = vpop.f32.mrb[0].mxu0
        %v659 = vadd.f32 %v440, %v658
        %v660 = vpop.f32.mrb[0].mxu0
        %v661 = vadd.f32 %v444, %v660
        %662 = vmatprep.mubr.f32.mxu0 0.0
        %663 = vmatmul.mubr.f32.gmra.mrb[0].mxu0 %v361
        %v664 = vpop.f32.mrb[0].mxu0
        %v665 = vadd.f32 %v440, %v664
        %v666 = vpop.f32.mrb[0].mxu0
        %v667 = vadd.f32 %v444, %v666
        %668 = vmatprep.mubr.f32.mxu0 0.0
        %669 = vmatmul.mubr.f32.gmra.mrb[0].mxu0 %v362
        %v670 = vpop.f32.mrb[0].mxu0
        %v671 = vadd.f32 %v440, %v670
        %v672 = vpop.f32.mrb[0].mxu0
        %v673 = vadd.f32 %v444, %v672
        %674 = vdwg.mxu0
        %675 = vst [vmem:[#allocation2] sm:$0xff] %v516
        %676 = vst [vmem:[#allocation2 + $0x8] sm:$0xff] %v518
        %677 = vst [vmem:[#allocation2 + $0x10] sm:$0xff] %v629
        %678 = vst [vmem:[#allocation2 + $0x18] sm:$0xff] %v631
        %679 = vst [vmem:[#allocation2 + $0x20] sm:$0xff] %v522
        %680 = vst [vmem:[#allocation2 + $0x28] sm:$0xff] %v524
        %681 = vst [vmem:[#allocation2 + $0x30] sm:$0xff] %v635
        %682 = vst [vmem:[#allocation2 + $0x38] sm:$0xff] %v637
        %683 = vst [vmem:[#allocation2 + $0x40] sm:$0xff] %v528
        %684 = vst [vmem:[#allocation2 + $0x48] sm:$0xff] %v530
        %685 = vst [vmem:[#allocation2 + $0x50] sm:$0xff] %v641
        %686 = vst [vmem:[#allocation2 + $0x58] sm:$0xff] %v643
        %687 = vst [vmem:[#allocation2 + $0x60] sm:$0xff] %v534
        %688 = vst [vmem:[#allocation2 + $0x68] sm:$0xff] %v536
        %689 = vst [vmem:[#allocation2 + $0x70] sm:$0xff] %v647
        %690 = vst [vmem:[#allocation2 + $0x78] sm:$0xff] %v649
        %691 = vst [vmem:[#allocation2 + $0x80] sm:$0xff] %v540
        %692 = vst [vmem:[#allocation2 + $0x88] sm:$0xff] %v542
        %693 = vst [vmem:[#allocation2 + $0x90] sm:$0xff] %v653
        %694 = vst [vmem:[#allocation2 + $0x98] sm:$0xff] %v655
        %695 = vst [vmem:[#allocation2 + $0xa0] sm:$0xff] %v546
        %696 = vst [vmem:[#allocation2 + $0xa8] sm:$0xff] %v548
        %697 = vst [vmem:[#allocation2 + $0xb0] sm:$0xff] %v659
        %698 = vst [vmem:[#allocation2 + $0xb8] sm:$0xff] %v661
        %699 = vst [vmem:[#allocation2 + $0xc0] sm:$0xff] %v552
        %700 = vst [vmem:[#allocation2 + $0xc8] sm:$0xff] %v554
        %701 = vst [vmem:[#allocation2 + $0xd0] sm:$0xff] %v665
        %702 = vst [vmem:[#allocation2 + $0xd8] sm:$0xff] %v667
        %703 = vst [vmem:[#allocation2 + $0xe0] sm:$0xff] %v558
        %704 = vst [vmem:[#allocation2 + $0xe8] sm:$0xff] %v560
        %705 = vst [vmem:[#allocation2 + $0xf0] sm:$0xff] %v671
        %706 = vst [vmem:[#allocation2 + $0xf8] sm:$0xff] %v673
        %v707 = vld [vmem:[#allocation3] sm:$0xff]
        %v708 = vld [vmem:[#allocation4] sm:$0xff]
        %v709 = vld [vmem:[#allocation2] sm:$0xff]
        %v710 = vld [vmem:[#allocation2 + $0x8] sm:$0xff]
        %v711 = vld [vmem:[#allocation2 + $0x10] sm:$0xff]
        %v712 = vld [vmem:[#allocation2 + $0x18] sm:$0xff]
        %v713 = vld [vmem:[#allocation12] sm:$0xff]
        %v714 = vld [vmem:[#allocation12 + $0x8] sm:$0xff]
        %v715 = vld [vmem:[#allocation12 + $0x10] sm:$0xff]
        %v716 = vld [vmem:[#allocation12 + $0x18] sm:$0xff]
        %v717 = vld [vmem:[#allocation12 + $0x20] sm:$0xff]
        %v718 = vld [vmem:[#allocation12 + $0x28] sm:$0xff]
        %v719 = vld [vmem:[#allocation12 + $0x30] sm:$0xff]
        %v720 = vld [vmem:[#allocation12 + $0x38] sm:$0xff]
        %v721 = vld [vmem:[#allocation12 + $0x40] sm:$0xff]
        %v722 = vld [vmem:[#allocation12 + $0x48] sm:$0xff]
        %v723 = vld [vmem:[#allocation12 + $0x50] sm:$0xff]
        %v724 = vld [vmem:[#allocation12 + $0x58] sm:$0xff]
        %v725 = vld [vmem:[#allocation12 + $0x60] sm:$0xff]
        %v726 = vld [vmem:[#allocation12 + $0x68] sm:$0xff]
        %v727 = vld [vmem:[#allocation12 + $0x70] sm:$0xff]
        %v728 = vld [vmem:[#allocation12 + $0x78] sm:$0xff]
        %v729 = vld [vmem:[#allocation12 + $0x80] sm:$0xff]
        %v730 = vld [vmem:[#allocation12 + $0x88] sm:$0xff]
        %v731 = vld [vmem:[#allocation12 + $0x90] sm:$0xff]
        %v732 = vld [vmem:[#allocation12 + $0x98] sm:$0xff]
        %v733 = vld [vmem:[#allocation12 + $0xa0] sm:$0xff]
        %v734 = vld [vmem:[#allocation12 + $0xa8] sm:$0xff]
        %v735 = vld [vmem:[#allocation12 + $0xb0] sm:$0xff]
        %v736 = vld [vmem:[#allocation12 + $0xb8] sm:$0xff]
        %v737 = vld [vmem:[#allocation12 + $0xc0] sm:$0xff]
        %v738 = vld [vmem:[#allocation12 + $0xc8] sm:$0xff]
        %v739 = vld [vmem:[#allocation12 + $0xd0] sm:$0xff]
        %v740 = vld [vmem:[#allocation12 + $0xd8] sm:$0xff]
        %v741 = vld [vmem:[#allocation12 + $0xe0] sm:$0xff]
        %v742 = vld [vmem:[#allocation12 + $0xe8] sm:$0xff]
        %v743 = vld [vmem:[#allocation12 + $0xf0] sm:$0xff]
        %v744 = vld [vmem:[#allocation12 + $0xf8] sm:$0xff]
        %v745 = vld [vmem:[#allocation12 + $0x100] sm:$0xff]
        %v746 = vld [vmem:[#allocation12 + $0x108] sm:$0xff]
        %v747 = vld [vmem:[#allocation12 + $0x110] sm:$0xff]
        %v748 = vld [vmem:[#allocation12 + $0x118] sm:$0xff]
        %v749 = vld [vmem:[#allocation12 + $0x120] sm:$0xff]
        %v750 = vld [vmem:[#allocation12 + $0x128] sm:$0xff]
        %v751 = vld [vmem:[#allocation12 + $0x130] sm:$0xff]
        %v752 = vld [vmem:[#allocation12 + $0x138] sm:$0xff]
        %v753 = vld [vmem:[#allocation12 + $0x140] sm:$0xff]
        %v754 = vld [vmem:[#allocation12 + $0x148] sm:$0xff]
        %v755 = vld [vmem:[#allocation12 + $0x150] sm:$0xff]
        %v756 = vld [vmem:[#allocation12 + $0x158] sm:$0xff]
        %v757 = vld [vmem:[#allocation12 + $0x160] sm:$0xff]
        %v758 = vld [vmem:[#allocation12 + $0x168] sm:$0xff]
        %v759 = vld [vmem:[#allocation12 + $0x170] sm:$0xff]
        %v760 = vld [vmem:[#allocation12 + $0x178] sm:$0xff]
        %v761 = vld [vmem:[#allocation12 + $0x180] sm:$0xff]
        %v762 = vld [vmem:[#allocation12 + $0x188] sm:$0xff]
        %v763 = vld [vmem:[#allocation12 + $0x190] sm:$0xff]
        %v764 = vld [vmem:[#allocation12 + $0x198] sm:$0xff]
        %v765 = vld [vmem:[#allocation12 + $0x1a0] sm:$0xff]
        %v766 = vld [vmem:[#allocation12 + $0x1a8] sm:$0xff]
        %v767 = vld [vmem:[#allocation12 + $0x1b0] sm:$0xff]
        %v768 = vld [vmem:[#allocation12 + $0x1b8] sm:$0xff]
        %v769 = vld [vmem:[#allocation12 + $0x1c0] sm:$0xff]
        %v770 = vld [vmem:[#allocation12 + $0x1c8] sm:$0xff]
        %v771 = vld [vmem:[#allocation12 + $0x1d0] sm:$0xff]
        %v772 = vld [vmem:[#allocation12 + $0x1d8] sm:$0xff]
        %v773 = vld [vmem:[#allocation12 + $0x1e0] sm:$0xff]
        %v774 = vld [vmem:[#allocation12 + $0x1e8] sm:$0xff]
        %v775 = vld [vmem:[#allocation12 + $0x1f0] sm:$0xff]
        %v776 = vld [vmem:[#allocation12 + $0x1f8] sm:$0xff]
        %777 = vmatprep.subr.mxu0 %v714
        %778 = vmatpush1.msra.mxu0 %v713
        %779 = vmatprep.subr.mxu0 %v718
        %780 = vmatpush1.msra.mxu0 %v717
        %781 = vmatprep.subr.mxu0 %v722
        %782 = vmatpush1.msra.mxu0 %v721
        %783 = vmatprep.subr.mxu0 %v726
        %784 = vmatpush1.msra.mxu0 %v725
        %785 = vmatprep.subr.mxu0 %v730
        %786 = vmatpush1.msra.mxu0 %v729
        %787 = vmatprep.subr.mxu0 %v734
        %788 = vmatpush1.msra.mxu0 %v733
        %789 = vmatprep.subr.mxu0 %v738
        %790 = vmatpush1.msra.mxu0 %v737
        %791 = vmatprep.subr.mxu0 %v742
        %792 = vmatpush1.msra.mxu0 %v741
        %793 = vmatprep.subr.mxu0 %v746
        %794 = vmatpush1.msra.mxu0 %v745
        %795 = vmatprep.subr.mxu0 %v750
        %796 = vmatpush1.msra.mxu0 %v749
        %797 = vmatprep.subr.mxu0 %v754
        %798 = vmatpush1.msra.mxu0 %v753
        %799 = vmatprep.subr.mxu0 %v758
        %800 = vmatpush1.msra.mxu0 %v757
        %801 = vmatprep.subr.mxu0 %v762
        %802 = vmatpush1.msra.mxu0 %v761
        %803 = vmatprep.subr.mxu0 %v766
        %804 = vmatpush1.msra.mxu0 %v765
        %805 = vmatprep.subr.mxu0 %v770
        %806 = vmatpush1.msra.mxu0 %v769
        %807 = vmatprep.subr.mxu0 %v774
        %808 = vmatpush1.msra.mxu0 %v773
        %809 = vmatprep.subr.mxu0 0.0
        %810 = vmatpush1.msra.mxu0 0.0
        %811 = vmatprep.subr.mxu0 0.0
        %812 = vmatpush1.msra.mxu0 0.0
        %813 = vmatprep.subr.mxu0 0.0
        %814 = vmatpush1.msra.mxu0 0.0
        %815 = vmatprep.subr.mxu0 0.0
        %816 = vmatpush1.msra.mxu0 0.0
        %817 = vmatprep.subr.mxu0 0.0
        %818 = vmatpush1.msra.mxu0 0.0
        %819 = vmatprep.subr.mxu0 0.0
        %820 = vmatpush1.msra.mxu0 0.0
        %821 = vmatprep.subr.mxu0 0.0
        %822 = vmatpush1.msra.mxu0 0.0
        %823 = vmatprep.subr.mxu0 0.0
        %824 = vmatpush1.msra.mxu0 0.0
        %825 = vmatprep.subr.mxu0 0.0
        %826 = vmatpush1.msra.mxu0 0.0
        %827 = vmatprep.subr.mxu0 0.0
        %828 = vmatpush1.msra.mxu0 0.0
        %829 = vmatprep.subr.mxu0 0.0
        %830 = vmatpush1.msra.mxu0 0.0
        %831 = vmatprep.subr.mxu0 0.0
        %832 = vmatpush1.msra.mxu0 0.0
        %833 = vmatprep.subr.mxu0 0.0
        %834 = vmatpush1.msra.mxu0 0.0
        %835 = vmatprep.subr.mxu0 0.0
        %836 = vmatpush1.msra.mxu0 0.0
        %837 = vmatprep.subr.mxu0 0.0
        %838 = vmatpush1.msra.mxu0 0.0
        %839 = vmatprep.subr.mxu0 0.0
        %840 = vmatpush1.msra.mxu0 0.0
        %841 = vmatprep.mubr.f32.mxu0 0.0
        %842 = vmatmul.mubr.f32.gmra.mrb[0].mxu0 %v707
        %v843 = vpop.f32.mrb[0].mxu0
        %v844 = vadd.f32 0.0, %v843
        %v845 = vpop.f32.mrb[0].mxu0
        %v846 = vadd.f32 0.0, %v845
        %847 = vdwg.mxu0
        %848 = vmatprep.subr.mxu0 %v716
        %849 = vmatpush1.msra.mxu0 %v715
        %850 = vmatprep.subr.mxu0 %v720
        %851 = vmatpush1.msra.mxu0 %v719
        %852 = vmatprep.subr.mxu0 %v724
        %853 = vmatpush1.msra.mxu0 %v723
        %854 = vmatprep.subr.mxu0 %v728
        %855 = vmatpush1.msra.mxu0 %v727
        %856 = vmatprep.subr.mxu0 %v732
        %857 = vmatpush1.msra.mxu0 %v731
        %858 = vmatprep.subr.mxu0 %v736
        %859 = vmatpush1.msra.mxu0 %v735
        %860 = vmatprep.subr.mxu0 %v740
        %861 = vmatpush1.msra.mxu0 %v739
        %862 = vmatprep.subr.mxu0 %v744
        %863 = vmatpush1.msra.mxu0 %v743
        %864 = vmatprep.subr.mxu0 %v748
        %865 = vmatpush1.msra.mxu0 %v747
        %866 = vmatprep.subr.mxu0 %v752
        %867 = vmatpush1.msra.mxu0 %v751
        %868 = vmatprep.subr.mxu0 %v756
        %869 = vmatpush1.msra.mxu0 %v755
        %870 = vmatprep.subr.mxu0 %v760
        %871 = vmatpush1.msra.mxu0 %v759
        %872 = vmatprep.subr.mxu0 %v764
        %873 = vmatpush1.msra.mxu0 %v763
        %874 = vmatprep.subr.mxu0 %v768
        %875 = vmatpush1.msra.mxu0 %v767
        %876 = vmatprep.subr.mxu0 %v772
        %877 = vmatpush1.msra.mxu0 %v771
        %878 = vmatprep.subr.mxu0 %v776
        %879 = vmatpush1.msra.mxu0 %v775
        %880 = vmatprep.subr.mxu0 0.0
        %881 = vmatpush1.msra.mxu0 0.0
        %882 = vmatprep.subr.mxu0 0.0
        %883 = vmatpush1.msra.mxu0 0.0
        %884 = vmatprep.subr.mxu0 0.0
        %885 = vmatpush1.msra.mxu0 0.0
        %886 = vmatprep.subr.mxu0 0.0
        %887 = vmatpush1.msra.mxu0 0.0
        %888 = vmatprep.subr.mxu0 0.0
        %889 = vmatpush1.msra.mxu0 0.0
        %890 = vmatprep.subr.mxu0 0.0
        %891 = vmatpush1.msra.mxu0 0.0
        %892 = vmatprep.subr.mxu0 0.0
        %893 = vmatpush1.msra.mxu0 0.0
        %894 = vmatprep.subr.mxu0 0.0
        %895 = vmatpush1.msra.mxu0 0.0
        %896 = vmatprep.subr.mxu0 0.0
        %897 = vmatpush1.msra.mxu0 0.0
        %898 = vmatprep.subr.mxu0 0.0
        %899 = vmatpush1.msra.mxu0 0.0
        %900 = vmatprep.subr.mxu0 0.0
        %901 = vmatpush1.msra.mxu0 0.0
        %902 = vmatprep.subr.mxu0 0.0
        %903 = vmatpush1.msra.mxu0 0.0
        %904 = vmatprep.subr.mxu0 0.0
        %905 = vmatpush1.msra.mxu0 0.0
        %906 = vmatprep.subr.mxu0 0.0
        %907 = vmatpush1.msra.mxu0 0.0
        %908 = vmatprep.subr.mxu0 0.0
        %909 = vmatpush1.msra.mxu0 0.0
        %910 = vmatprep.subr.mxu0 0.0
        %911 = vmatpush1.msra.mxu0 0.0
        %912 = vmatprep.mubr.f32.mxu0 0.0
        %913 = vmatmul.mubr.f32.gmra.mrb[0].mxu0 %v707
        %v914 = vpop.f32.mrb[0].mxu0
        %v915 = vadd.f32 0.0, %v914
        %v916 = vpop.f32.mrb[0].mxu0
        %v917 = vadd.f32 0.0, %v916
        %918 = vdwg.mxu0
        %v919 = vadd.f32 %v709, %v844
        %v920 = vadd.f32 %v710, %v846
        %v921 = vadd.f32 %v711, %v915
        %v922 = vadd.f32 %v712, %v917
        %v923 = vxor.u32 %v919, 2147483648
        %v924 = vxor.u32 %v920, 2147483648
        %v925 = vxor.u32 %v921, 2147483648
        %v926 = vmul.f32 %v923, 1.442695
        %v927 = vpow.pop %v926
        %v928 = vmul.f32 %v924, 1.442695
        %v929 = vpow.pop %v928
        %v930 = vmul.f32 %v925, 1.442695
        %v931 = vpow.pop %v930
        %v932 = vadd.f32 %v927, 1.0
        %v933 = vadd.f32 %v929, 1.0
        %v934 = vadd.f32 %v931, 1.0
        %v935 = vrcp.pop %v932
        %v936 = vmul.f32 1.0, %v935
        %v937 = vrcp.pop %v933
        %v938 = vmul.f32 1.0, %v937
        %v939 = vrcp.pop %v934
        %v940 = vmul.f32 1.0, %v939
        %v941 = vtanh.pop %v922
        %v942 = vmul.f32 %v938, %v708
        %v943 = vmul.f32 %v936, %v941
        %v944 = vadd.f32 %v942, %v943
        %v945 = vtanh.pop %v944
        %v946 = vmul.f32 %v940, %v945
        %947 = vst [vmem:[#allocation5] sm:$0xff] %v946
        %v948 = vld [vmem:[#allocation2 + $0x20] sm:$0xff]
        %v949 = vld [vmem:[#allocation2 + $0x28] sm:$0xff]
        %v950 = vld [vmem:[#allocation2 + $0x30] sm:$0xff]
        %v951 = vld [vmem:[#allocation2 + $0x38] sm:$0xff]
        %v952 = vld [vmem:[#allocation12] sm:$0xff]
        %v953 = vld [vmem:[#allocation12 + $0x8] sm:$0xff]
        %v954 = vld [vmem:[#allocation12 + $0x10] sm:$0xff]
        %v955 = vld [vmem:[#allocation12 + $0x18] sm:$0xff]
        %v956 = vld [vmem:[#allocation12 + $0x20] sm:$0xff]
        %v957 = vld [vmem:[#allocation12 + $0x28] sm:$0xff]
        %v958 = vld [vmem:[#allocation12 + $0x30] sm:$0xff]
        %v959 = vld [vmem:[#allocation12 + $0x38] sm:$0xff]
        %v960 = vld [vmem:[#allocation12 + $0x40] sm:$0xff]
        %v961 = vld [vmem:[#allocation12 + $0x48] sm:$0xff]
        %v962 = vld [vmem:[#allocation12 + $0x50] sm:$0xff]
        %v963 = vld [vmem:[#allocation12 + $0x58] sm:$0xff]
        %v964 = vld [vmem:[#allocation12 + $0x60] sm:$0xff]
        %v965 = vld [vmem:[#allocation12 + $0x68] sm:$0xff]
        %v966 = vld [vmem:[#allocation12 + $0x70] sm:$0xff]
        %v967 = vld [vmem:[#allocation12 + $0x78] sm:$0xff]
        %v968 = vld [vmem:[#allocation12 + $0x80] sm:$0xff]
        %v969 = vld [vmem:[#allocation12 + $0x88] sm:$0xff]
        %v970 = vld [vmem:[#allocation12 + $0x90] sm:$0xff]
        %v971 = vld [vmem:[#allocation12 + $0x98] sm:$0xff]
        %v972 = vld [vmem:[#allocation12 + $0xa0] sm:$0xff]
        %v973 = vld [vmem:[#allocation12 + $0xa8] sm:$0xff]
        %v974 = vld [vmem:[#allocation12 + $0xb0] sm:$0xff]
        %v975 = vld [vmem:[#allocation12 + $0xb8] sm:$0xff]
        %v976 = vld [vmem:[#allocation12 + $0xc0] sm:$0xff]
        %v977 = vld [vmem:[#allocation12 + $0xc8] sm:$0xff]
        %v978 = vld [vmem:[#allocation12 + $0xd0] sm:$0xff]
        %v979 = vld [vmem:[#allocation12 + $0xd8] sm:$0xff]
        %v980 = vld [vmem:[#allocation12 + $0xe0] sm:$0xff]
        %v981 = vld [vmem:[#allocation12 + $0xe8] sm:$0xff]
        %v982 = vld [vmem:[#allocation12 + $0xf0] sm:$0xff]
        %v983 = vld [vmem:[#allocation12 + $0xf8] sm:$0xff]
        %v984 = vld [vmem:[#allocation12 + $0x100] sm:$0xff]
        %v985 = vld [vmem:[#allocation12 + $0x108] sm:$0xff]
        %v986 = vld [vmem:[#allocation12 + $0x110] sm:$0xff]
        %v987 = vld [vmem:[#allocation12 + $0x118] sm:$0xff]
        %v988 = vld [vmem:[#allocation12 + $0x120] sm:$0xff]
        %v989 = vld [vmem:[#allocation12 + $0x128] sm:$0xff]
        %v990 = vld [vmem:[#allocation12 + $0x130] sm:$0xff]
        %v991 = vld [vmem:[#allocation12 + $0x138] sm:$0xff]
        %v992 = vld [vmem:[#allocation12 + $0x140] sm:$0xff]
        %v993 = vld [vmem:[#allocation12 + $0x148] sm:$0xff]
        %v994 = vld [vmem:[#allocation12 + $0x150] sm:$0xff]
        %v995 = vld [vmem:[#allocation12 + $0x158] sm:$0xff]
        %v996 = vld [vmem:[#allocation12 + $0x160] sm:$0xff]
        %v997 = vld [vmem:[#allocation12 + $0x168] sm:$0xff]
        %v998 = vld [vmem:[#allocation12 + $0x170] sm:$0xff]
        %v999 = vld [vmem:[#allocation12 + $0x178] sm:$0xff]
        %v1000 = vld [vmem:[#allocation12 + $0x180] sm:$0xff]
        %v1001 = vld [vmem:[#allocation12 + $0x188] sm:$0xff]
        %v1002 = vld [vmem:[#allocation12 + $0x190] sm:$0xff]
        %v1003 = vld [vmem:[#allocation12 + $0x198] sm:$0xff]
        %v1004 = vld [vmem:[#allocation12 + $0x1a0] sm:$0xff]
        %v1005 = vld [vmem:[#allocation12 + $0x1a8] sm:$0xff]
        %v1006 = vld [vmem:[#allocation12 + $0x1b0] sm:$0xff]
        %v1007 = vld [vmem:[#allocation12 + $0x1b8] sm:$0xff]
        %v1008 = vld [vmem:[#allocation12 + $0x1c0] sm:$0xff]
        %v1009 = vld [vmem:[#allocation12 + $0x1c8] sm:$0xff]
        %v1010 = vld [vmem:[#allocation12 + $0x1d0] sm:$0xff]
        %v1011 = vld [vmem:[#allocation12 + $0x1d8] sm:$0xff]
        %v1012 = vld [vmem:[#allocation12 + $0x1e0] sm:$0xff]
        %v1013 = vld [vmem:[#allocation12 + $0x1e8] sm:$0xff]
        %v1014 = vld [vmem:[#allocation12 + $0x1f0] sm:$0xff]
        %v1015 = vld [vmem:[#allocation12 + $0x1f8] sm:$0xff]
        %1016 = vmatprep.subr.mxu0 %v953
        %1017 = vmatpush1.msra.mxu0 %v952
        %1018 = vmatprep.subr.mxu0 %v957
        %1019 = vmatpush1.msra.mxu0 %v956
        %1020 = vmatprep.subr.mxu0 %v961
        %1021 = vmatpush1.msra.mxu0 %v960
        %1022 = vmatprep.subr.mxu0 %v965
        %1023 = vmatpush1.msra.mxu0 %v964
        %1024 = vmatprep.subr.mxu0 %v969
        %1025 = vmatpush1.msra.mxu0 %v968
        %1026 = vmatprep.subr.mxu0 %v973
        %1027 = vmatpush1.msra.mxu0 %v972
        %1028 = vmatprep.subr.mxu0 %v977
        %1029 = vmatpush1.msra.mxu0 %v976
        %1030 = vmatprep.subr.mxu0 %v981
        %1031 = vmatpush1.msra.mxu0 %v980
        %1032 = vmatprep.subr.mxu0 %v985
        %1033 = vmatpush1.msra.mxu0 %v984
        %1034 = vmatprep.subr.mxu0 %v989
        %1035 = vmatpush1.msra.mxu0 %v988
        %1036 = vmatprep.subr.mxu0 %v993
        %1037 = vmatpush1.msra.mxu0 %v992
        %1038 = vmatprep.subr.mxu0 %v997
        %1039 = vmatpush1.msra.mxu0 %v996
        %1040 = vmatprep.subr.mxu0 %v1001
        %1041 = vmatpush1.msra.mxu0 %v1000
        %1042 = vmatprep.subr.mxu0 %v1005
        %1043 = vmatpush1.msra.mxu0 %v1004
        %1044 = vmatprep.subr.mxu0 %v1009
        %1045 = vmatpush1.msra.mxu0 %v1008
        %1046 = vmatprep.subr.mxu0 %v1013
        %1047 = vmatpush1.msra.mxu0 %v1012
        %1048 = vmatprep.subr.mxu0 0.0
        %1049 = vmatpush1.msra.mxu0 0.0
        %1050 = vmatprep.subr.mxu0 0.0
        %1051 = vmatpush1.msra.mxu0 0.0
        %1052 = vmatprep.subr.mxu0 0.0
        %1053 = vmatpush1.msra.mxu0 0.0
        %1054 = vmatprep.subr.mxu0 0.0
        %1055 = vmatpush1.msra.mxu0 0.0
        %1056 = vmatprep.subr.mxu0 0.0
        %1057 = vmatpush1.msra.mxu0 0.0
        %1058 = vmatprep.subr.mxu0 0.0
        %1059 = vmatpush1.msra.mxu0 0.0
        %1060 = vmatprep.subr.mxu0 0.0
        %1061 = vmatpush1.msra.mxu0 0.0
        %1062 = vmatprep.subr.mxu0 0.0
        %1063 = vmatpush1.msra.mxu0 0.0
        %1064 = vmatprep.subr.mxu0 0.0
        %1065 = vmatpush1.msra.mxu0 0.0
        %1066 = vmatprep.subr.mxu0 0.0
        %1067 = vmatpush1.msra.mxu0 0.0
        %1068 = vmatprep.subr.mxu0 0.0
        %1069 = vmatpush1.msra.mxu0 0.0
        %1070 = vmatprep.subr.mxu0 0.0
        %1071 = vmatpush1.msra.mxu0 0.0
        %1072 = vmatprep.subr.mxu0 0.0
        %1073 = vmatpush1.msra.mxu0 0.0
        %1074 = vmatprep.subr.mxu0 0.0
        %1075 = vmatpush1.msra.mxu0 0.0
        %1076 = vmatprep.subr.mxu0 0.0
        %1077 = vmatpush1.msra.mxu0 0.0
        %1078 = vmatprep.subr.mxu0 0.0
        %1079 = vmatpush1.msra.mxu0 0.0
        %1080 = vmatprep.mubr.f32.mxu0 0.0
        %1081 = vmatmul.mubr.f32.gmra.mrb[0].mxu0 %v946
        %v1082 = vpop.f32.mrb[0].mxu0
        %v1083 = vadd.f32 0.0, %v1082
        %v1084 = vpop.f32.mrb[0].mxu0
        %v1085 = vadd.f32 0.0, %v1084
        %1086 = vdwg.mxu0
        %1087 = vmatprep.subr.mxu0 %v955
        %1088 = vmatpush1.msra.mxu0 %v954
        %1089 = vmatprep.subr.mxu0 %v959
        %1090 = vmatpush1.msra.mxu0 %v958
        %1091 = vmatprep.subr.mxu0 %v963
        %1092 = vmatpush1.msra.mxu0 %v962
        %1093 = vmatprep.subr.mxu0 %v967
        %1094 = vmatpush1.msra.mxu0 %v966
        %1095 = vmatprep.subr.mxu0 %v971
        %1096 = vmatpush1.msra.mxu0 %v970
        %1097 = vmatprep.subr.mxu0 %v975
        %1098 = vmatpush1.msra.mxu0 %v974
        %1099 = vmatprep.subr.mxu0 %v979
        %1100 = vmatpush1.msra.mxu0 %v978
        %1101 = vmatprep.subr.mxu0 %v983
        %1102 = vmatpush1.msra.mxu0 %v982
        %1103 = vmatprep.subr.mxu0 %v987
        %1104 = vmatpush1.msra.mxu0 %v986
        %1105 = vmatprep.subr.mxu0 %v991
        %1106 = vmatpush1.msra.mxu0 %v990
        %1107 = vmatprep.subr.mxu0 %v995
        %1108 = vmatpush1.msra.mxu0 %v994
        %1109 = vmatprep.subr.mxu0 %v999
        %1110 = vmatpush1.msra.mxu0 %v998
        %1111 = vmatprep.subr.mxu0 %v1003
        %1112 = vmatpush1.msra.mxu0 %v1002
        %1113 = vmatprep.subr.mxu0 %v1007
        %1114 = vmatpush1.msra.mxu0 %v1006
        %1115 = vmatprep.subr.mxu0 %v1011
        %1116 = vmatpush1.msra.mxu0 %v1010
        %1117 = vmatprep.subr.mxu0 %v1015
        %1118 = vmatpush1.msra.mxu0 %v1014
        %1119 = vmatprep.subr.mxu0 0.0
        %1120 = vmatpush1.msra.mxu0 0.0
        %1121 = vmatprep.subr.mxu0 0.0
        %1122 = vmatpush1.msra.mxu0 0.0
        %1123 = vmatprep.subr.mxu0 0.0
        %1124 = vmatpush1.msra.mxu0 0.0
        %1125 = vmatprep.subr.mxu0 0.0
        %1126 = vmatpush1.msra.mxu0 0.0
        %1127 = vmatprep.subr.mxu0 0.0
        %1128 = vmatpush1.msra.mxu0 0.0
        %1129 = vmatprep.subr.mxu0 0.0
        %1130 = vmatpush1.msra.mxu0 0.0
        %1131 = vmatprep.subr.mxu0 0.0
        %1132 = vmatpush1.msra.mxu0 0.0
        %1133 = vmatprep.subr.mxu0 0.0
        %1134 = vmatpush1.msra.mxu0 0.0
        %1135 = vmatprep.subr.mxu0 0.0
        %1136 = vmatpush1.msra.mxu0 0.0
        %1137 = vmatprep.subr.mxu0 0.0
        %1138 = vmatpush1.msra.mxu0 0.0
        %1139 = vmatprep.subr.mxu0 0.0
        %1140 = vmatpush1.msra.mxu0 0.0
        %1141 = vmatprep.subr.mxu0 0.0
        %1142 = vmatpush1.msra.mxu0 0.0
        %1143 = vmatprep.subr.mxu0 0.0
        %1144 = vmatpush1.msra.mxu0 0.0
        %1145 = vmatprep.subr.mxu0 0.0
        %1146 = vmatpush1.msra.mxu0 0.0
        %1147 = vmatprep.subr.mxu0 0.0
        %1148 = vmatpush1.msra.mxu0 0.0
        %1149 = vmatprep.subr.mxu0 0.0
        %1150 = vmatpush1.msra.mxu0 0.0
        %1151 = vmatprep.mubr.f32.mxu0 0.0
        %1152 = vmatmul.mubr.f32.gmra.mrb[0].mxu0 %v946
        %v1153 = vpop.f32.mrb[0].mxu0
        %v1154 = vadd.f32 0.0, %v1153
        %v1155 = vpop.f32.mrb[0].mxu0
        %v1156 = vadd.f32 0.0, %v1155
        %1157 = vdwg.mxu0
        %v1158 = vadd.f32 %v948, %v1083
        %v1159 = vadd.f32 %v949, %v1085
        %v1160 = vadd.f32 %v950, %v1154
        %v1161 = vadd.f32 %v951, %v1156
        %v1162 = vxor.u32 %v1158, 2147483648
        %v1163 = vxor.u32 %v1159, 2147483648
        %v1164 = vxor.u32 %v1160, 2147483648
        %v1165 = vmul.f32 %v1162, 1.442695
        %v1166 = vpow.pop %v1165
        %v1167 = vmul.f32 %v1163, 1.442695
        %v1168 = vpow.pop %v1167
        %v1169 = vmul.f32 %v1164, 1.442695
        %v1170 = vpow.pop %v1169
        %v1171 = vadd.f32 %v1166, 1.0
        %v1172 = vadd.f32 %v1168, 1.0
        %v1173 = vadd.f32 %v1170, 1.0
        %v1174 = vrcp.pop %v1171
        %v1175 = vmul.f32 1.0, %v1174
        %v1176 = vrcp.pop %v1172
        %v1177 = vmul.f32 1.0, %v1176
        %v1178 = vrcp.pop %v1173
        %v1179 = vmul.f32 1.0, %v1178
        %v1180 = vtanh.pop %v1161
        %v1181 = vmul.f32 %v1177, %v944
        %v1182 = vmul.f32 %v1175, %v1180
        %v1183 = vadd.f32 %v1181, %v1182
        %v1184 = vtanh.pop %v1183
        %v1185 = vmul.f32 %v1179, %v1184
        %1186 = vst [vmem:[#allocation5 + $0x8] sm:$0xff] %v1185
        %v1187 = vld [vmem:[#allocation2 + $0x40] sm:$0xff]
        %v1188 = vld [vmem:[#allocation2 + $0x48] sm:$0xff]
        %v1189 = vld [vmem:[#allocation2 + $0x50] sm:$0xff]
        %v1190 = vld [vmem:[#allocation2 + $0x58] sm:$0xff]
        %v1191 = vld [vmem:[#allocation12] sm:$0xff]
        %v1192 = vld [vmem:[#allocation12 + $0x8] sm:$0xff]
        %v1193 = vld [vmem:[#allocation12 + $0x10] sm:$0xff]
        %v1194 = vld [vmem:[#allocation12 + $0x18] sm:$0xff]
        %v1195 = vld [vmem:[#allocation12 + $0x20] sm:$0xff]
        %v1196 = vld [vmem:[#allocation12 + $0x28] sm:$0xff]
        %v1197 = vld [vmem:[#allocation12 + $0x30] sm:$0xff]
        %v1198 = vld [vmem:[#allocation12 + $0x38] sm:$0xff]
        %v1199 = vld [vmem:[#allocation12 + $0x40] sm:$0xff]
        %v1200 = vld [vmem:[#allocation12 + $0x48] sm:$0xff]
        %v1201 = vld [vmem:[#allocation12 + $0x50] sm:$0xff]
        %v1202 = vld [vmem:[#allocation12 + $0x58] sm:$0xff]
        %v1203 = vld [vmem:[#allocation12 + $0x60] sm:$0xff]
        %v1204 = vld [vmem:[#allocation12 + $0x68] sm:$0xff]
        %v1205 = vld [vmem:[#allocation12 + $0x70] sm:$0xff]
        %v1206 = vld [vmem:[#allocation12 + $0x78] sm:$0xff]
        %v1207 = vld [vmem:[#allocation12 + $0x80] sm:$0xff]
        %v1208 = vld [vmem:[#allocation12 + $0x88] sm:$0xff]
        %v1209 = vld [vmem:[#allocation12 + $0x90] sm:$0xff]
        %v1210 = vld [vmem:[#allocation12 + $0x98] sm:$0xff]
        %v1211 = vld [vmem:[#allocation12 + $0xa0] sm:$0xff]
        %v1212 = vld [vmem:[#allocation12 + $0xa8] sm:$0xff]
        %v1213 = vld [vmem:[#allocation12 + $0xb0] sm:$0xff]
        %v1214 = vld [vmem:[#allocation12 + $0xb8] sm:$0xff]
        %v1215 = vld [vmem:[#allocation12 + $0xc0] sm:$0xff]
        %v1216 = vld [vmem:[#allocation12 + $0xc8] sm:$0xff]
        %v1217 = vld [vmem:[#allocation12 + $0xd0] sm:$0xff]
        %v1218 = vld [vmem:[#allocation12 + $0xd8] sm:$0xff]
        %v1219 = vld [vmem:[#allocation12 + $0xe0] sm:$0xff]
        %v1220 = vld [vmem:[#allocation12 + $0xe8] sm:$0xff]
        %v1221 = vld [vmem:[#allocation12 + $0xf0] sm:$0xff]
        %v1222 = vld [vmem:[#allocation12 + $0xf8] sm:$0xff]
        %v1223 = vld [vmem:[#allocation12 + $0x100] sm:$0xff]
        %v1224 = vld [vmem:[#allocation12 + $0x108] sm:$0xff]
        %v1225 = vld [vmem:[#allocation12 + $0x110] sm:$0xff]
        %v1226 = vld [vmem:[#allocation12 + $0x118] sm:$0xff]
        %v1227 = vld [vmem:[#allocation12 + $0x120] sm:$0xff]
        %v1228 = vld [vmem:[#allocation12 + $0x128] sm:$0xff]
        %v1229 = vld [vmem:[#allocation12 + $0x130] sm:$0xff]
        %v1230 = vld [vmem:[#allocation12 + $0x138] sm:$0xff]
        %v1231 = vld [vmem:[#allocation12 + $0x140] sm:$0xff]
        %v1232 = vld [vmem:[#allocation12 + $0x148] sm:$0xff]
        %v1233 = vld [vmem:[#allocation12 + $0x150] sm:$0xff]
        %v1234 = vld [vmem:[#allocation12 + $0x158] sm:$0xff]
        %v1235 = vld [vmem:[#allocation12 + $0x160] sm:$0xff]
        %v1236 = vld [vmem:[#allocation12 + $0x168] sm:$0xff]
        %v1237 = vld [vmem:[#allocation12 + $0x170] sm:$0xff]
        %v1238 = vld [vmem:[#allocation12 + $0x178] sm:$0xff]
        %v1239 = vld [vmem:[#allocation12 + $0x180] sm:$0xff]
        %v1240 = vld [vmem:[#allocation12 + $0x188] sm:$0xff]
        %v1241 = vld [vmem:[#allocation12 + $0x190] sm:$0xff]
        %v1242 = vld [vmem:[#allocation12 + $0x198] sm:$0xff]
        %v1243 = vld [vmem:[#allocation12 + $0x1a0] sm:$0xff]
        %v1244 = vld [vmem:[#allocation12 + $0x1a8] sm:$0xff]
        %v1245 = vld [vmem:[#allocation12 + $0x1b0] sm:$0xff]
        %v1246 = vld [vmem:[#allocation12 + $0x1b8] sm:$0xff]
        %v1247 = vld [vmem:[#allocation12 + $0x1c0] sm:$0xff]
        %v1248 = vld [vmem:[#allocation12 + $0x1c8] sm:$0xff]
        %v1249 = vld [vmem:[#allocation12 + $0x1d0] sm:$0xff]
        %v1250 = vld [vmem:[#allocation12 + $0x1d8] sm:$0xff]
        %v1251 = vld [vmem:[#allocation12 + $0x1e0] sm:$0xff]
        %v1252 = vld [vmem:[#allocation12 + $0x1e8] sm:$0xff]
        %v1253 = vld [vmem:[#allocation12 + $0x1f0] sm:$0xff]
        %v1254 = vld [vmem:[#allocation12 + $0x1f8] sm:$0xff]
        %1255 = vmatprep.subr.mxu0 %v1192
        %1256 = vmatpush1.msra.mxu0 %v1191
        %1257 = vmatprep.subr.mxu0 %v1196
        %1258 = vmatpush1.msra.mxu0 %v1195
        %1259 = vmatprep.subr.mxu0 %v1200
        %1260 = vmatpush1.msra.mxu0 %v1199
        %1261 = vmatprep.subr.mxu0 %v1204
        %1262 = vmatpush1.msra.mxu0 %v1203
        %1263 = vmatprep.subr.mxu0 %v1208
        %1264 = vmatpush1.msra.mxu0 %v1207
        %1265 = vmatprep.subr.mxu0 %v1212
        %1266 = vmatpush1.msra.mxu0 %v1211
        %1267 = vmatprep.subr.mxu0 %v1216
        %1268 = vmatpush1.msra.mxu0 %v1215
        %1269 = vmatprep.subr.mxu0 %v1220
        %1270 = vmatpush1.msra.mxu0 %v1219
        %1271 = vmatprep.subr.mxu0 %v1224
        %1272 = vmatpush1.msra.mxu0 %v1223
        %1273 = vmatprep.subr.mxu0 %v1228
        %1274 = vmatpush1.msra.mxu0 %v1227
        %1275 = vmatprep.subr.mxu0 %v1232
        %1276 = vmatpush1.msra.mxu0 %v1231
        %1277 = vmatprep.subr.mxu0 %v1236
        %1278 = vmatpush1.msra.mxu0 %v1235
        %1279 = vmatprep.subr.mxu0 %v1240
        %1280 = vmatpush1.msra.mxu0 %v1239
        %1281 = vmatprep.subr.mxu0 %v1244
        %1282 = vmatpush1.msra.mxu0 %v1243
        %1283 = vmatprep.subr.mxu0 %v1248
        %1284 = vmatpush1.msra.mxu0 %v1247
        %1285 = vmatprep.subr.mxu0 %v1252
        %1286 = vmatpush1.msra.mxu0 %v1251
        %1287 = vmatprep.subr.mxu0 0.0
        %1288 = vmatpush1.msra.mxu0 0.0
        %1289 = vmatprep.subr.mxu0 0.0
        %1290 = vmatpush1.msra.mxu0 0.0
        %1291 = vmatprep.subr.mxu0 0.0
        %1292 = vmatpush1.msra.mxu0 0.0
        %1293 = vmatprep.subr.mxu0 0.0
        %1294 = vmatpush1.msra.mxu0 0.0
        %1295 = vmatprep.subr.mxu0 0.0
        %1296 = vmatpush1.msra.mxu0 0.0
        %1297 = vmatprep.subr.mxu0 0.0
        %1298 = vmatpush1.msra.mxu0 0.0
        %1299 = vmatprep.subr.mxu0 0.0
        %1300 = vmatpush1.msra.mxu0 0.0
        %1301 = vmatprep.subr.mxu0 0.0
        %1302 = vmatpush1.msra.mxu0 0.0
        %1303 = vmatprep.subr.mxu0 0.0
        %1304 = vmatpush1.msra.mxu0 0.0
        %1305 = vmatprep.subr.mxu0 0.0
        %1306 = vmatpush1.msra.mxu0 0.0
        %1307 = vmatprep.subr.mxu0 0.0
        %1308 = vmatpush1.msra.mxu0 0.0
        %1309 = vmatprep.subr.mxu0 0.0
        %1310 = vmatpush1.msra.mxu0 0.0
        %1311 = vmatprep.subr.mxu0 0.0
        %1312 = vmatpush1.msra.mxu0 0.0
        %1313 = vmatprep.subr.mxu0 0.0
        %1314 = vmatpush1.msra.mxu0 0.0
        %1315 = vmatprep.subr.mxu0 0.0
        %1316 = vmatpush1.msra.mxu0 0.0
        %1317 = vmatprep.subr.mxu0 0.0
        %1318 = vmatpush1.msra.mxu0 0.0
        %1319 = vmatprep.mubr.f32.mxu0 0.0
        %1320 = vmatmul.mubr.f32.gmra.mrb[0].mxu0 %v1185
        %v1321 = vpop.f32.mrb[0].mxu0
        %v1322 = vadd.f32 0.0, %v1321
        %v1323 = vpop.f32.mrb[0].mxu0
        %v1324 = vadd.f32 0.0, %v1323
        %1325 = vdwg.mxu0
        %1326 = vmatprep.subr.mxu0 %v1194
        %1327 = vmatpush1.msra.mxu0 %v1193
        %1328 = vmatprep.subr.mxu0 %v1198
        %1329 = vmatpush1.msra.mxu0 %v1197
        %1330 = vmatprep.subr.mxu0 %v1202
        %1331 = vmatpush1.msra.mxu0 %v1201
        %1332 = vmatprep.subr.mxu0 %v1206
        %1333 = vmatpush1.msra.mxu0 %v1205
        %1334 = vmatprep.subr.mxu0 %v1210
        %1335 = vmatpush1.msra.mxu0 %v1209
        %1336 = vmatprep.subr.mxu0 %v1214
        %1337 = vmatpush1.msra.mxu0 %v1213
        %1338 = vmatprep.subr.mxu0 %v1218
        %1339 = vmatpush1.msra.mxu0 %v1217
        %1340 = vmatprep.subr.mxu0 %v1222
        %1341 = vmatpush1.msra.mxu0 %v1221
        %1342 = vmatprep.subr.mxu0 %v1226
        %1343 = vmatpush1.msra.mxu0 %v1225
        %1344 = vmatprep.subr.mxu0 %v1230
        %1345 = vmatpush1.msra.mxu0 %v1229
        %1346 = vmatprep.subr.mxu0 %v1234
        %1347 = vmatpush1.msra.mxu0 %v1233
        %1348 = vmatprep.subr.mxu0 %v1238
        %1349 = vmatpush1.msra.mxu0 %v1237
        %1350 = vmatprep.subr.mxu0 %v1242
        %1351 = vmatpush1.msra.mxu0 %v1241
        %1352 = vmatprep.subr.mxu0 %v1246
        %1353 = vmatpush1.msra.mxu0 %v1245
        %1354 = vmatprep.subr.mxu0 %v1250
        %1355 = vmatpush1.msra.mxu0 %v1249
        %1356 = vmatprep.subr.mxu0 %v1254
        %1357 = vmatpush1.msra.mxu0 %v1253
        %1358 = vmatprep.subr.mxu0 0.0
        %1359 = vmatpush1.msra.mxu0 0.0
        %1360 = vmatprep.subr.mxu0 0.0
        %1361 = vmatpush1.msra.mxu0 0.0
        %1362 = vmatprep.subr.mxu0 0.0
        %1363 = vmatpush1.msra.mxu0 0.0
        %1364 = vmatprep.subr.mxu0 0.0
        %1365 = vmatpush1.msra.mxu0 0.0
        %1366 = vmatprep.subr.mxu0 0.0
        %1367 = vmatpush1.msra.mxu0 0.0
        %1368 = vmatprep.subr.mxu0 0.0
        %1369 = vmatpush1.msra.mxu0 0.0
        %1370 = vmatprep.subr.mxu0 0.0
        %1371 = vmatpush1.msra.mxu0 0.0
        %1372 = vmatprep.subr.mxu0 0.0
        %1373 = vmatpush1.msra.mxu0 0.0
        %1374 = vmatprep.subr.mxu0 0.0
        %1375 = vmatpush1.msra.mxu0 0.0
        %1376 = vmatprep.subr.mxu0 0.0
        %1377 = vmatpush1.msra.mxu0 0.0
        %1378 = vmatprep.subr.mxu0 0.0
        %1379 = vmatpush1.msra.mxu0 0.0
        %1380 = vmatprep.subr.mxu0 0.0
        %1381 = vmatpush1.msra.mxu0 0.0
        %1382 = vmatprep.subr.mxu0 0.0
        %1383 = vmatpush1.msra.mxu0 0.0
        %1384 = vmatprep.subr.mxu0 0.0
        %1385 = vmatpush1.msra.mxu0 0.0
        %1386 = vmatprep.subr.mxu0 0.0
        %1387 = vmatpush1.msra.mxu0 0.0
        %1388 = vmatprep.subr.mxu0 0.0
        %1389 = vmatpush1.msra.mxu0 0.0
        %1390 = vmatprep.mubr.f32.mxu0 0.0
        %1391 = vmatmul.mubr.f32.gmra.mrb[0].mxu0 %v1185
        %v1392 = vpop.f32.mrb[0].mxu0
        %v1393 = vadd.f32 0.0, %v1392
        %v1394 = vpop.f32.mrb[0].mxu0
        %v1395 = vadd.f32 0.0, %v1394
        %1396 = vdwg.mxu0
        %v1397 = vadd.f32 %v1187, %v1322
        %v1398 = vadd.f32 %v1188, %v1324
        %v1399 = vadd.f32 %v1189, %v1393
        %v1400 = vadd.f32 %v1190, %v1395
        %v1401 = vxor.u32 %v1397, 2147483648
        %v1402 = vxor.u32 %v1398, 2147483648
        %v1403 = vxor.u32 %v1399, 2147483648
        %v1404 = vmul.f32 %v1401, 1.442695
        %v1405 = vpow.pop %v1404
        %v1406 = vmul.f32 %v1402, 1.442695
        %v1407 = vpow.pop %v1406
        %v1408 = vmul.f32 %v1403, 1.442695
        %v1409 = vpow.pop %v1408
        %v1410 = vadd.f32 %v1405, 1.0
        %v1411 = vadd.f32 %v1407, 1.0
        %v1412 = vadd.f32 %v1409, 1.0
        %v1413 = vrcp.pop %v1410
        %v1414 = vmul.f32 1.0, %v1413
        %v1415 = vrcp.pop %v1411
        %v1416 = vmul.f32 1.0, %v1415
        %v1417 = vrcp.pop %v1412
        %v1418 = vmul.f32 1.0, %v1417
        %v1419 = vtanh.pop %v1400
        %v1420 = vmul.f32 %v1416, %v1183
        %v1421 = vmul.f32 %v1414, %v1419
        %v1422 = vadd.f32 %v1420, %v1421
        %v1423 = vtanh.pop %v1422
        %v1424 = vmul.f32 %v1418, %v1423
        %1425 = vst [vmem:[#allocation5 + $0x10] sm:$0xff] %v1424
        %v1426 = vld [vmem:[#allocation2 + $0x60] sm:$0xff]
        %v1427 = vld [vmem:[#allocation2 + $0x68] sm:$0xff]
        %v1428 = vld [vmem:[#allocation2 + $0x70] sm:$0xff]
        %v1429 = vld [vmem:[#allocation2 + $0x78] sm:$0xff]
        %v1430 = vld [vmem:[#allocation12] sm:$0xff]
        %v1431 = vld [vmem:[#allocation12 + $0x8] sm:$0xff]
        %v1432 = vld [vmem:[#allocation12 + $0x10] sm:$0xff]
        %v1433 = vld [vmem:[#allocation12 + $0x18] sm:$0xff]
        %v1434 = vld [vmem:[#allocation12 + $0x20] sm:$0xff]
        %v1435 = vld [vmem:[#allocation12 + $0x28] sm:$0xff]
        %v1436 = vld [vmem:[#allocation12 + $0x30] sm:$0xff]
        %v1437 = vld [vmem:[#allocation12 + $0x38] sm:$0xff]
        %v1438 = vld [vmem:[#allocation12 + $0x40] sm:$0xff]
        %v1439 = vld [vmem:[#allocation12 + $0x48] sm:$0xff]
        %v1440 = vld [vmem:[#allocation12 + $0x50] sm:$0xff]
        %v1441 = vld [vmem:[#allocation12 + $0x58] sm:$0xff]
        %v1442 = vld [vmem:[#allocation12 + $0x60] sm:$0xff]
        %v1443 = vld [vmem:[#allocation12 + $0x68] sm:$0xff]
        %v1444 = vld [vmem:[#allocation12 + $0x70] sm:$0xff]
        %v1445 = vld [vmem:[#allocation12 + $0x78] sm:$0xff]
        %v1446 = vld [vmem:[#allocation12 + $0x80] sm:$0xff]
        %v1447 = vld [vmem:[#allocation12 + $0x88] sm:$0xff]
        %v1448 = vld [vmem:[#allocation12 + $0x90] sm:$0xff]
        %v1449 = vld [vmem:[#allocation12 + $0x98] sm:$0xff]
        %v1450 = vld [vmem:[#allocation12 + $0xa0] sm:$0xff]
        %v1451 = vld [vmem:[#allocation12 + $0xa8] sm:$0xff]
        %v1452 = vld [vmem:[#allocation12 + $0xb0] sm:$0xff]
        %v1453 = vld [vmem:[#allocation12 + $0xb8] sm:$0xff]
        %v1454 = vld [vmem:[#allocation12 + $0xc0] sm:$0xff]
        %v1455 = vld [vmem:[#allocation12 + $0xc8] sm:$0xff]
        %v1456 = vld [vmem:[#allocation12 + $0xd0] sm:$0xff]
        %v1457 = vld [vmem:[#allocation12 + $0xd8] sm:$0xff]
        %v1458 = vld [vmem:[#allocation12 + $0xe0] sm:$0xff]
        %v1459 = vld [vmem:[#allocation12 + $0xe8] sm:$0xff]
        %v1460 = vld [vmem:[#allocation12 + $0xf0] sm:$0xff]
        %v1461 = vld [vmem:[#allocation12 + $0xf8] sm:$0xff]
        %v1462 = vld [vmem:[#allocation12 + $0x100] sm:$0xff]
        %v1463 = vld [vmem:[#allocation12 + $0x108] sm:$0xff]
        %v1464 = vld [vmem:[#allocation12 + $0x110] sm:$0xff]
        %v1465 = vld [vmem:[#allocation12 + $0x118] sm:$0xff]
        %v1466 = vld [vmem:[#allocation12 + $0x120] sm:$0xff]
        %v1467 = vld [vmem:[#allocation12 + $0x128] sm:$0xff]
        %v1468 = vld [vmem:[#allocation12 + $0x130] sm:$0xff]
        %v1469 = vld [vmem:[#allocation12 + $0x138] sm:$0xff]
        %v1470 = vld [vmem:[#allocation12 + $0x140] sm:$0xff]
        %v1471 = vld [vmem:[#allocation12 + $0x148] sm:$0xff]
        %v1472 = vld [vmem:[#allocation12 + $0x150] sm:$0xff]
        %v1473 = vld [vmem:[#allocation12 + $0x158] sm:$0xff]
        %v1474 = vld [vmem:[#allocation12 + $0x160] sm:$0xff]
        %v1475 = vld [vmem:[#allocation12 + $0x168] sm:$0xff]
        %v1476 = vld [vmem:[#allocation12 + $0x170] sm:$0xff]
        %v1477 = vld [vmem:[#allocation12 + $0x178] sm:$0xff]
        %v1478 = vld [vmem:[#allocation12 + $0x180] sm:$0xff]
        %v1479 = vld [vmem:[#allocation12 + $0x188] sm:$0xff]
        %v1480 = vld [vmem:[#allocation12 + $0x190] sm:$0xff]
        %v1481 = vld [vmem:[#allocation12 + $0x198] sm:$0xff]
        %v1482 = vld [vmem:[#allocation12 + $0x1a0] sm:$0xff]
        %v1483 = vld [vmem:[#allocation12 + $0x1a8] sm:$0xff]
        %v1484 = vld [vmem:[#allocation12 + $0x1b0] sm:$0xff]
        %v1485 = vld [vmem:[#allocation12 + $0x1b8] sm:$0xff]
        %v1486 = vld [vmem:[#allocation12 + $0x1c0] sm:$0xff]
        %v1487 = vld [vmem:[#allocation12 + $0x1c8] sm:$0xff]
        %v1488 = vld [vmem:[#allocation12 + $0x1d0] sm:$0xff]
        %v1489 = vld [vmem:[#allocation12 + $0x1d8] sm:$0xff]
        %v1490 = vld [vmem:[#allocation12 + $0x1e0] sm:$0xff]
        %v1491 = vld [vmem:[#allocation12 + $0x1e8] sm:$0xff]
        %v1492 = vld [vmem:[#allocation12 + $0x1f0] sm:$0xff]
        %v1493 = vld [vmem:[#allocation12 + $0x1f8] sm:$0xff]
        %1494 = vmatprep.subr.mxu0 %v1431
        %1495 = vmatpush1.msra.mxu0 %v1430
        %1496 = vmatprep.subr.mxu0 %v1435
        %1497 = vmatpush1.msra.mxu0 %v1434
        %1498 = vmatprep.subr.mxu0 %v1439
        %1499 = vmatpush1.msra.mxu0 %v1438
        %1500 = vmatprep.subr.mxu0 %v1443
        %1501 = vmatpush1.msra.mxu0 %v1442
        %1502 = vmatprep.subr.mxu0 %v1447
        %1503 = vmatpush1.msra.mxu0 %v1446
        %1504 = vmatprep.subr.mxu0 %v1451
        %1505 = vmatpush1.msra.mxu0 %v1450
        %1506 = vmatprep.subr.mxu0 %v1455
        %1507 = vmatpush1.msra.mxu0 %v1454
        %1508 = vmatprep.subr.mxu0 %v1459
        %1509 = vmatpush1.msra.mxu0 %v1458
        %1510 = vmatprep.subr.mxu0 %v1463
        %1511 = vmatpush1.msra.mxu0 %v1462
        %1512 = vmatprep.subr.mxu0 %v1467
        %1513 = vmatpush1.msra.mxu0 %v1466
        %1514 = vmatprep.subr.mxu0 %v1471
        %1515 = vmatpush1.msra.mxu0 %v1470
        %1516 = vmatprep.subr.mxu0 %v1475
        %1517 = vmatpush1.msra.mxu0 %v1474
        %1518 = vmatprep.subr.mxu0 %v1479
        %1519 = vmatpush1.msra.mxu0 %v1478
        %1520 = vmatprep.subr.mxu0 %v1483
        %1521 = vmatpush1.msra.mxu0 %v1482
        %1522 = vmatprep.subr.mxu0 %v1487
        %1523 = vmatpush1.msra.mxu0 %v1486
        %1524 = vmatprep.subr.mxu0 %v1491
        %1525 = vmatpush1.msra.mxu0 %v1490
        %1526 = vmatprep.subr.mxu0 0.0
        %1527 = vmatpush1.msra.mxu0 0.0
        %1528 = vmatprep.subr.mxu0 0.0
        %1529 = vmatpush1.msra.mxu0 0.0
        %1530 = vmatprep.subr.mxu0 0.0
        %1531 = vmatpush1.msra.mxu0 0.0
        %1532 = vmatprep.subr.mxu0 0.0
        %1533 = vmatpush1.msra.mxu0 0.0
        %1534 = vmatprep.subr.mxu0 0.0
        %1535 = vmatpush1.msra.mxu0 0.0
        %1536 = vmatprep.subr.mxu0 0.0
        %1537 = vmatpush1.msra.mxu0 0.0
        %1538 = vmatprep.subr.mxu0 0.0
        %1539 = vmatpush1.msra.mxu0 0.0
        %1540 = vmatprep.subr.mxu0 0.0
        %1541 = vmatpush1.msra.mxu0 0.0
        %1542 = vmatprep.subr.mxu0 0.0
        %1543 = vmatpush1.msra.mxu0 0.0
        %1544 = vmatprep.subr.mxu0 0.0
        %1545 = vmatpush1.msra.mxu0 0.0
        %1546 = vmatprep.subr.mxu0 0.0
        %1547 = vmatpush1.msra.mxu0 0.0
        %1548 = vmatprep.subr.mxu0 0.0
        %1549 = vmatpush1.msra.mxu0 0.0
        %1550 = vmatprep.subr.mxu0 0.0
        %1551 = vmatpush1.msra.mxu0 0.0
        %1552 = vmatprep.subr.mxu0 0.0
        %1553 = vmatpush1.msra.mxu0 0.0
        %1554 = vmatprep.subr.mxu0 0.0
        %1555 = vmatpush1.msra.mxu0 0.0
        %1556 = vmatprep.subr.mxu0 0.0
        %1557 = vmatpush1.msra.mxu0 0.0
        %1558 = vmatprep.mubr.f32.mxu0 0.0
        %1559 = vmatmul.mubr.f32.gmra.mrb[0].mxu0 %v1424
        %v1560 = vpop.f32.mrb[0].mxu0
        %v1561 = vadd.f32 0.0, %v1560
        %v1562 = vpop.f32.mrb[0].mxu0
        %v1563 = vadd.f32 0.0, %v1562
        %1564 = vdwg.mxu0
        %1565 = vmatprep.subr.mxu0 %v1433
        %1566 = vmatpush1.msra.mxu0 %v1432
        %1567 = vmatprep.subr.mxu0 %v1437
        %1568 = vmatpush1.msra.mxu0 %v1436
        %1569 = vmatprep.subr.mxu0 %v1441
        %1570 = vmatpush1.msra.mxu0 %v1440
        %1571 = vmatprep.subr.mxu0 %v1445
        %1572 = vmatpush1.msra.mxu0 %v1444
        %1573 = vmatprep.subr.mxu0 %v1449
        %1574 = vmatpush1.msra.mxu0 %v1448
        %1575 = vmatprep.subr.mxu0 %v1453
        %1576 = vmatpush1.msra.mxu0 %v1452
        %1577 = vmatprep.subr.mxu0 %v1457
        %1578 = vmatpush1.msra.mxu0 %v1456
        %1579 = vmatprep.subr.mxu0 %v1461
        %1580 = vmatpush1.msra.mxu0 %v1460
        %1581 = vmatprep.subr.mxu0 %v1465
        %1582 = vmatpush1.msra.mxu0 %v1464
        %1583 = vmatprep.subr.mxu0 %v1469
        %1584 = vmatpush1.msra.mxu0 %v1468
        %1585 = vmatprep.subr.mxu0 %v1473
        %1586 = vmatpush1.msra.mxu0 %v1472
        %1587 = vmatprep.subr.mxu0 %v1477
        %1588 = vmatpush1.msra.mxu0 %v1476
        %1589 = vmatprep.subr.mxu0 %v1481
        %1590 = vmatpush1.msra.mxu0 %v1480
        %1591 = vmatprep.subr.mxu0 %v1485
        %1592 = vmatpush1.msra.mxu0 %v1484
        %1593 = vmatprep.subr.mxu0 %v1489
        %1594 = vmatpush1.msra.mxu0 %v1488
        %1595 = vmatprep.subr.mxu0 %v1493
        %1596 = vmatpush1.msra.mxu0 %v1492
        %1597 = vmatprep.subr.mxu0 0.0
        %1598 = vmatpush1.msra.mxu0 0.0
        %1599 = vmatprep.subr.mxu0 0.0
        %1600 = vmatpush1.msra.mxu0 0.0
        %1601 = vmatprep.subr.mxu0 0.0
        %1602 = vmatpush1.msra.mxu0 0.0
        %1603 = vmatprep.subr.mxu0 0.0
        %1604 = vmatpush1.msra.mxu0 0.0
        %1605 = vmatprep.subr.mxu0 0.0
        %1606 = vmatpush1.msra.mxu0 0.0
        %1607 = vmatprep.subr.mxu0 0.0
        %1608 = vmatpush1.msra.mxu0 0.0
        %1609 = vmatprep.subr.mxu0 0.0
        %1610 = vmatpush1.msra.mxu0 0.0
        %1611 = vmatprep.subr.mxu0 0.0
        %1612 = vmatpush1.msra.mxu0 0.0
        %1613 = vmatprep.subr.mxu0 0.0
        %1614 = vmatpush1.msra.mxu0 0.0
        %1615 = vmatprep.subr.mxu0 0.0
        %1616 = vmatpush1.msra.mxu0 0.0
        %1617 = vmatprep.subr.mxu0 0.0
        %1618 = vmatpush1.msra.mxu0 0.0
        %1619 = vmatprep.subr.mxu0 0.0
        %1620 = vmatpush1.msra.mxu0 0.0
        %1621 = vmatprep.subr.mxu0 0.0
        %1622 = vmatpush1.msra.mxu0 0.0
        %1623 = vmatprep.subr.mxu0 0.0
        %1624 = vmatpush1.msra.mxu0 0.0
        %1625 = vmatprep.subr.mxu0 0.0
        %1626 = vmatpush1.msra.mxu0 0.0
        %1627 = vmatprep.subr.mxu0 0.0
        %1628 = vmatpush1.msra.mxu0 0.0
        %1629 = vmatprep.mubr.f32.mxu0 0.0
        %1630 = vmatmul.mubr.f32.gmra.mrb[0].mxu0 %v1424
        %v1631 = vpop.f32.mrb[0].mxu0
        %v1632 = vadd.f32 0.0, %v1631
        %v1633 = vpop.f32.mrb[0].mxu0
        %v1634 = vadd.f32 0.0, %v1633
        %1635 = vdwg.mxu0
        %v1636 = vadd.f32 %v1426, %v1561
        %v1637 = vadd.f32 %v1427, %v1563
        %v1638 = vadd.f32 %v1428, %v1632
        %v1639 = vadd.f32 %v1429, %v1634
        %v1640 = vxor.u32 %v1636, 2147483648
        %v1641 = vxor.u32 %v1637, 2147483648
        %v1642 = vxor.u32 %v1638, 2147483648
        %v1643 = vmul.f32 %v1640, 1.442695
        %v1644 = vpow.pop %v1643
        %v1645 = vmul.f32 %v1641, 1.442695
        %v1646 = vpow.pop %v1645
        %v1647 = vmul.f32 %v1642, 1.442695
        %v1648 = vpow.pop %v1647
        %v1649 = vadd.f32 %v1644, 1.0
        %v1650 = vadd.f32 %v1646, 1.0
        %v1651 = vadd.f32 %v1648, 1.0
        %v1652 = vrcp.pop %v1649
        %v1653 = vmul.f32 1.0, %v1652
        %v1654 = vrcp.pop %v1650
        %v1655 = vmul.f32 1.0, %v1654
        %v1656 = vrcp.pop %v1651
        %v1657 = vmul.f32 1.0, %v1656
        %v1658 = vtanh.pop %v1639
        %v1659 = vmul.f32 %v1655, %v1422
        %v1660 = vmul.f32 %v1653, %v1658
        %v1661 = vadd.f32 %v1659, %v1660
        %v1662 = vtanh.pop %v1661
        %v1663 = vmul.f32 %v1657, %v1662
        %1664 = vst [vmem:[#allocation5 + $0x18] sm:$0xff] %v1663
        %v1665 = vld [vmem:[#allocation2 + $0x80] sm:$0xff]
        %v1666 = vld [vmem:[#allocation2 + $0x88] sm:$0xff]
        %v1667 = vld [vmem:[#allocation2 + $0x90] sm:$0xff]
        %v1668 = vld [vmem:[#allocation2 + $0x98] sm:$0xff]
        %v1669 = vld [vmem:[#allocation12] sm:$0xff]
        %v1670 = vld [vmem:[#allocation12 + $0x8] sm:$0xff]
        %v1671 = vld [vmem:[#allocation12 + $0x10] sm:$0xff]
        %v1672 = vld [vmem:[#allocation12 + $0x18] sm:$0xff]
        %v1673 = vld [vmem:[#allocation12 + $0x20] sm:$0xff]
        %v1674 = vld [vmem:[#allocation12 + $0x28] sm:$0xff]
        %v1675 = vld [vmem:[#allocation12 + $0x30] sm:$0xff]
        %v1676 = vld [vmem:[#allocation12 + $0x38] sm:$0xff]
        %v1677 = vld [vmem:[#allocation12 + $0x40] sm:$0xff]
        %v1678 = vld [vmem:[#allocation12 + $0x48] sm:$0xff]
        %v1679 = vld [vmem:[#allocation12 + $0x50] sm:$0xff]
        %v1680 = vld [vmem:[#allocation12 + $0x58] sm:$0xff]
        %v1681 = vld [vmem:[#allocation12 + $0x60] sm:$0xff]
        %v1682 = vld [vmem:[#allocation12 + $0x68] sm:$0xff]
        %v1683 = vld [vmem:[#allocation12 + $0x70] sm:$0xff]
        %v1684 = vld [vmem:[#allocation12 + $0x78] sm:$0xff]
        %v1685 = vld [vmem:[#allocation12 + $0x80] sm:$0xff]
        %v1686 = vld [vmem:[#allocation12 + $0x88] sm:$0xff]
        %v1687 = vld [vmem:[#allocation12 + $0x90] sm:$0xff]
        %v1688 = vld [vmem:[#allocation12 + $0x98] sm:$0xff]
        %v1689 = vld [vmem:[#allocation12 + $0xa0] sm:$0xff]
        %v1690 = vld [vmem:[#allocation12 + $0xa8] sm:$0xff]
        %v1691 = vld [vmem:[#allocation12 + $0xb0] sm:$0xff]
        %v1692 = vld [vmem:[#allocation12 + $0xb8] sm:$0xff]
        %v1693 = vld [vmem:[#allocation12 + $0xc0] sm:$0xff]
        %v1694 = vld [vmem:[#allocation12 + $0xc8] sm:$0xff]
        %v1695 = vld [vmem:[#allocation12 + $0xd0] sm:$0xff]
        %v1696 = vld [vmem:[#allocation12 + $0xd8] sm:$0xff]
        %v1697 = vld [vmem:[#allocation12 + $0xe0] sm:$0xff]
        %v1698 = vld [vmem:[#allocation12 + $0xe8] sm:$0xff]
        %v1699 = vld [vmem:[#allocation12 + $0xf0] sm:$0xff]
        %v1700 = vld [vmem:[#allocation12 + $0xf8] sm:$0xff]
        %v1701 = vld [vmem:[#allocation12 + $0x100] sm:$0xff]
        %v1702 = vld [vmem:[#allocation12 + $0x108] sm:$0xff]
        %v1703 = vld [vmem:[#allocation12 + $0x110] sm:$0xff]
        %v1704 = vld [vmem:[#allocation12 + $0x118] sm:$0xff]
        %v1705 = vld [vmem:[#allocation12 + $0x120] sm:$0xff]
        %v1706 = vld [vmem:[#allocation12 + $0x128] sm:$0xff]
        %v1707 = vld [vmem:[#allocation12 + $0x130] sm:$0xff]
        %v1708 = vld [vmem:[#allocation12 + $0x138] sm:$0xff]
        %v1709 = vld [vmem:[#allocation12 + $0x140] sm:$0xff]
        %v1710 = vld [vmem:[#allocation12 + $0x148] sm:$0xff]
        %v1711 = vld [vmem:[#allocation12 + $0x150] sm:$0xff]
        %v1712 = vld [vmem:[#allocation12 + $0x158] sm:$0xff]
        %v1713 = vld [vmem:[#allocation12 + $0x160] sm:$0xff]
        %v1714 = vld [vmem:[#allocation12 + $0x168] sm:$0xff]
        %v1715 = vld [vmem:[#allocation12 + $0x170] sm:$0xff]
        %v1716 = vld [vmem:[#allocation12 + $0x178] sm:$0xff]
        %v1717 = vld [vmem:[#allocation12 + $0x180] sm:$0xff]
        %v1718 = vld [vmem:[#allocation12 + $0x188] sm:$0xff]
        %v1719 = vld [vmem:[#allocation12 + $0x190] sm:$0xff]
        %v1720 = vld [vmem:[#allocation12 + $0x198] sm:$0xff]
        %v1721 = vld [vmem:[#allocation12 + $0x1a0] sm:$0xff]
        %v1722 = vld [vmem:[#allocation12 + $0x1a8] sm:$0xff]
        %v1723 = vld [vmem:[#allocation12 + $0x1b0] sm:$0xff]
        %v1724 = vld [vmem:[#allocation12 + $0x1b8] sm:$0xff]
        %v1725 = vld [vmem:[#allocation12 + $0x1c0] sm:$0xff]
        %v1726 = vld [vmem:[#allocation12 + $0x1c8] sm:$0xff]
        %v1727 = vld [vmem:[#allocation12 + $0x1d0] sm:$0xff]
        %v1728 = vld [vmem:[#allocation12 + $0x1d8] sm:$0xff]
        %v1729 = vld [vmem:[#allocation12 + $0x1e0] sm:$0xff]
        %v1730 = vld [vmem:[#allocation12 + $0x1e8] sm:$0xff]
        %v1731 = vld [vmem:[#allocation12 + $0x1f0] sm:$0xff]
        %v1732 = vld [vmem:[#allocation12 + $0x1f8] sm:$0xff]
        %1733 = vmatprep.subr.mxu0 %v1670
        %1734 = vmatpush1.msra.mxu0 %v1669
        %1735 = vmatprep.subr.mxu0 %v1674
        %1736 = vmatpush1.msra.mxu0 %v1673
        %1737 = vmatprep.subr.mxu0 %v1678
        %1738 = vmatpush1.msra.mxu0 %v1677
        %1739 = vmatprep.subr.mxu0 %v1682
        %1740 = vmatpush1.msra.mxu0 %v1681
        %1741 = vmatprep.subr.mxu0 %v1686
        %1742 = vmatpush1.msra.mxu0 %v1685
        %1743 = vmatprep.subr.mxu0 %v1690
        %1744 = vmatpush1.msra.mxu0 %v1689
        %1745 = vmatprep.subr.mxu0 %v1694
        %1746 = vmatpush1.msra.mxu0 %v1693
        %1747 = vmatprep.subr.mxu0 %v1698
        %1748 = vmatpush1.msra.mxu0 %v1697
        %1749 = vmatprep.subr.mxu0 %v1702
        %1750 = vmatpush1.msra.mxu0 %v1701
        %1751 = vmatprep.subr.mxu0 %v1706
        %1752 = vmatpush1.msra.mxu0 %v1705
        %1753 = vmatprep.subr.mxu0 %v1710
        %1754 = vmatpush1.msra.mxu0 %v1709
        %1755 = vmatprep.subr.mxu0 %v1714
        %1756 = vmatpush1.msra.mxu0 %v1713
        %1757 = vmatprep.subr.mxu0 %v1718
        %1758 = vmatpush1.msra.mxu0 %v1717
        %1759 = vmatprep.subr.mxu0 %v1722
        %1760 = vmatpush1.msra.mxu0 %v1721
        %1761 = vmatprep.subr.mxu0 %v1726
        %1762 = vmatpush1.msra.mxu0 %v1725
        %1763 = vmatprep.subr.mxu0 %v1730
        %1764 = vmatpush1.msra.mxu0 %v1729
        %1765 = vmatprep.subr.mxu0 0.0
        %1766 = vmatpush1.msra.mxu0 0.0
        %1767 = vmatprep.subr.mxu0 0.0
        %1768 = vmatpush1.msra.mxu0 0.0
        %1769 = vmatprep.subr.mxu0 0.0
        %1770 = vmatpush1.msra.mxu0 0.0
        %1771 = vmatprep.subr.mxu0 0.0
        %1772 = vmatpush1.msra.mxu0 0.0
        %1773 = vmatprep.subr.mxu0 0.0
        %1774 = vmatpush1.msra.mxu0 0.0
        %1775 = vmatprep.subr.mxu0 0.0
        %1776 = vmatpush1.msra.mxu0 0.0
        %1777 = vmatprep.subr.mxu0 0.0
        %1778 = vmatpush1.msra.mxu0 0.0
        %1779 = vmatprep.subr.mxu0 0.0
        %1780 = vmatpush1.msra.mxu0 0.0
        %1781 = vmatprep.subr.mxu0 0.0
        %1782 = vmatpush1.msra.mxu0 0.0
        %1783 = vmatprep.subr.mxu0 0.0
        %1784 = vmatpush1.msra.mxu0 0.0
        %1785 = vmatprep.subr.mxu0 0.0
        %1786 = vmatpush1.msra.mxu0 0.0
        %1787 = vmatprep.subr.mxu0 0.0
        %1788 = vmatpush1.msra.mxu0 0.0
        %1789 = vmatprep.subr.mxu0 0.0
        %1790 = vmatpush1.msra.mxu0 0.0
        %1791 = vmatprep.subr.mxu0 0.0
        %1792 = vmatpush1.msra.mxu0 0.0
        %1793 = vmatprep.subr.mxu0 0.0
        %1794 = vmatpush1.msra.mxu0 0.0
        %1795 = vmatprep.subr.mxu0 0.0
        %1796 = vmatpush1.msra.mxu0 0.0
        %1797 = vmatprep.mubr.f32.mxu0 0.0
        %1798 = vmatmul.mubr.f32.gmra.mrb[0].mxu0 %v1663
        %v1799 = vpop.f32.mrb[0].mxu0
        %v1800 = vadd.f32 0.0, %v1799
        %v1801 = vpop.f32.mrb[0].mxu0
        %v1802 = vadd.f32 0.0, %v1801
        %1803 = vdwg.mxu0
        %1804 = vmatprep.subr.mxu0 %v1672
        %1805 = vmatpush1.msra.mxu0 %v1671
        %1806 = vmatprep.subr.mxu0 %v1676
        %1807 = vmatpush1.msra.mxu0 %v1675
        %1808 = vmatprep.subr.mxu0 %v1680
        %1809 = vmatpush1.msra.mxu0 %v1679
        %1810 = vmatprep.subr.mxu0 %v1684
        %1811 = vmatpush1.msra.mxu0 %v1683
        %1812 = vmatprep.subr.mxu0 %v1688
        %1813 = vmatpush1.msra.mxu0 %v1687
        %1814 = vmatprep.subr.mxu0 %v1692
        %1815 = vmatpush1.msra.mxu0 %v1691
        %1816 = vmatprep.subr.mxu0 %v1696
        %1817 = vmatpush1.msra.mxu0 %v1695
        %1818 = vmatprep.subr.mxu0 %v1700
        %1819 = vmatpush1.msra.mxu0 %v1699
        %1820 = vmatprep.subr.mxu0 %v1704
        %1821 = vmatpush1.msra.mxu0 %v1703
        %1822 = vmatprep.subr.mxu0 %v1708
        %1823 = vmatpush1.msra.mxu0 %v1707
        %1824 = vmatprep.subr.mxu0 %v1712
        %1825 = vmatpush1.msra.mxu0 %v1711
        %1826 = vmatprep.subr.mxu0 %v1716
        %1827 = vmatpush1.msra.mxu0 %v1715
        %1828 = vmatprep.subr.mxu0 %v1720
        %1829 = vmatpush1.msra.mxu0 %v1719
        %1830 = vmatprep.subr.mxu0 %v1724
        %1831 = vmatpush1.msra.mxu0 %v1723
        %1832 = vmatprep.subr.mxu0 %v1728
        %1833 = vmatpush1.msra.mxu0 %v1727
        %1834 = vmatprep.subr.mxu0 %v1732
        %1835 = vmatpush1.msra.mxu0 %v1731
        %1836 = vmatprep.subr.mxu0 0.0
        %1837 = vmatpush1.msra.mxu0 0.0
        %1838 = vmatprep.subr.mxu0 0.0
        %1839 = vmatpush1.msra.mxu0 0.0
        %1840 = vmatprep.subr.mxu0 0.0
        %1841 = vmatpush1.msra.mxu0 0.0
        %1842 = vmatprep.subr.mxu0 0.0
        %1843 = vmatpush1.msra.mxu0 0.0
        %1844 = vmatprep.subr.mxu0 0.0
        %1845 = vmatpush1.msra.mxu0 0.0
        %1846 = vmatprep.subr.mxu0 0.0
        %1847 = vmatpush1.msra.mxu0 0.0
        %1848 = vmatprep.subr.mxu0 0.0
        %1849 = vmatpush1.msra.mxu0 0.0
        %1850 = vmatprep.subr.mxu0 0.0
        %1851 = vmatpush1.msra.mxu0 0.0
        %1852 = vmatprep.subr.mxu0 0.0
        %1853 = vmatpush1.msra.mxu0 0.0
        %1854 = vmatprep.subr.mxu0 0.0
        %1855 = vmatpush1.msra.mxu0 0.0
        %1856 = vmatprep.subr.mxu0 0.0
        %1857 = vmatpush1.msra.mxu0 0.0
        %1858 = vmatprep.subr.mxu0 0.0
        %1859 = vmatpush1.msra.mxu0 0.0
        %1860 = vmatprep.subr.mxu0 0.0
        %1861 = vmatpush1.msra.mxu0 0.0
        %1862 = vmatprep.subr.mxu0 0.0
        %1863 = vmatpush1.msra.mxu0 0.0
        %1864 = vmatprep.subr.mxu0 0.0
        %1865 = vmatpush1.msra.mxu0 0.0
        %1866 = vmatprep.subr.mxu0 0.0
        %1867 = vmatpush1.msra.mxu0 0.0
        %1868 = vmatprep.mubr.f32.mxu0 0.0
        %1869 = vmatmul.mubr.f32.gmra.mrb[0].mxu0 %v1663
        %v1870 = vpop.f32.mrb[0].mxu0
        %v1871 = vadd.f32 0.0, %v1870
        %v1872 = vpop.f32.mrb[0].mxu0
        %v1873 = vadd.f32 0.0, %v1872
        %1874 = vdwg.mxu0
        %v1875 = vadd.f32 %v1665, %v1800
        %v1876 = vadd.f32 %v1666, %v1802
        %v1877 = vadd.f32 %v1667, %v1871
        %v1878 = vadd.f32 %v1668, %v1873
        %v1879 = vxor.u32 %v1875, 2147483648
        %v1880 = vxor.u32 %v1876, 2147483648
        %v1881 = vxor.u32 %v1877, 2147483648
        %v1882 = vmul.f32 %v1879, 1.442695
        %v1883 = vpow.pop %v1882
        %v1884 = vmul.f32 %v1880, 1.442695
        %v1885 = vpow.pop %v1884
        %v1886 = vmul.f32 %v1881, 1.442695
        %v1887 = vpow.pop %v1886
        %v1888 = vadd.f32 %v1883, 1.0
        %v1889 = vadd.f32 %v1885, 1.0
        %v1890 = vadd.f32 %v1887, 1.0
        %v1891 = vrcp.pop %v1888
        %v1892 = vmul.f32 1.0, %v1891
        %v1893 = vrcp.pop %v1889
        %v1894 = vmul.f32 1.0, %v1893
        %v1895 = vrcp.pop %v1890
        %v1896 = vmul.f32 1.0, %v1895
        %v1897 = vtanh.pop %v1878
        %v1898 = vmul.f32 %v1894, %v1661
        %v1899 = vmul.f32 %v1892, %v1897
        %v1900 = vadd.f32 %v1898, %v1899
        %v1901 = vtanh.pop %v1900
        %v1902 = vmul.f32 %v1896, %v1901
        %1903 = vst [vmem:[#allocation5 + $0x20] sm:$0xff] %v1902
        %v1904 = vld [vmem:[#allocation2 + $0xa0] sm:$0xff]
        %v1905 = vld [vmem:[#allocation2 + $0xa8] sm:$0xff]
        %v1906 = vld [vmem:[#allocation2 + $0xb0] sm:$0xff]
        %v1907 = vld [vmem:[#allocation2 + $0xb8] sm:$0xff]
        %v1908 = vld [vmem:[#allocation12] sm:$0xff]
        %v1909 = vld [vmem:[#allocation12 + $0x8] sm:$0xff]
        %v1910 = vld [vmem:[#allocation12 + $0x10] sm:$0xff]
        %v1911 = vld [vmem:[#allocation12 + $0x18] sm:$0xff]
        %v1912 = vld [vmem:[#allocation12 + $0x20] sm:$0xff]
        %v1913 = vld [vmem:[#allocation12 + $0x28] sm:$0xff]
        %v1914 = vld [vmem:[#allocation12 + $0x30] sm:$0xff]
        %v1915 = vld [vmem:[#allocation12 + $0x38] sm:$0xff]
        %v1916 = vld [vmem:[#allocation12 + $0x40] sm:$0xff]
        %v1917 = vld [vmem:[#allocation12 + $0x48] sm:$0xff]
        %v1918 = vld [vmem:[#allocation12 + $0x50] sm:$0xff]
        %v1919 = vld [vmem:[#allocation12 + $0x58] sm:$0xff]
        %v1920 = vld [vmem:[#allocation12 + $0x60] sm:$0xff]
        %v1921 = vld [vmem:[#allocation12 + $0x68] sm:$0xff]
        %v1922 = vld [vmem:[#allocation12 + $0x70] sm:$0xff]
        %v1923 = vld [vmem:[#allocation12 + $0x78] sm:$0xff]
        %v1924 = vld [vmem:[#allocation12 + $0x80] sm:$0xff]
        %v1925 = vld [vmem:[#allocation12 + $0x88] sm:$0xff]
        %v1926 = vld [vmem:[#allocation12 + $0x90] sm:$0xff]
        %v1927 = vld [vmem:[#allocation12 + $0x98] sm:$0xff]
        %v1928 = vld [vmem:[#allocation12 + $0xa0] sm:$0xff]
        %v1929 = vld [vmem:[#allocation12 + $0xa8] sm:$0xff]
        %v1930 = vld [vmem:[#allocation12 + $0xb0] sm:$0xff]
        %v1931 = vld [vmem:[#allocation12 + $0xb8] sm:$0xff]
        %v1932 = vld [vmem:[#allocation12 + $0xc0] sm:$0xff]
        %v1933 = vld [vmem:[#allocation12 + $0xc8] sm:$0xff]
        %v1934 = vld [vmem:[#allocation12 + $0xd0] sm:$0xff]
        %v1935 = vld [vmem:[#allocation12 + $0xd8] sm:$0xff]
        %v1936 = vld [vmem:[#allocation12 + $0xe0] sm:$0xff]
        %v1937 = vld [vmem:[#allocation12 + $0xe8] sm:$0xff]
        %v1938 = vld [vmem:[#allocation12 + $0xf0] sm:$0xff]
        %v1939 = vld [vmem:[#allocation12 + $0xf8] sm:$0xff]
        %v1940 = vld [vmem:[#allocation12 + $0x100] sm:$0xff]
        %v1941 = vld [vmem:[#allocation12 + $0x108] sm:$0xff]
        %v1942 = vld [vmem:[#allocation12 + $0x110] sm:$0xff]
        %v1943 = vld [vmem:[#allocation12 + $0x118] sm:$0xff]
        %v1944 = vld [vmem:[#allocation12 + $0x120] sm:$0xff]
        %v1945 = vld [vmem:[#allocation12 + $0x128] sm:$0xff]
        %v1946 = vld [vmem:[#allocation12 + $0x130] sm:$0xff]
        %v1947 = vld [vmem:[#allocation12 + $0x138] sm:$0xff]
        %v1948 = vld [vmem:[#allocation12 + $0x140] sm:$0xff]
        %v1949 = vld [vmem:[#allocation12 + $0x148] sm:$0xff]
        %v1950 = vld [vmem:[#allocation12 + $0x150] sm:$0xff]
        %v1951 = vld [vmem:[#allocation12 + $0x158] sm:$0xff]
        %v1952 = vld [vmem:[#allocation12 + $0x160] sm:$0xff]
        %v1953 = vld [vmem:[#allocation12 + $0x168] sm:$0xff]
        %v1954 = vld [vmem:[#allocation12 + $0x170] sm:$0xff]
        %v1955 = vld [vmem:[#allocation12 + $0x178] sm:$0xff]
        %v1956 = vld [vmem:[#allocation12 + $0x180] sm:$0xff]
        %v1957 = vld [vmem:[#allocation12 + $0x188] sm:$0xff]
        %v1958 = vld [vmem:[#allocation12 + $0x190] sm:$0xff]
        %v1959 = vld [vmem:[#allocation12 + $0x198] sm:$0xff]
        %v1960 = vld [vmem:[#allocation12 + $0x1a0] sm:$0xff]
        %v1961 = vld [vmem:[#allocation12 + $0x1a8] sm:$0xff]
        %v1962 = vld [vmem:[#allocation12 + $0x1b0] sm:$0xff]
        %v1963 = vld [vmem:[#allocation12 + $0x1b8] sm:$0xff]
        %v1964 = vld [vmem:[#allocation12 + $0x1c0] sm:$0xff]
        %v1965 = vld [vmem:[#allocation12 + $0x1c8] sm:$0xff]
        %v1966 = vld [vmem:[#allocation12 + $0x1d0] sm:$0xff]
        %v1967 = vld [vmem:[#allocation12 + $0x1d8] sm:$0xff]
        %v1968 = vld [vmem:[#allocation12 + $0x1e0] sm:$0xff]
        %v1969 = vld [vmem:[#allocation12 + $0x1e8] sm:$0xff]
        %v1970 = vld [vmem:[#allocation12 + $0x1f0] sm:$0xff]
        %v1971 = vld [vmem:[#allocation12 + $0x1f8] sm:$0xff]
        %1972 = vmatprep.subr.mxu0 %v1909
        %1973 = vmatpush1.msra.mxu0 %v1908
        %1974 = vmatprep.subr.mxu0 %v1913
        %1975 = vmatpush1.msra.mxu0 %v1912
        %1976 = vmatprep.subr.mxu0 %v1917
        %1977 = vmatpush1.msra.mxu0 %v1916
        %1978 = vmatprep.subr.mxu0 %v1921
        %1979 = vmatpush1.msra.mxu0 %v1920
        %1980 = vmatprep.subr.mxu0 %v1925
        %1981 = vmatpush1.msra.mxu0 %v1924
        %1982 = vmatprep.subr.mxu0 %v1929
        %1983 = vmatpush1.msra.mxu0 %v1928
        %1984 = vmatprep.subr.mxu0 %v1933
        %1985 = vmatpush1.msra.mxu0 %v1932
        %1986 = vmatprep.subr.mxu0 %v1937
        %1987 = vmatpush1.msra.mxu0 %v1936
        %1988 = vmatprep.subr.mxu0 %v1941
        %1989 = vmatpush1.msra.mxu0 %v1940
        %1990 = vmatprep.subr.mxu0 %v1945
        %1991 = vmatpush1.msra.mxu0 %v1944
        %1992 = vmatprep.subr.mxu0 %v1949
        %1993 = vmatpush1.msra.mxu0 %v1948
        %1994 = vmatprep.subr.mxu0 %v1953
        %1995 = vmatpush1.msra.mxu0 %v1952
        %1996 = vmatprep.subr.mxu0 %v1957
        %1997 = vmatpush1.msra.mxu0 %v1956
        %1998 = vmatprep.subr.mxu0 %v1961
        %1999 = vmatpush1.msra.mxu0 %v1960
        %2000 = vmatprep.subr.mxu0 %v1965
        %2001 = vmatpush1.msra.mxu0 %v1964
        %2002 = vmatprep.subr.mxu0 %v1969
        %2003 = vmatpush1.msra.mxu0 %v1968
        %2004 = vmatprep.subr.mxu0 0.0
        %2005 = vmatpush1.msra.mxu0 0.0
        %2006 = vmatprep.subr.mxu0 0.0
        %2007 = vmatpush1.msra.mxu0 0.0
        %2008 = vmatprep.subr.mxu0 0.0
        %2009 = vmatpush1.msra.mxu0 0.0
        %2010 = vmatprep.subr.mxu0 0.0
        %2011 = vmatpush1.msra.mxu0 0.0
        %2012 = vmatprep.subr.mxu0 0.0
        %2013 = vmatpush1.msra.mxu0 0.0
        %2014 = vmatprep.subr.mxu0 0.0
        %2015 = vmatpush1.msra.mxu0 0.0
        %2016 = vmatprep.subr.mxu0 0.0
        %2017 = vmatpush1.msra.mxu0 0.0
        %2018 = vmatprep.subr.mxu0 0.0
        %2019 = vmatpush1.msra.mxu0 0.0
        %2020 = vmatprep.subr.mxu0 0.0
        %2021 = vmatpush1.msra.mxu0 0.0
        %2022 = vmatprep.subr.mxu0 0.0
        %2023 = vmatpush1.msra.mxu0 0.0
        %2024 = vmatprep.subr.mxu0 0.0
        %2025 = vmatpush1.msra.mxu0 0.0
        %2026 = vmatprep.subr.mxu0 0.0
        %2027 = vmatpush1.msra.mxu0 0.0
        %2028 = vmatprep.subr.mxu0 0.0
        %2029 = vmatpush1.msra.mxu0 0.0
        %2030 = vmatprep.subr.mxu0 0.0
        %2031 = vmatpush1.msra.mxu0 0.0
        %2032 = vmatprep.subr.mxu0 0.0
        %2033 = vmatpush1.msra.mxu0 0.0
        %2034 = vmatprep.subr.mxu0 0.0
        %2035 = vmatpush1.msra.mxu0 0.0
        %2036 = vmatprep.mubr.f32.mxu0 0.0
        %2037 = vmatmul.mubr.f32.gmra.mrb[0].mxu0 %v1902
        %v2038 = vpop.f32.mrb[0].mxu0
        %v2039 = vadd.f32 0.0, %v2038
        %v2040 = vpop.f32.mrb[0].mxu0
        %v2041 = vadd.f32 0.0, %v2040
        %2042 = vdwg.mxu0
        %2043 = vmatprep.subr.mxu0 %v1911
        %2044 = vmatpush1.msra.mxu0 %v1910
        %2045 = vmatprep.subr.mxu0 %v1915
        %2046 = vmatpush1.msra.mxu0 %v1914
        %2047 = vmatprep.subr.mxu0 %v1919
        %2048 = vmatpush1.msra.mxu0 %v1918
        %2049 = vmatprep.subr.mxu0 %v1923
        %2050 = vmatpush1.msra.mxu0 %v1922
        %2051 = vmatprep.subr.mxu0 %v1927
        %2052 = vmatpush1.msra.mxu0 %v1926
        %2053 = vmatprep.subr.mxu0 %v1931
        %2054 = vmatpush1.msra.mxu0 %v1930
        %2055 = vmatprep.subr.mxu0 %v1935
        %2056 = vmatpush1.msra.mxu0 %v1934
        %2057 = vmatprep.subr.mxu0 %v1939
        %2058 = vmatpush1.msra.mxu0 %v1938
        %2059 = vmatprep.subr.mxu0 %v1943
        %2060 = vmatpush1.msra.mxu0 %v1942
        %2061 = vmatprep.subr.mxu0 %v1947
        %2062 = vmatpush1.msra.mxu0 %v1946
        %2063 = vmatprep.subr.mxu0 %v1951
        %2064 = vmatpush1.msra.mxu0 %v1950
        %2065 = vmatprep.subr.mxu0 %v1955
        %2066 = vmatpush1.msra.mxu0 %v1954
        %2067 = vmatprep.subr.mxu0 %v1959
        %2068 = vmatpush1.msra.mxu0 %v1958
        %2069 = vmatprep.subr.mxu0 %v1963
        %2070 = vmatpush1.msra.mxu0 %v1962
        %2071 = vmatprep.subr.mxu0 %v1967
        %2072 = vmatpush1.msra.mxu0 %v1966
        %2073 = vmatprep.subr.mxu0 %v1971
        %2074 = vmatpush1.msra.mxu0 %v1970
        %2075 = vmatprep.subr.mxu0 0.0
        %2076 = vmatpush1.msra.mxu0 0.0
        %2077 = vmatprep.subr.mxu0 0.0
        %2078 = vmatpush1.msra.mxu0 0.0
        %2079 = vmatprep.subr.mxu0 0.0
        %2080 = vmatpush1.msra.mxu0 0.0
        %2081 = vmatprep.subr.mxu0 0.0
        %2082 = vmatpush1.msra.mxu0 0.0
        %2083 = vmatprep.subr.mxu0 0.0
        %2084 = vmatpush1.msra.mxu0 0.0
        %2085 = vmatprep.subr.mxu0 0.0
        %2086 = vmatpush1.msra.mxu0 0.0
        %2087 = vmatprep.subr.mxu0 0.0
        %2088 = vmatpush1.msra.mxu0 0.0
        %2089 = vmatprep.subr.mxu0 0.0
        %2090 = vmatpush1.msra.mxu0 0.0
        %2091 = vmatprep.subr.mxu0 0.0
        %2092 = vmatpush1.msra.mxu0 0.0
        %2093 = vmatprep.subr.mxu0 0.0
        %2094 = vmatpush1.msra.mxu0 0.0
        %2095 = vmatprep.subr.mxu0 0.0
        %2096 = vmatpush1.msra.mxu0 0.0
        %2097 = vmatprep.subr.mxu0 0.0
        %2098 = vmatpush1.msra.mxu0 0.0
        %2099 = vmatprep.subr.mxu0 0.0
        %2100 = vmatpush1.msra.mxu0 0.0
        %2101 = vmatprep.subr.mxu0 0.0
        %2102 = vmatpush1.msra.mxu0 0.0
        %2103 = vmatprep.subr.mxu0 0.0
        %2104 = vmatpush1.msra.mxu0 0.0
        %2105 = vmatprep.subr.mxu0 0.0
        %2106 = vmatpush1.msra.mxu0 0.0
        %2107 = vmatprep.mubr.f32.mxu0 0.0
        %2108 = vmatmul.mubr.f32.gmra.mrb[0].mxu0 %v1902
        %v2109 = vpop.f32.mrb[0].mxu0
        %v2110 = vadd.f32 0.0, %v2109
        %v2111 = vpop.f32.mrb[0].mxu0
        %v2112 = vadd.f32 0.0, %v2111
        %2113 = vdwg.mxu0
        %v2114 = vadd.f32 %v1904, %v2039
        %v2115 = vadd.f32 %v1905, %v2041
        %v2116 = vadd.f32 %v1906, %v2110
        %v2117 = vadd.f32 %v1907, %v2112
        %v2118 = vxor.u32 %v2114, 2147483648
        %v2119 = vxor.u32 %v2115, 2147483648
        %v2120 = vxor.u32 %v2116, 2147483648
        %v2121 = vmul.f32 %v2118, 1.442695
        %v2122 = vpow.pop %v2121
        %v2123 = vmul.f32 %v2119, 1.442695
        %v2124 = vpow.pop %v2123
        %v2125 = vmul.f32 %v2120, 1.442695
        %v2126 = vpow.pop %v2125
        %v2127 = vadd.f32 %v2122, 1.0
        %v2128 = vadd.f32 %v2124, 1.0
        %v2129 = vadd.f32 %v2126, 1.0
        %v2130 = vrcp.pop %v2127
        %v2131 = vmul.f32 1.0, %v2130
        %v2132 = vrcp.pop %v2128
        %v2133 = vmul.f32 1.0, %v2132
        %v2134 = vrcp.pop %v2129
        %v2135 = vmul.f32 1.0, %v2134
        %v2136 = vtanh.pop %v2117
        %v2137 = vmul.f32 %v2133, %v1900
        %v2138 = vmul.f32 %v2131, %v2136
        %v2139 = vadd.f32 %v2137, %v2138
        %v2140 = vtanh.pop %v2139
        %v2141 = vmul.f32 %v2135, %v2140
        %2142 = vst [vmem:[#allocation5 + $0x28] sm:$0xff] %v2141
        %v2143 = vld [vmem:[#allocation2 + $0xc0] sm:$0xff]
        %v2144 = vld [vmem:[#allocation2 + $0xc8] sm:$0xff]
        %v2145 = vld [vmem:[#allocation2 + $0xd0] sm:$0xff]
        %v2146 = vld [vmem:[#allocation2 + $0xd8] sm:$0xff]
        %v2147 = vld [vmem:[#allocation12] sm:$0xff]
        %v2148 = vld [vmem:[#allocation12 + $0x8] sm:$0xff]
        %v2149 = vld [vmem:[#allocation12 + $0x10] sm:$0xff]
        %v2150 = vld [vmem:[#allocation12 + $0x18] sm:$0xff]
        %v2151 = vld [vmem:[#allocation12 + $0x20] sm:$0xff]
        %v2152 = vld [vmem:[#allocation12 + $0x28] sm:$0xff]
        %v2153 = vld [vmem:[#allocation12 + $0x30] sm:$0xff]
        %v2154 = vld [vmem:[#allocation12 + $0x38] sm:$0xff]
        %v2155 = vld [vmem:[#allocation12 + $0x40] sm:$0xff]
        %v2156 = vld [vmem:[#allocation12 + $0x48] sm:$0xff]
        %v2157 = vld [vmem:[#allocation12 + $0x50] sm:$0xff]
        %v2158 = vld [vmem:[#allocation12 + $0x58] sm:$0xff]
        %v2159 = vld [vmem:[#allocation12 + $0x60] sm:$0xff]
        %v2160 = vld [vmem:[#allocation12 + $0x68] sm:$0xff]
        %v2161 = vld [vmem:[#allocation12 + $0x70] sm:$0xff]
        %v2162 = vld [vmem:[#allocation12 + $0x78] sm:$0xff]
        %v2163 = vld [vmem:[#allocation12 + $0x80] sm:$0xff]
        %v2164 = vld [vmem:[#allocation12 + $0x88] sm:$0xff]
        %v2165 = vld [vmem:[#allocation12 + $0x90] sm:$0xff]
        %v2166 = vld [vmem:[#allocation12 + $0x98] sm:$0xff]
        %v2167 = vld [vmem:[#allocation12 + $0xa0] sm:$0xff]
        %v2168 = vld [vmem:[#allocation12 + $0xa8] sm:$0xff]
        %v2169 = vld [vmem:[#allocation12 + $0xb0] sm:$0xff]
        %v2170 = vld [vmem:[#allocation12 + $0xb8] sm:$0xff]
        %v2171 = vld [vmem:[#allocation12 + $0xc0] sm:$0xff]
        %v2172 = vld [vmem:[#allocation12 + $0xc8] sm:$0xff]
        %v2173 = vld [vmem:[#allocation12 + $0xd0] sm:$0xff]
        %v2174 = vld [vmem:[#allocation12 + $0xd8] sm:$0xff]
        %v2175 = vld [vmem:[#allocation12 + $0xe0] sm:$0xff]
        %v2176 = vld [vmem:[#allocation12 + $0xe8] sm:$0xff]
        %v2177 = vld [vmem:[#allocation12 + $0xf0] sm:$0xff]
        %v2178 = vld [vmem:[#allocation12 + $0xf8] sm:$0xff]
        %v2179 = vld [vmem:[#allocation12 + $0x100] sm:$0xff]
        %v2180 = vld [vmem:[#allocation12 + $0x108] sm:$0xff]
        %v2181 = vld [vmem:[#allocation12 + $0x110] sm:$0xff]
        %v2182 = vld [vmem:[#allocation12 + $0x118] sm:$0xff]
        %v2183 = vld [vmem:[#allocation12 + $0x120] sm:$0xff]
        %v2184 = vld [vmem:[#allocation12 + $0x128] sm:$0xff]
        %v2185 = vld [vmem:[#allocation12 + $0x130] sm:$0xff]
        %v2186 = vld [vmem:[#allocation12 + $0x138] sm:$0xff]
        %v2187 = vld [vmem:[#allocation12 + $0x140] sm:$0xff]
        %v2188 = vld [vmem:[#allocation12 + $0x148] sm:$0xff]
        %v2189 = vld [vmem:[#allocation12 + $0x150] sm:$0xff]
        %v2190 = vld [vmem:[#allocation12 + $0x158] sm:$0xff]
        %v2191 = vld [vmem:[#allocation12 + $0x160] sm:$0xff]
        %v2192 = vld [vmem:[#allocation12 + $0x168] sm:$0xff]
        %v2193 = vld [vmem:[#allocation12 + $0x170] sm:$0xff]
        %v2194 = vld [vmem:[#allocation12 + $0x178] sm:$0xff]
        %v2195 = vld [vmem:[#allocation12 + $0x180] sm:$0xff]
        %v2196 = vld [vmem:[#allocation12 + $0x188] sm:$0xff]
        %v2197 = vld [vmem:[#allocation12 + $0x190] sm:$0xff]
        %v2198 = vld [vmem:[#allocation12 + $0x198] sm:$0xff]
        %v2199 = vld [vmem:[#allocation12 + $0x1a0] sm:$0xff]
        %v2200 = vld [vmem:[#allocation12 + $0x1a8] sm:$0xff]
        %v2201 = vld [vmem:[#allocation12 + $0x1b0] sm:$0xff]
        %v2202 = vld [vmem:[#allocation12 + $0x1b8] sm:$0xff]
        %v2203 = vld [vmem:[#allocation12 + $0x1c0] sm:$0xff]
        %v2204 = vld [vmem:[#allocation12 + $0x1c8] sm:$0xff]
        %v2205 = vld [vmem:[#allocation12 + $0x1d0] sm:$0xff]
        %v2206 = vld [vmem:[#allocation12 + $0x1d8] sm:$0xff]
        %v2207 = vld [vmem:[#allocation12 + $0x1e0] sm:$0xff]
        %v2208 = vld [vmem:[#allocation12 + $0x1e8] sm:$0xff]
        %v2209 = vld [vmem:[#allocation12 + $0x1f0] sm:$0xff]
        %v2210 = vld [vmem:[#allocation12 + $0x1f8] sm:$0xff]
        %2211 = vmatprep.subr.mxu0 %v2148
        %2212 = vmatpush1.msra.mxu0 %v2147
        %2213 = vmatprep.subr.mxu0 %v2152
        %2214 = vmatpush1.msra.mxu0 %v2151
        %2215 = vmatprep.subr.mxu0 %v2156
        %2216 = vmatpush1.msra.mxu0 %v2155
        %2217 = vmatprep.subr.mxu0 %v2160
        %2218 = vmatpush1.msra.mxu0 %v2159
        %2219 = vmatprep.subr.mxu0 %v2164
        %2220 = vmatpush1.msra.mxu0 %v2163
        %2221 = vmatprep.subr.mxu0 %v2168
        %2222 = vmatpush1.msra.mxu0 %v2167
        %2223 = vmatprep.subr.mxu0 %v2172
        %2224 = vmatpush1.msra.mxu0 %v2171
        %2225 = vmatprep.subr.mxu0 %v2176
        %2226 = vmatpush1.msra.mxu0 %v2175
        %2227 = vmatprep.subr.mxu0 %v2180
        %2228 = vmatpush1.msra.mxu0 %v2179
        %2229 = vmatprep.subr.mxu0 %v2184
        %2230 = vmatpush1.msra.mxu0 %v2183
        %2231 = vmatprep.subr.mxu0 %v2188
        %2232 = vmatpush1.msra.mxu0 %v2187
        %2233 = vmatprep.subr.mxu0 %v2192
        %2234 = vmatpush1.msra.mxu0 %v2191
        %2235 = vmatprep.subr.mxu0 %v2196
        %2236 = vmatpush1.msra.mxu0 %v2195
        %2237 = vmatprep.subr.mxu0 %v2200
        %2238 = vmatpush1.msra.mxu0 %v2199
        %2239 = vmatprep.subr.mxu0 %v2204
        %2240 = vmatpush1.msra.mxu0 %v2203
        %2241 = vmatprep.subr.mxu0 %v2208
        %2242 = vmatpush1.msra.mxu0 %v2207
        %2243 = vmatprep.subr.mxu0 0.0
        %2244 = vmatpush1.msra.mxu0 0.0
        %2245 = vmatprep.subr.mxu0 0.0
        %2246 = vmatpush1.msra.mxu0 0.0
        %2247 = vmatprep.subr.mxu0 0.0
        %2248 = vmatpush1.msra.mxu0 0.0
        %2249 = vmatprep.subr.mxu0 0.0
        %2250 = vmatpush1.msra.mxu0 0.0
        %2251 = vmatprep.subr.mxu0 0.0
        %2252 = vmatpush1.msra.mxu0 0.0
        %2253 = vmatprep.subr.mxu0 0.0
        %2254 = vmatpush1.msra.mxu0 0.0
        %2255 = vmatprep.subr.mxu0 0.0
        %2256 = vmatpush1.msra.mxu0 0.0
        %2257 = vmatprep.subr.mxu0 0.0
        %2258 = vmatpush1.msra.mxu0 0.0
        %2259 = vmatprep.subr.mxu0 0.0
        %2260 = vmatpush1.msra.mxu0 0.0
        %2261 = vmatprep.subr.mxu0 0.0
        %2262 = vmatpush1.msra.mxu0 0.0
        %2263 = vmatprep.subr.mxu0 0.0
        %2264 = vmatpush1.msra.mxu0 0.0
        %2265 = vmatprep.subr.mxu0 0.0
        %2266 = vmatpush1.msra.mxu0 0.0
        %2267 = vmatprep.subr.mxu0 0.0
        %2268 = vmatpush1.msra.mxu0 0.0
        %2269 = vmatprep.subr.mxu0 0.0
        %2270 = vmatpush1.msra.mxu0 0.0
        %2271 = vmatprep.subr.mxu0 0.0
        %2272 = vmatpush1.msra.mxu0 0.0
        %2273 = vmatprep.subr.mxu0 0.0
        %2274 = vmatpush1.msra.mxu0 0.0
        %2275 = vmatprep.mubr.f32.mxu0 0.0
        %2276 = vmatmul.mubr.f32.gmra.mrb[0].mxu0 %v2141
        %v2277 = vpop.f32.mrb[0].mxu0
        %v2278 = vadd.f32 0.0, %v2277
        %v2279 = vpop.f32.mrb[0].mxu0
        %v2280 = vadd.f32 0.0, %v2279
        %2281 = vdwg.mxu0
        %2282 = vmatprep.subr.mxu0 %v2150
        %2283 = vmatpush1.msra.mxu0 %v2149
        %2284 = vmatprep.subr.mxu0 %v2154
        %2285 = vmatpush1.msra.mxu0 %v2153
        %2286 = vmatprep.subr.mxu0 %v2158
        %2287 = vmatpush1.msra.mxu0 %v2157
        %2288 = vmatprep.subr.mxu0 %v2162
        %2289 = vmatpush1.msra.mxu0 %v2161
        %2290 = vmatprep.subr.mxu0 %v2166
        %2291 = vmatpush1.msra.mxu0 %v2165
        %2292 = vmatprep.subr.mxu0 %v2170
        %2293 = vmatpush1.msra.mxu0 %v2169
        %2294 = vmatprep.subr.mxu0 %v2174
        %2295 = vmatpush1.msra.mxu0 %v2173
        %2296 = vmatprep.subr.mxu0 %v2178
        %2297 = vmatpush1.msra.mxu0 %v2177
        %2298 = vmatprep.subr.mxu0 %v2182
        %2299 = vmatpush1.msra.mxu0 %v2181
        %2300 = vmatprep.subr.mxu0 %v2186
        %2301 = vmatpush1.msra.mxu0 %v2185
        %2302 = vmatprep.subr.mxu0 %v2190
        %2303 = vmatpush1.msra.mxu0 %v2189
        %2304 = vmatprep.subr.mxu0 %v2194
        %2305 = vmatpush1.msra.mxu0 %v2193
        %2306 = vmatprep.subr.mxu0 %v2198
        %2307 = vmatpush1.msra.mxu0 %v2197
        %2308 = vmatprep.subr.mxu0 %v2202
        %2309 = vmatpush1.msra.mxu0 %v2201
        %2310 = vmatprep.subr.mxu0 %v2206
        %2311 = vmatpush1.msra.mxu0 %v2205
        %2312 = vmatprep.subr.mxu0 %v2210
        %2313 = vmatpush1.msra.mxu0 %v2209
        %2314 = vmatprep.subr.mxu0 0.0
        %2315 = vmatpush1.msra.mxu0 0.0
        %2316 = vmatprep.subr.mxu0 0.0
        %2317 = vmatpush1.msra.mxu0 0.0
        %2318 = vmatprep.subr.mxu0 0.0
        %2319 = vmatpush1.msra.mxu0 0.0
        %2320 = vmatprep.subr.mxu0 0.0
        %2321 = vmatpush1.msra.mxu0 0.0
        %2322 = vmatprep.subr.mxu0 0.0
        %2323 = vmatpush1.msra.mxu0 0.0
        %2324 = vmatprep.subr.mxu0 0.0
        %2325 = vmatpush1.msra.mxu0 0.0
        %2326 = vmatprep.subr.mxu0 0.0
        %2327 = vmatpush1.msra.mxu0 0.0
        %2328 = vmatprep.subr.mxu0 0.0
        %2329 = vmatpush1.msra.mxu0 0.0
        %2330 = vmatprep.subr.mxu0 0.0
        %2331 = vmatpush1.msra.mxu0 0.0
        %2332 = vmatprep.subr.mxu0 0.0
        %2333 = vmatpush1.msra.mxu0 0.0
        %2334 = vmatprep.subr.mxu0 0.0
        %2335 = vmatpush1.msra.mxu0 0.0
        %2336 = vmatprep.subr.mxu0 0.0
        %2337 = vmatpush1.msra.mxu0 0.0
        %2338 = vmatprep.subr.mxu0 0.0
        %2339 = vmatpush1.msra.mxu0 0.0
        %2340 = vmatprep.subr.mxu0 0.0
        %2341 = vmatpush1.msra.mxu0 0.0
        %2342 = vmatprep.subr.mxu0 0.0
        %2343 = vmatpush1.msra.mxu0 0.0
        %2344 = vmatprep.subr.mxu0 0.0
        %2345 = vmatpush1.msra.mxu0 0.0
        %2346 = vmatprep.mubr.f32.mxu0 0.0
        %2347 = vmatmul.mubr.f32.gmra.mrb[0].mxu0 %v2141
        %v2348 = vpop.f32.mrb[0].mxu0
        %v2349 = vadd.f32 0.0, %v2348
        %v2350 = vpop.f32.mrb[0].mxu0
        %v2351 = vadd.f32 0.0, %v2350
        %2352 = vdwg.mxu0
        %v2353 = vadd.f32 %v2143, %v2278
        %v2354 = vadd.f32 %v2144, %v2280
        %v2355 = vadd.f32 %v2145, %v2349
        %v2356 = vadd.f32 %v2146, %v2351
        %v2357 = vxor.u32 %v2353, 2147483648
        %v2358 = vxor.u32 %v2354, 2147483648
        %v2359 = vxor.u32 %v2355, 2147483648
        %v2360 = vmul.f32 %v2357, 1.442695
        %v2361 = vpow.pop %v2360
        %v2362 = vmul.f32 %v2358, 1.442695
        %v2363 = vpow.pop %v2362
        %v2364 = vmul.f32 %v2359, 1.442695
        %v2365 = vpow.pop %v2364
        %v2366 = vadd.f32 %v2361, 1.0
        %v2367 = vadd.f32 %v2363, 1.0
        %v2368 = vadd.f32 %v2365, 1.0
        %v2369 = vrcp.pop %v2366
        %v2370 = vmul.f32 1.0, %v2369
        %v2371 = vrcp.pop %v2367
        %v2372 = vmul.f32 1.0, %v2371
        %v2373 = vrcp.pop %v2368
        %v2374 = vmul.f32 1.0, %v2373
        %v2375 = vtanh.pop %v2356
        %v2376 = vmul.f32 %v2372, %v2139
        %v2377 = vmul.f32 %v2370, %v2375
        %v2378 = vadd.f32 %v2376, %v2377
        %v2379 = vtanh.pop %v2378
        %v2380 = vmul.f32 %v2374, %v2379
        %2381 = vst [vmem:[#allocation5 + $0x30] sm:$0xff] %v2380
        %v2382 = vld [vmem:[#allocation2 + $0xe0] sm:$0xff]
        %v2383 = vld [vmem:[#allocation2 + $0xe8] sm:$0xff]
        %v2384 = vld [vmem:[#allocation2 + $0xf0] sm:$0xff]
        %v2385 = vld [vmem:[#allocation2 + $0xf8] sm:$0xff]
        %v2386 = vld [vmem:[#allocation12] sm:$0xff]
        %v2387 = vld [vmem:[#allocation12 + $0x8] sm:$0xff]
        %v2388 = vld [vmem:[#allocation12 + $0x10] sm:$0xff]
        %v2389 = vld [vmem:[#allocation12 + $0x18] sm:$0xff]
        %v2390 = vld [vmem:[#allocation12 + $0x20] sm:$0xff]
        %v2391 = vld [vmem:[#allocation12 + $0x28] sm:$0xff]
        %v2392 = vld [vmem:[#allocation12 + $0x30] sm:$0xff]
        %v2393 = vld [vmem:[#allocation12 + $0x38] sm:$0xff]
        %v2394 = vld [vmem:[#allocation12 + $0x40] sm:$0xff]
        %v2395 = vld [vmem:[#allocation12 + $0x48] sm:$0xff]
        %v2396 = vld [vmem:[#allocation12 + $0x50] sm:$0xff]
        %v2397 = vld [vmem:[#allocation12 + $0x58] sm:$0xff]
        %v2398 = vld [vmem:[#allocation12 + $0x60] sm:$0xff]
        %v2399 = vld [vmem:[#allocation12 + $0x68] sm:$0xff]
        %v2400 = vld [vmem:[#allocation12 + $0x70] sm:$0xff]
        %v2401 = vld [vmem:[#allocation12 + $0x78] sm:$0xff]
        %v2402 = vld [vmem:[#allocation12 + $0x80] sm:$0xff]
        %v2403 = vld [vmem:[#allocation12 + $0x88] sm:$0xff]
        %v2404 = vld [vmem:[#allocation12 + $0x90] sm:$0xff]
        %v2405 = vld [vmem:[#allocation12 + $0x98] sm:$0xff]
        %v2406 = vld [vmem:[#allocation12 + $0xa0] sm:$0xff]
        %v2407 = vld [vmem:[#allocation12 + $0xa8] sm:$0xff]
        %v2408 = vld [vmem:[#allocation12 + $0xb0] sm:$0xff]
        %v2409 = vld [vmem:[#allocation12 + $0xb8] sm:$0xff]
        %v2410 = vld [vmem:[#allocation12 + $0xc0] sm:$0xff]
        %v2411 = vld [vmem:[#allocation12 + $0xc8] sm:$0xff]
        %v2412 = vld [vmem:[#allocation12 + $0xd0] sm:$0xff]
        %v2413 = vld [vmem:[#allocation12 + $0xd8] sm:$0xff]
        %v2414 = vld [vmem:[#allocation12 + $0xe0] sm:$0xff]
        %v2415 = vld [vmem:[#allocation12 + $0xe8] sm:$0xff]
        %v2416 = vld [vmem:[#allocation12 + $0xf0] sm:$0xff]
        %v2417 = vld [vmem:[#allocation12 + $0xf8] sm:$0xff]
        %v2418 = vld [vmem:[#allocation12 + $0x100] sm:$0xff]
        %v2419 = vld [vmem:[#allocation12 + $0x108] sm:$0xff]
        %v2420 = vld [vmem:[#allocation12 + $0x110] sm:$0xff]
        %v2421 = vld [vmem:[#allocation12 + $0x118] sm:$0xff]
        %v2422 = vld [vmem:[#allocation12 + $0x120] sm:$0xff]
        %v2423 = vld [vmem:[#allocation12 + $0x128] sm:$0xff]
        %v2424 = vld [vmem:[#allocation12 + $0x130] sm:$0xff]
        %v2425 = vld [vmem:[#allocation12 + $0x138] sm:$0xff]
        %v2426 = vld [vmem:[#allocation12 + $0x140] sm:$0xff]
        %v2427 = vld [vmem:[#allocation12 + $0x148] sm:$0xff]
        %v2428 = vld [vmem:[#allocation12 + $0x150] sm:$0xff]
        %v2429 = vld [vmem:[#allocation12 + $0x158] sm:$0xff]
        %v2430 = vld [vmem:[#allocation12 + $0x160] sm:$0xff]
        %v2431 = vld [vmem:[#allocation12 + $0x168] sm:$0xff]
        %v2432 = vld [vmem:[#allocation12 + $0x170] sm:$0xff]
        %v2433 = vld [vmem:[#allocation12 + $0x178] sm:$0xff]
        %v2434 = vld [vmem:[#allocation12 + $0x180] sm:$0xff]
        %v2435 = vld [vmem:[#allocation12 + $0x188] sm:$0xff]
        %v2436 = vld [vmem:[#allocation12 + $0x190] sm:$0xff]
        %v2437 = vld [vmem:[#allocation12 + $0x198] sm:$0xff]
        %v2438 = vld [vmem:[#allocation12 + $0x1a0] sm:$0xff]
        %v2439 = vld [vmem:[#allocation12 + $0x1a8] sm:$0xff]
        %v2440 = vld [vmem:[#allocation12 + $0x1b0] sm:$0xff]
        %v2441 = vld [vmem:[#allocation12 + $0x1b8] sm:$0xff]
        %v2442 = vld [vmem:[#allocation12 + $0x1c0] sm:$0xff]
        %v2443 = vld [vmem:[#allocation12 + $0x1c8] sm:$0xff]
        %v2444 = vld [vmem:[#allocation12 + $0x1d0] sm:$0xff]
        %v2445 = vld [vmem:[#allocation12 + $0x1d8] sm:$0xff]
        %v2446 = vld [vmem:[#allocation12 + $0x1e0] sm:$0xff]
        %v2447 = vld [vmem:[#allocation12 + $0x1e8] sm:$0xff]
        %v2448 = vld [vmem:[#allocation12 + $0x1f0] sm:$0xff]
        %v2449 = vld [vmem:[#allocation12 + $0x1f8] sm:$0xff]
        %2450 = vmatprep.subr.mxu0 %v2387
        %2451 = vmatpush1.msra.mxu0 %v2386
        %2452 = vmatprep.subr.mxu0 %v2391
        %2453 = vmatpush1.msra.mxu0 %v2390
        %2454 = vmatprep.subr.mxu0 %v2395
        %2455 = vmatpush1.msra.mxu0 %v2394
        %2456 = vmatprep.subr.mxu0 %v2399
        %2457 = vmatpush1.msra.mxu0 %v2398
        %2458 = vmatprep.subr.mxu0 %v2403
        %2459 = vmatpush1.msra.mxu0 %v2402
        %2460 = vmatprep.subr.mxu0 %v2407
        %2461 = vmatpush1.msra.mxu0 %v2406
        %2462 = vmatprep.subr.mxu0 %v2411
        %2463 = vmatpush1.msra.mxu0 %v2410
        %2464 = vmatprep.subr.mxu0 %v2415
        %2465 = vmatpush1.msra.mxu0 %v2414
        %2466 = vmatprep.subr.mxu0 %v2419
        %2467 = vmatpush1.msra.mxu0 %v2418
        %2468 = vmatprep.subr.mxu0 %v2423
        %2469 = vmatpush1.msra.mxu0 %v2422
        %2470 = vmatprep.subr.mxu0 %v2427
        %2471 = vmatpush1.msra.mxu0 %v2426
        %2472 = vmatprep.subr.mxu0 %v2431
        %2473 = vmatpush1.msra.mxu0 %v2430
        %2474 = vmatprep.subr.mxu0 %v2435
        %2475 = vmatpush1.msra.mxu0 %v2434
        %2476 = vmatprep.subr.mxu0 %v2439
        %2477 = vmatpush1.msra.mxu0 %v2438
        %2478 = vmatprep.subr.mxu0 %v2443
        %2479 = vmatpush1.msra.mxu0 %v2442
        %2480 = vmatprep.subr.mxu0 %v2447
        %2481 = vmatpush1.msra.mxu0 %v2446
        %2482 = vmatprep.subr.mxu0 0.0
        %2483 = vmatpush1.msra.mxu0 0.0
        %2484 = vmatprep.subr.mxu0 0.0
        %2485 = vmatpush1.msra.mxu0 0.0
        %2486 = vmatprep.subr.mxu0 0.0
        %2487 = vmatpush1.msra.mxu0 0.0
        %2488 = vmatprep.subr.mxu0 0.0
        %2489 = vmatpush1.msra.mxu0 0.0
        %2490 = vmatprep.subr.mxu0 0.0
        %2491 = vmatpush1.msra.mxu0 0.0
        %2492 = vmatprep.subr.mxu0 0.0
        %2493 = vmatpush1.msra.mxu0 0.0
        %2494 = vmatprep.subr.mxu0 0.0
        %2495 = vmatpush1.msra.mxu0 0.0
        %2496 = vmatprep.subr.mxu0 0.0
        %2497 = vmatpush1.msra.mxu0 0.0
        %2498 = vmatprep.subr.mxu0 0.0
        %2499 = vmatpush1.msra.mxu0 0.0
        %2500 = vmatprep.subr.mxu0 0.0
        %2501 = vmatpush1.msra.mxu0 0.0
        %2502 = vmatprep.subr.mxu0 0.0
        %2503 = vmatpush1.msra.mxu0 0.0
        %2504 = vmatprep.subr.mxu0 0.0
        %2505 = vmatpush1.msra.mxu0 0.0
        %2506 = vmatprep.subr.mxu0 0.0
        %2507 = vmatpush1.msra.mxu0 0.0
        %2508 = vmatprep.subr.mxu0 0.0
        %2509 = vmatpush1.msra.mxu0 0.0
        %2510 = vmatprep.subr.mxu0 0.0
        %2511 = vmatpush1.msra.mxu0 0.0
        %2512 = vmatprep.subr.mxu0 0.0
        %2513 = vmatpush1.msra.mxu0 0.0
        %2514 = vmatprep.mubr.f32.mxu0 0.0
        %2515 = vmatmul.mubr.f32.gmra.mrb[0].mxu0 %v2380
        %v2516 = vpop.f32.mrb[0].mxu0
        %v2517 = vadd.f32 0.0, %v2516
        %v2518 = vpop.f32.mrb[0].mxu0
        %v2519 = vadd.f32 0.0, %v2518
        %2520 = vdwg.mxu0
        %2521 = vmatprep.subr.mxu0 %v2389
        %2522 = vmatpush1.msra.mxu0 %v2388
        %2523 = vmatprep.subr.mxu0 %v2393
        %2524 = vmatpush1.msra.mxu0 %v2392
        %2525 = vmatprep.subr.mxu0 %v2397
        %2526 = vmatpush1.msra.mxu0 %v2396
        %2527 = vmatprep.subr.mxu0 %v2401
        %2528 = vmatpush1.msra.mxu0 %v2400
        %2529 = vmatprep.subr.mxu0 %v2405
        %2530 = vmatpush1.msra.mxu0 %v2404
        %2531 = vmatprep.subr.mxu0 %v2409
        %2532 = vmatpush1.msra.mxu0 %v2408
        %2533 = vmatprep.subr.mxu0 %v2413
        %2534 = vmatpush1.msra.mxu0 %v2412
        %2535 = vmatprep.subr.mxu0 %v2417
        %2536 = vmatpush1.msra.mxu0 %v2416
        %2537 = vmatprep.subr.mxu0 %v2421
        %2538 = vmatpush1.msra.mxu0 %v2420
        %2539 = vmatprep.subr.mxu0 %v2425
        %2540 = vmatpush1.msra.mxu0 %v2424
        %2541 = vmatprep.subr.mxu0 %v2429
        %2542 = vmatpush1.msra.mxu0 %v2428
        %2543 = vmatprep.subr.mxu0 %v2433
        %2544 = vmatpush1.msra.mxu0 %v2432
        %2545 = vmatprep.subr.mxu0 %v2437
        %2546 = vmatpush1.msra.mxu0 %v2436
        %2547 = vmatprep.subr.mxu0 %v2441
        %2548 = vmatpush1.msra.mxu0 %v2440
        %2549 = vmatprep.subr.mxu0 %v2445
        %2550 = vmatpush1.msra.mxu0 %v2444
        %2551 = vmatprep.subr.mxu0 %v2449
        %2552 = vmatpush1.msra.mxu0 %v2448
        %2553 = vmatprep.subr.mxu0 0.0
        %2554 = vmatpush1.msra.mxu0 0.0
        %2555 = vmatprep.subr.mxu0 0.0
        %2556 = vmatpush1.msra.mxu0 0.0
        %2557 = vmatprep.subr.mxu0 0.0
        %2558 = vmatpush1.msra.mxu0 0.0
        %2559 = vmatprep.subr.mxu0 0.0
        %2560 = vmatpush1.msra.mxu0 0.0
        %2561 = vmatprep.subr.mxu0 0.0
        %2562 = vmatpush1.msra.mxu0 0.0
        %2563 = vmatprep.subr.mxu0 0.0
        %2564 = vmatpush1.msra.mxu0 0.0
        %2565 = vmatprep.subr.mxu0 0.0
        %2566 = vmatpush1.msra.mxu0 0.0
        %2567 = vmatprep.subr.mxu0 0.0
        %2568 = vmatpush1.msra.mxu0 0.0
        %2569 = vmatprep.subr.mxu0 0.0
        %2570 = vmatpush1.msra.mxu0 0.0
        %2571 = vmatprep.subr.mxu0 0.0
        %2572 = vmatpush1.msra.mxu0 0.0
        %2573 = vmatprep.subr.mxu0 0.0
        %2574 = vmatpush1.msra.mxu0 0.0
        %2575 = vmatprep.subr.mxu0 0.0
        %2576 = vmatpush1.msra.mxu0 0.0
        %2577 = vmatprep.subr.mxu0 0.0
        %2578 = vmatpush1.msra.mxu0 0.0
        %2579 = vmatprep.subr.mxu0 0.0
        %2580 = vmatpush1.msra.mxu0 0.0
        %2581 = vmatprep.subr.mxu0 0.0
        %2582 = vmatpush1.msra.mxu0 0.0
        %2583 = vmatprep.subr.mxu0 0.0
        %2584 = vmatpush1.msra.mxu0 0.0
        %2585 = vmatprep.mubr.f32.mxu0 0.0
        %2586 = vmatmul.mubr.f32.gmra.mrb[0].mxu0 %v2380
        %v2587 = vpop.f32.mrb[0].mxu0
        %v2588 = vadd.f32 0.0, %v2587
        %v2589 = vpop.f32.mrb[0].mxu0
        %v2590 = vadd.f32 0.0, %v2589
        %2591 = vdwg.mxu0
        %v2592 = vadd.f32 %v2382, %v2517
        %v2593 = vadd.f32 %v2383, %v2519
        %v2594 = vadd.f32 %v2384, %v2588
        %v2595 = vadd.f32 %v2385, %v2590
        %v2596 = vxor.u32 %v2592, 2147483648
        %v2597 = vxor.u32 %v2593, 2147483648
        %v2598 = vxor.u32 %v2594, 2147483648
        %v2599 = vmul.f32 %v2596, 1.442695
        %v2600 = vpow.pop %v2599
        %v2601 = vmul.f32 %v2597, 1.442695
        %v2602 = vpow.pop %v2601
        %v2603 = vmul.f32 %v2598, 1.442695
        %v2604 = vpow.pop %v2603
        %v2605 = vadd.f32 %v2600, 1.0
        %v2606 = vadd.f32 %v2602, 1.0
        %v2607 = vadd.f32 %v2604, 1.0
        %v2608 = vrcp.pop %v2605
        %v2609 = vmul.f32 1.0, %v2608
        %v2610 = vrcp.pop %v2606
        %v2611 = vmul.f32 1.0, %v2610
        %v2612 = vrcp.pop %v2607
        %v2613 = vmul.f32 1.0, %v2612
        %v2614 = vtanh.pop %v2595
        %v2615 = vmul.f32 %v2611, %v2378
        %v2616 = vmul.f32 %v2609, %v2614
        %v2617 = vadd.f32 %v2615, %v2616
        %v2618 = vtanh.pop %v2617
        %v2619 = vmul.f32 %v2613, %v2618
        %2620 = vst [vmem:[#allocation5 + $0x38] sm:$0xff] %v2619
        %2621 = vst [vmem:[#allocation3] sm:$0xff] %v2619
        %2622 = vst [vmem:[#allocation4] sm:$0xff] %v2617
        %v2623 = vld [vmem:[#allocation6] sm:$0xff]
        %v2624 = vld [vmem:[#allocation5] sm:$0xff]
        %v2625 = vld [vmem:[#allocation5 + $0x8] sm:$0xff]
        %v2626 = vld [vmem:[#allocation5 + $0x10] sm:$0xff]
        %v2627 = vld [vmem:[#allocation5 + $0x18] sm:$0xff]
        %v2628 = vld [vmem:[#allocation5 + $0x20] sm:$0xff]
        %v2629 = vld [vmem:[#allocation5 + $0x28] sm:$0xff]
        %v2630 = vld [vmem:[#allocation5 + $0x30] sm:$0xff]
        %v2631 = vld [vmem:[#allocation5 + $0x38] sm:$0xff]
        %v2632 = vld [vmem:[%s319] sm:$0xff]
        %v2633 = vld [vmem:[%s319 + $0x8] sm:$0xff]
        %v2634 = vld [vmem:[%s319 + $0x10] sm:$0xff]
        %v2635 = vld [vmem:[%s319 + $0x18] sm:$0xff]
        %v2636 = vld [vmem:[%s319 + $0x20] sm:$0xff]
        %v2637 = vld [vmem:[%s319 + $0x28] sm:$0xff]
        %v2638 = vld [vmem:[%s319 + $0x30] sm:$0xff]
        %v2639 = vld [vmem:[%s319 + $0x38] sm:$0xff]
        %v2640 = vld [vmem:[%s319 + $0x40] sm:$0xff]
        %v2641 = vld [vmem:[%s319 + $0x48] sm:$0xff]
        %v2642 = vld [vmem:[%s319 + $0x50] sm:$0xff]
        %v2643 = vld [vmem:[%s319 + $0x58] sm:$0xff]
        %v2644 = vld [vmem:[%s319 + $0x60] sm:$0xff]
        %v2645 = vld [vmem:[%s319 + $0x68] sm:$0xff]
        %v2646 = vld [vmem:[%s319 + $0x70] sm:$0xff]
        %v2647 = vld [vmem:[%s319 + $0x78] sm:$0xff]
        %v2648 = vld [vmem:[%s319 + $0x80] sm:$0xff]
        %v2649 = vld [vmem:[%s319 + $0x88] sm:$0xff]
        %v2650 = vld [vmem:[%s319 + $0x90] sm:$0xff]
        %v2651 = vld [vmem:[%s319 + $0x98] sm:$0xff]
        %v2652 = vld [vmem:[%s319 + $0xa0] sm:$0xff]
        %v2653 = vld [vmem:[%s319 + $0xa8] sm:$0xff]
        %v2654 = vld [vmem:[%s319 + $0xb0] sm:$0xff]
        %v2655 = vld [vmem:[%s319 + $0xb8] sm:$0xff]
        %v2656 = vld [vmem:[%s319 + $0xc0] sm:$0xff]
        %v2657 = vld [vmem:[%s319 + $0xc8] sm:$0xff]
        %v2658 = vld [vmem:[%s319 + $0xd0] sm:$0xff]
        %v2659 = vld [vmem:[%s319 + $0xd8] sm:$0xff]
        %v2660 = vld [vmem:[%s319 + $0xe0] sm:$0xff]
        %v2661 = vld [vmem:[%s319 + $0xe8] sm:$0xff]
        %v2662 = vld [vmem:[%s319 + $0xf0] sm:$0xff]
        %v2663 = vld [vmem:[%s319 + $0xf8] sm:$0xff]
        %v2664 = vld [vmem:[%s319 + $0x100] sm:$0xff]
        %v2665 = vld [vmem:[%s319 + $0x108] sm:$0xff]
        %v2666 = vld [vmem:[%s319 + $0x110] sm:$0xff]
        %v2667 = vld [vmem:[%s319 + $0x118] sm:$0xff]
        %v2668 = vld [vmem:[%s319 + $0x120] sm:$0xff]
        %v2669 = vld [vmem:[%s319 + $0x128] sm:$0xff]
        %v2670 = vld [vmem:[%s319 + $0x130] sm:$0xff]
        %v2671 = vld [vmem:[%s319 + $0x138] sm:$0xff]
        %v2672 = vld [vmem:[%s319 + $0x140] sm:$0xff]
        %v2673 = vld [vmem:[%s319 + $0x148] sm:$0xff]
        %v2674 = vld [vmem:[%s319 + $0x150] sm:$0xff]
        %v2675 = vld [vmem:[%s319 + $0x158] sm:$0xff]
        %v2676 = vld [vmem:[%s319 + $0x160] sm:$0xff]
        %v2677 = vld [vmem:[%s319 + $0x168] sm:$0xff]
        %v2678 = vld [vmem:[%s319 + $0x170] sm:$0xff]
        %v2679 = vld [vmem:[%s319 + $0x178] sm:$0xff]
        %v2680 = vld [vmem:[%s319 + $0x180] sm:$0xff]
        %v2681 = vld [vmem:[%s319 + $0x188] sm:$0xff]
        %v2682 = vld [vmem:[%s319 + $0x190] sm:$0xff]
        %v2683 = vld [vmem:[%s319 + $0x198] sm:$0xff]
        %v2684 = vld [vmem:[%s319 + $0x1a0] sm:$0xff]
        %v2685 = vld [vmem:[%s319 + $0x1a8] sm:$0xff]
        %v2686 = vld [vmem:[%s319 + $0x1b0] sm:$0xff]
        %v2687 = vld [vmem:[%s319 + $0x1b8] sm:$0xff]
        %v2688 = vld [vmem:[%s319 + $0x1c0] sm:$0xff]
        %v2689 = vld [vmem:[%s319 + $0x1c8] sm:$0xff]
        %v2690 = vld [vmem:[%s319 + $0x1d0] sm:$0xff]
        %v2691 = vld [vmem:[%s319 + $0x1d8] sm:$0xff]
        %v2692 = vld [vmem:[%s319 + $0x1e0] sm:$0xff]
        %v2693 = vld [vmem:[%s319 + $0x1e8] sm:$0xff]
        %v2694 = vld [vmem:[%s319 + $0x1f0] sm:$0xff]
        %v2695 = vld [vmem:[%s319 + $0x1f8] sm:$0xff]
        %v2696 = vld [vmem:[%s319 + $0x200] sm:$0xff]
        %v2697 = vld [vmem:[%s319 + $0x208] sm:$0xff]
        %v2698 = vld [vmem:[%s319 + $0x210] sm:$0xff]
        %v2699 = vld [vmem:[%s319 + $0x218] sm:$0xff]
        %v2700 = vld [vmem:[%s319 + $0x220] sm:$0xff]
        %v2701 = vld [vmem:[%s319 + $0x228] sm:$0xff]
        %v2702 = vld [vmem:[%s319 + $0x230] sm:$0xff]
        %v2703 = vld [vmem:[%s319 + $0x238] sm:$0xff]
        %v2704 = vld [vmem:[%s319 + $0x240] sm:$0xff]
        %v2705 = vld [vmem:[%s319 + $0x248] sm:$0xff]
        %v2706 = vld [vmem:[%s319 + $0x250] sm:$0xff]
        %v2707 = vld [vmem:[%s319 + $0x258] sm:$0xff]
        %v2708 = vld [vmem:[%s319 + $0x260] sm:$0xff]
        %v2709 = vld [vmem:[%s319 + $0x268] sm:$0xff]
        %v2710 = vld [vmem:[%s319 + $0x270] sm:$0xff]
        %v2711 = vld [vmem:[%s319 + $0x278] sm:$0xff]
        %v2712 = vld [vmem:[%s319 + $0x280] sm:$0xff]
        %v2713 = vld [vmem:[%s319 + $0x288] sm:$0xff]
        %v2714 = vld [vmem:[%s319 + $0x290] sm:$0xff]
        %v2715 = vld [vmem:[%s319 + $0x298] sm:$0xff]
        %v2716 = vld [vmem:[%s319 + $0x2a0] sm:$0xff]
        %v2717 = vld [vmem:[%s319 + $0x2a8] sm:$0xff]
        %v2718 = vld [vmem:[%s319 + $0x2b0] sm:$0xff]
        %v2719 = vld [vmem:[%s319 + $0x2b8] sm:$0xff]
        %v2720 = vld [vmem:[%s319 + $0x2c0] sm:$0xff]
        %v2721 = vld [vmem:[%s319 + $0x2c8] sm:$0xff]
        %v2722 = vld [vmem:[%s319 + $0x2d0] sm:$0xff]
        %v2723 = vld [vmem:[%s319 + $0x2d8] sm:$0xff]
        %v2724 = vld [vmem:[%s319 + $0x2e0] sm:$0xff]
        %v2725 = vld [vmem:[%s319 + $0x2e8] sm:$0xff]
        %v2726 = vld [vmem:[%s319 + $0x2f0] sm:$0xff]
        %v2727 = vld [vmem:[%s319 + $0x2f8] sm:$0xff]
        %v2728 = vld [vmem:[%s319 + $0x300] sm:$0xff]
        %v2729 = vld [vmem:[%s319 + $0x308] sm:$0xff]
        %v2730 = vld [vmem:[%s319 + $0x310] sm:$0xff]
        %v2731 = vld [vmem:[%s319 + $0x318] sm:$0xff]
        %v2732 = vld [vmem:[%s319 + $0x320] sm:$0xff]
        %v2733 = vld [vmem:[%s319 + $0x328] sm:$0xff]
        %v2734 = vld [vmem:[%s319 + $0x330] sm:$0xff]
        %v2735 = vld [vmem:[%s319 + $0x338] sm:$0xff]
        %v2736 = vld [vmem:[%s319 + $0x340] sm:$0xff]
        %v2737 = vld [vmem:[%s319 + $0x348] sm:$0xff]
        %v2738 = vld [vmem:[%s319 + $0x350] sm:$0xff]
        %v2739 = vld [vmem:[%s319 + $0x358] sm:$0xff]
        %v2740 = vld [vmem:[%s319 + $0x360] sm:$0xff]
        %v2741 = vld [vmem:[%s319 + $0x368] sm:$0xff]
        %v2742 = vld [vmem:[%s319 + $0x370] sm:$0xff]
        %v2743 = vld [vmem:[%s319 + $0x378] sm:$0xff]
        %v2744 = vld [vmem:[%s319 + $0x380] sm:$0xff]
        %v2745 = vld [vmem:[%s319 + $0x388] sm:$0xff]
        %v2746 = vld [vmem:[%s319 + $0x390] sm:$0xff]
        %v2747 = vld [vmem:[%s319 + $0x398] sm:$0xff]
        %v2748 = vld [vmem:[%s319 + $0x3a0] sm:$0xff]
        %v2749 = vld [vmem:[%s319 + $0x3a8] sm:$0xff]
        %v2750 = vld [vmem:[%s319 + $0x3b0] sm:$0xff]
        %v2751 = vld [vmem:[%s319 + $0x3b8] sm:$0xff]
        %v2752 = vld [vmem:[%s319 + $0x3c0] sm:$0xff]
        %v2753 = vld [vmem:[%s319 + $0x3c8] sm:$0xff]
        %v2754 = vld [vmem:[%s319 + $0x3d0] sm:$0xff]
        %v2755 = vld [vmem:[%s319 + $0x3d8] sm:$0xff]
        %v2756 = vld [vmem:[%s319 + $0x3e0] sm:$0xff]
        %v2757 = vld [vmem:[%s319 + $0x3e8] sm:$0xff]
        %v2758 = vld [vmem:[%s319 + $0x3f0] sm:$0xff]
        %v2759 = vld [vmem:[%s319 + $0x3f8] sm:$0xff]
        %2760 = vmatprep.subr.mxu0 0.0
        %2761 = vmatpush1.msra.mxu0 %v2632
        %2762 = vmatprep.subr.mxu0 0.0
        %2763 = vmatpush1.msra.mxu0 %v2633
        %2764 = vmatprep.subr.mxu0 0.0
        %2765 = vmatpush1.msra.mxu0 %v2634
        %2766 = vmatprep.subr.mxu0 0.0
        %2767 = vmatpush1.msra.mxu0 %v2635
        %2768 = vmatprep.subr.mxu0 0.0
        %2769 = vmatpush1.msra.mxu0 %v2636
        %2770 = vmatprep.subr.mxu0 0.0
        %2771 = vmatpush1.msra.mxu0 %v2637
        %2772 = vmatprep.subr.mxu0 0.0
        %2773 = vmatpush1.msra.mxu0 %v2638
        %2774 = vmatprep.subr.mxu0 0.0
        %2775 = vmatpush1.msra.mxu0 %v2639
        %2776 = vmatprep.subr.mxu0 0.0
        %2777 = vmatpush1.msra.mxu0 %v2640
        %2778 = vmatprep.subr.mxu0 0.0
        %2779 = vmatpush1.msra.mxu0 %v2641
        %2780 = vmatprep.subr.mxu0 0.0
        %2781 = vmatpush1.msra.mxu0 %v2642
        %2782 = vmatprep.subr.mxu0 0.0
        %2783 = vmatpush1.msra.mxu0 %v2643
        %2784 = vmatprep.subr.mxu0 0.0
        %2785 = vmatpush1.msra.mxu0 %v2644
        %2786 = vmatprep.subr.mxu0 0.0
        %2787 = vmatpush1.msra.mxu0 %v2645
        %2788 = vmatprep.subr.mxu0 0.0
        %2789 = vmatpush1.msra.mxu0 %v2646
        %2790 = vmatprep.subr.mxu0 0.0
        %2791 = vmatpush1.msra.mxu0 %v2647
        %2792 = vmatprep.subr.mxu0 0.0
        %2793 = vmatpush1.msra.mxu0 %v2648
        %2794 = vmatprep.subr.mxu0 0.0
        %2795 = vmatpush1.msra.mxu0 %v2649
        %2796 = vmatprep.subr.mxu0 0.0
        %2797 = vmatpush1.msra.mxu0 %v2650
        %2798 = vmatprep.subr.mxu0 0.0
        %2799 = vmatpush1.msra.mxu0 %v2651
        %2800 = vmatprep.subr.mxu0 0.0
        %2801 = vmatpush1.msra.mxu0 %v2652
        %2802 = vmatprep.subr.mxu0 0.0
        %2803 = vmatpush1.msra.mxu0 %v2653
        %2804 = vmatprep.subr.mxu0 0.0
        %2805 = vmatpush1.msra.mxu0 %v2654
        %2806 = vmatprep.subr.mxu0 0.0
        %2807 = vmatpush1.msra.mxu0 %v2655
        %2808 = vmatprep.subr.mxu0 0.0
        %2809 = vmatpush1.msra.mxu0 %v2656
        %2810 = vmatprep.subr.mxu0 0.0
        %2811 = vmatpush1.msra.mxu0 %v2657
        %2812 = vmatprep.subr.mxu0 0.0
        %2813 = vmatpush1.msra.mxu0 %v2658
        %2814 = vmatprep.subr.mxu0 0.0
        %2815 = vmatpush1.msra.mxu0 %v2659
        %2816 = vmatprep.subr.mxu0 0.0
        %2817 = vmatpush1.msra.mxu0 %v2660
        %2818 = vmatprep.subr.mxu0 0.0
        %2819 = vmatpush1.msra.mxu0 %v2661
        %2820 = vmatprep.subr.mxu0 0.0
        %2821 = vmatpush1.msra.mxu0 %v2662
        %2822 = vmatprep.subr.mxu0 0.0
        %2823 = vmatpush1.msra.mxu0 %v2663
        %2824 = vmatprep.mubr.f32.mxu0 %v2625
        %2825 = vmatmul.mubr.f32.gmra.mrb[0].mxu0 %v2624
        %v2826 = vpop.f32.mrb[0].mxu0
        %v2827 = vadd.f32 0.0, %v2826
        %v2828 = vpop.f32.mrb[0].mxu0
        %2829 = vdwg.mxu0
        %2830 = vmatprep.subr.mxu0 0.0
        %2831 = vmatpush1.msra.mxu0 %v2664
        %2832 = vmatprep.subr.mxu0 0.0
        %2833 = vmatpush1.msra.mxu0 %v2665
        %2834 = vmatprep.subr.mxu0 0.0
        %2835 = vmatpush1.msra.mxu0 %v2666
        %2836 = vmatprep.subr.mxu0 0.0
        %2837 = vmatpush1.msra.mxu0 %v2667
        %2838 = vmatprep.subr.mxu0 0.0
        %2839 = vmatpush1.msra.mxu0 %v2668
        %2840 = vmatprep.subr.mxu0 0.0
        %2841 = vmatpush1.msra.mxu0 %v2669
        %2842 = vmatprep.subr.mxu0 0.0
        %2843 = vmatpush1.msra.mxu0 %v2670
        %2844 = vmatprep.subr.mxu0 0.0
        %2845 = vmatpush1.msra.mxu0 %v2671
        %2846 = vmatprep.subr.mxu0 0.0
        %2847 = vmatpush1.msra.mxu0 %v2672
        %2848 = vmatprep.subr.mxu0 0.0
        %2849 = vmatpush1.msra.mxu0 %v2673
        %2850 = vmatprep.subr.mxu0 0.0
        %2851 = vmatpush1.msra.mxu0 %v2674
        %2852 = vmatprep.subr.mxu0 0.0
        %2853 = vmatpush1.msra.mxu0 %v2675
        %2854 = vmatprep.subr.mxu0 0.0
        %2855 = vmatpush1.msra.mxu0 %v2676
        %2856 = vmatprep.subr.mxu0 0.0
        %2857 = vmatpush1.msra.mxu0 %v2677
        %2858 = vmatprep.subr.mxu0 0.0
        %2859 = vmatpush1.msra.mxu0 %v2678
        %2860 = vmatprep.subr.mxu0 0.0
        %2861 = vmatpush1.msra.mxu0 %v2679
        %2862 = vmatprep.subr.mxu0 0.0
        %2863 = vmatpush1.msra.mxu0 %v2680
        %2864 = vmatprep.subr.mxu0 0.0
        %2865 = vmatpush1.msra.mxu0 %v2681
        %2866 = vmatprep.subr.mxu0 0.0
        %2867 = vmatpush1.msra.mxu0 %v2682
        %2868 = vmatprep.subr.mxu0 0.0
        %2869 = vmatpush1.msra.mxu0 %v2683
        %2870 = vmatprep.subr.mxu0 0.0
        %2871 = vmatpush1.msra.mxu0 %v2684
        %2872 = vmatprep.subr.mxu0 0.0
        %2873 = vmatpush1.msra.mxu0 %v2685
        %2874 = vmatprep.subr.mxu0 0.0
        %2875 = vmatpush1.msra.mxu0 %v2686
        %2876 = vmatprep.subr.mxu0 0.0
        %2877 = vmatpush1.msra.mxu0 %v2687
        %2878 = vmatprep.subr.mxu0 0.0
        %2879 = vmatpush1.msra.mxu0 %v2688
        %2880 = vmatprep.subr.mxu0 0.0
        %2881 = vmatpush1.msra.mxu0 %v2689
        %2882 = vmatprep.subr.mxu0 0.0
        %2883 = vmatpush1.msra.mxu0 %v2690
        %2884 = vmatprep.subr.mxu0 0.0
        %2885 = vmatpush1.msra.mxu0 %v2691
        %2886 = vmatprep.subr.mxu0 0.0
        %2887 = vmatpush1.msra.mxu0 %v2692
        %2888 = vmatprep.subr.mxu0 0.0
        %2889 = vmatpush1.msra.mxu0 %v2693
        %2890 = vmatprep.subr.mxu0 0.0
        %2891 = vmatpush1.msra.mxu0 %v2694
        %2892 = vmatprep.subr.mxu0 0.0
        %2893 = vmatpush1.msra.mxu0 %v2695
        %2894 = vmatprep.mubr.f32.mxu0 %v2627
        %2895 = vmatmul.mubr.f32.gmra.mrb[0].mxu0 %v2626
        %v2896 = vpop.f32.mrb[0].mxu0
        %v2897 = vadd.f32 %v2827, %v2896
        %v2898 = vpop.f32.mrb[0].mxu0
        %2899 = vdwg.mxu0
        %2900 = vmatprep.subr.mxu0 0.0
        %2901 = vmatpush1.msra.mxu0 %v2696
        %2902 = vmatprep.subr.mxu0 0.0
        %2903 = vmatpush1.msra.mxu0 %v2697
        %2904 = vmatprep.subr.mxu0 0.0
        %2905 = vmatpush1.msra.mxu0 %v2698
        %2906 = vmatprep.subr.mxu0 0.0
        %2907 = vmatpush1.msra.mxu0 %v2699
        %2908 = vmatprep.subr.mxu0 0.0
        %2909 = vmatpush1.msra.mxu0 %v2700
        %2910 = vmatprep.subr.mxu0 0.0
        %2911 = vmatpush1.msra.mxu0 %v2701
        %2912 = vmatprep.subr.mxu0 0.0
        %2913 = vmatpush1.msra.mxu0 %v2702
        %2914 = vmatprep.subr.mxu0 0.0
        %2915 = vmatpush1.msra.mxu0 %v2703
        %2916 = vmatprep.subr.mxu0 0.0
        %2917 = vmatpush1.msra.mxu0 %v2704
        %2918 = vmatprep.subr.mxu0 0.0
        %2919 = vmatpush1.msra.mxu0 %v2705
        %2920 = vmatprep.subr.mxu0 0.0
        %2921 = vmatpush1.msra.mxu0 %v2706
        %2922 = vmatprep.subr.mxu0 0.0
        %2923 = vmatpush1.msra.mxu0 %v2707
        %2924 = vmatprep.subr.mxu0 0.0
        %2925 = vmatpush1.msra.mxu0 %v2708
        %2926 = vmatprep.subr.mxu0 0.0
        %2927 = vmatpush1.msra.mxu0 %v2709
        %2928 = vmatprep.subr.mxu0 0.0
        %2929 = vmatpush1.msra.mxu0 %v2710
        %2930 = vmatprep.subr.mxu0 0.0
        %2931 = vmatpush1.msra.mxu0 %v2711
        %2932 = vmatprep.subr.mxu0 0.0
        %2933 = vmatpush1.msra.mxu0 %v2712
        %2934 = vmatprep.subr.mxu0 0.0
        %2935 = vmatpush1.msra.mxu0 %v2713
        %2936 = vmatprep.subr.mxu0 0.0
        %2937 = vmatpush1.msra.mxu0 %v2714
        %2938 = vmatprep.subr.mxu0 0.0
        %2939 = vmatpush1.msra.mxu0 %v2715
        %2940 = vmatprep.subr.mxu0 0.0
        %2941 = vmatpush1.msra.mxu0 %v2716
        %2942 = vmatprep.subr.mxu0 0.0
        %2943 = vmatpush1.msra.mxu0 %v2717
        %2944 = vmatprep.subr.mxu0 0.0
        %2945 = vmatpush1.msra.mxu0 %v2718
        %2946 = vmatprep.subr.mxu0 0.0
        %2947 = vmatpush1.msra.mxu0 %v2719
        %2948 = vmatprep.subr.mxu0 0.0
        %2949 = vmatpush1.msra.mxu0 %v2720
        %2950 = vmatprep.subr.mxu0 0.0
        %2951 = vmatpush1.msra.mxu0 %v2721
        %2952 = vmatprep.subr.mxu0 0.0
        %2953 = vmatpush1.msra.mxu0 %v2722
        %2954 = vmatprep.subr.mxu0 0.0
        %2955 = vmatpush1.msra.mxu0 %v2723
        %2956 = vmatprep.subr.mxu0 0.0
        %2957 = vmatpush1.msra.mxu0 %v2724
        %2958 = vmatprep.subr.mxu0 0.0
        %2959 = vmatpush1.msra.mxu0 %v2725
        %2960 = vmatprep.subr.mxu0 0.0
        %2961 = vmatpush1.msra.mxu0 %v2726
        %2962 = vmatprep.subr.mxu0 0.0
        %2963 = vmatpush1.msra.mxu0 %v2727
        %2964 = vmatprep.mubr.f32.mxu0 %v2629
        %2965 = vmatmul.mubr.f32.gmra.mrb[0].mxu0 %v2628
        %v2966 = vpop.f32.mrb[0].mxu0
        %v2967 = vadd.f32 %v2897, %v2966
        %v2968 = vpop.f32.mrb[0].mxu0
        %2969 = vdwg.mxu0
        %2970 = vmatprep.subr.mxu0 0.0
        %2971 = vmatpush1.msra.mxu0 %v2728
        %2972 = vmatprep.subr.mxu0 0.0
        %2973 = vmatpush1.msra.mxu0 %v2729
        %2974 = vmatprep.subr.mxu0 0.0
        %2975 = vmatpush1.msra.mxu0 %v2730
        %2976 = vmatprep.subr.mxu0 0.0
        %2977 = vmatpush1.msra.mxu0 %v2731
        %2978 = vmatprep.subr.mxu0 0.0
        %2979 = vmatpush1.msra.mxu0 %v2732
        %2980 = vmatprep.subr.mxu0 0.0
        %2981 = vmatpush1.msra.mxu0 %v2733
        %2982 = vmatprep.subr.mxu0 0.0
        %2983 = vmatpush1.msra.mxu0 %v2734
        %2984 = vmatprep.subr.mxu0 0.0
        %2985 = vmatpush1.msra.mxu0 %v2735
        %2986 = vmatprep.subr.mxu0 0.0
        %2987 = vmatpush1.msra.mxu0 %v2736
        %2988 = vmatprep.subr.mxu0 0.0
        %2989 = vmatpush1.msra.mxu0 %v2737
        %2990 = vmatprep.subr.mxu0 0.0
        %2991 = vmatpush1.msra.mxu0 %v2738
        %2992 = vmatprep.subr.mxu0 0.0
        %2993 = vmatpush1.msra.mxu0 %v2739
        %2994 = vmatprep.subr.mxu0 0.0
        %2995 = vmatpush1.msra.mxu0 %v2740
        %2996 = vmatprep.subr.mxu0 0.0
        %2997 = vmatpush1.msra.mxu0 %v2741
        %2998 = vmatprep.subr.mxu0 0.0
        %2999 = vmatpush1.msra.mxu0 %v2742
        %3000 = vmatprep.subr.mxu0 0.0
        %3001 = vmatpush1.msra.mxu0 %v2743
        %3002 = vmatprep.subr.mxu0 0.0
        %3003 = vmatpush1.msra.mxu0 %v2744
        %3004 = vmatprep.subr.mxu0 0.0
        %3005 = vmatpush1.msra.mxu0 %v2745
        %3006 = vmatprep.subr.mxu0 0.0
        %3007 = vmatpush1.msra.mxu0 %v2746
        %3008 = vmatprep.subr.mxu0 0.0
        %3009 = vmatpush1.msra.mxu0 %v2747
        %3010 = vmatprep.subr.mxu0 0.0
        %3011 = vmatpush1.msra.mxu0 %v2748
        %3012 = vmatprep.subr.mxu0 0.0
        %3013 = vmatpush1.msra.mxu0 %v2749
        %3014 = vmatprep.subr.mxu0 0.0
        %3015 = vmatpush1.msra.mxu0 %v2750
        %3016 = vmatprep.subr.mxu0 0.0
        %3017 = vmatpush1.msra.mxu0 %v2751
        %3018 = vmatprep.subr.mxu0 0.0
        %3019 = vmatpush1.msra.mxu0 %v2752
        %3020 = vmatprep.subr.mxu0 0.0
        %3021 = vmatpush1.msra.mxu0 %v2753
        %3022 = vmatprep.subr.mxu0 0.0
        %3023 = vmatpush1.msra.mxu0 %v2754
        %3024 = vmatprep.subr.mxu0 0.0
        %3025 = vmatpush1.msra.mxu0 %v2755
        %3026 = vmatprep.subr.mxu0 0.0
        %3027 = vmatpush1.msra.mxu0 %v2756
        %3028 = vmatprep.subr.mxu0 0.0
        %3029 = vmatpush1.msra.mxu0 %v2757
        %3030 = vmatprep.subr.mxu0 0.0
        %3031 = vmatpush1.msra.mxu0 %v2758
        %3032 = vmatprep.subr.mxu0 0.0
        %3033 = vmatpush1.msra.mxu0 %v2759
        %3034 = vmatprep.mubr.f32.mxu0 %v2631
        %3035 = vmatmul.mubr.f32.gmra.mrb[0].mxu0 %v2630
        %v3036 = vpop.f32.mrb[0].mxu0
        %v3037 = vadd.f32 %v2967, %v3036
        %v3038 = vpop.f32.mrb[0].mxu0
        %3039 = vdwg.mxu0
        %v3040 = vadd.f32 %v2623, %v3037
        %3041 = vst [vmem:[#allocation6] sm:$0xff] %v3040
        %p3042 = scmp.eq.s32.totalorder %s30, 1
        // Predicated region
        $region65: #{tpu_custom_call.1} parent=43 // pred_check
          %p3043 = pneg %p3042
        $region66: #{tpu_custom_call.1} parent=43 // pred_check_branch
          %3045 = sbr.rel (%p3043) target = $region68
        $region67: #{tpu_custom_call.1} parent=43 // pred_region
          %v3046 = vld [vmem:[#allocation6] sm:$0xff]
          %v3047 = vld [vmem:[%s5] sm:$0x1]
          %v3049 = vlaneseq
          %v3050 = vshrl.u32 %v3049, 7
          %v3051 = vsub.s32 0, %v3050
          %v3052 = vrot.slane %v3047, %v3051
          %v3054 = vadd.f32 %v3046, %v3052
          %3055 = vst [vmem:[#allocation15] sm:$0xff] %v3054
        $region68: #{tpu_custom_call.1} parent=43 // pred_fallthru
          _
        // Predicated region
        $region69: #{tpu_custom_call.1} parent=43 // pred_check
          %p3056 = pneg %p193
        $region70: #{tpu_custom_call.1} parent=43 // pred_check_branch
          %3058 = sbr.rel (%p3056) target = $region72
        $region71: #{tpu_custom_call.1} parent=43 // pred_region
          %s3060 = ssub.s32 128, 128
          %3061 = vsyncadd [#allocation9], %s3060
          %s3062 = smul.addr %s29, 128
          %s3063 = scalar_lea.hbm %s6, %s3062
          %s3065 = sshll.u32 [#allocation15], 4
          %s3066 = int_to_ptr.vmem [resolvable:$true] %s3065
          %3068 = dma.vmem_to_hbm [thread:$0]  %s3066, 128, %s3063, [#allocation9]
        $region72: #{tpu_custom_call.1} parent=43 // pred_fallthru
          _
        // Predicated region
        $region73: #{tpu_custom_call.1} parent=43 // pred_check
          %p3069 = pneg %p193
        $region74: #{tpu_custom_call.1} parent=43 // pred_check_branch
          %3071 = sbr.rel (%p3069) target = $region76
        $region75: #{tpu_custom_call.1} parent=43 // pred_region
          %3072 = dma.done [#allocation9], 128
        $region76: #{tpu_custom_call.1} parent=43 // pred_fallthru
          _
      $region44: #{tpu_custom_call.1} parent=5 // pred_fallthru
        _
      %p3073 = scmp.le.s32.totalorder 2, %s20
      // Predicated region
      $region77: #{tpu_custom_call.1} parent=5 // pred_check
        %p3074 = pneg %p3073
      $region78: #{tpu_custom_call.1} parent=5 // pred_check_branch
        %3076 = sbr.rel (%p3074) target = $region80
      $region79: #{tpu_custom_call.1} parent=5 // pred_region
        %s3077 = ssub.s32 %s20, 2
      $region80: #{tpu_custom_call.1} parent=5 // pred_fallthru
        _
    $region6: #{tpu_custom_call.1} parent=1 // loop_footer
      %s24 = sadd.s32 1, %s20
    $region7: #{tpu_custom_call.1} parent=1 // loop_footer_branch
      %19 = sbr.rel target = $region3
    $region8: #{tpu_custom_call.1} parent=1 // loop_exit
      _
    %3078 = vsyncpa [#allocation8], 1
    %s3079 = scalar_lea.sflag [#allocation8], 1
    %3080 = vsyncpa %s3079, 1
    %3081 = vsyncpa [#allocation11], 1
    %3082 = vsyncpa [#allocation14], 1
    %s3083 = scalar_lea.sflag [#allocation14], 1
    %3084 = vsyncpa %s3083, 1
    %3085 = vsyncpa [#allocation9], 1
    %s3086 = scalar_lea.sflag [#allocation9], 1
    %3087 = vsyncpa %s3086, 1

</llo_original>
